<compile_context>
chip_gen: v5e
topology: v5e:2x2
jax: 0.10.0
libtpu: 0.0.40
codegen_flags: <defaults>
</compile_context>

<pallas_src>
import jax
import jax.numpy as jnp
from jax.experimental import pallas as pl
from jax.experimental.pallas import tpu as pltpu

_EPS = 1e-5
_HW_CACHE = {}


# --------------------------- hardware query helpers ------------------------- #

def _vmem_limit_bytes():
    if "vmem" not in _HW_CACHE:
        try:
            cap = pltpu.get_tpu_info().vmem_capacity_bytes
            # leave ~25% headroom for compiler scratch / double buffering
            _HW_CACHE["vmem"] = max(32 * 1024 * 1024, int(cap * 0.75))
        except Exception:
            _HW_CACHE["vmem"] = None
    return _HW_CACHE["vmem"]


def _wide_mxu():
    """True on v6e / v7x (2x256^2 MXU) -> prefer 256-wide N tiles."""
    if "wide" not in _HW_CACHE:
        wide = False
        try:
            kind = jax.devices()[0].device_kind.lower()
            wide = ("v6" in kind) or ("v7" in kind)
        except Exception:
            wide = False
        _HW_CACHE["wide"] = wide
    return _HW_CACHE["wide"]


def _cparams(dim_sems):
    kwargs = dict(dimension_semantics=dim_sems)
    lim = _vmem_limit_bytes()
    if lim is not None:
        kwargs["vmem_limit_bytes"] = lim
    return pltpu.CompilerParams(**kwargs)


# ------------------------- pltpu.roll direction probe ----------------------- #

def _roll_probe_kernel(o_ref):
    x = jax.lax.broadcasted_iota(jnp.int32, (8, 128), 0)
    o_ref[...] = pltpu.roll(x, shift=1, axis=0)


def _roll_mode():
    """'jnp'   : pltpu.roll matches jnp.roll (result[i] = x[i - shift])
       'inv'   : opposite direction
       'concat': roll unusable here -> slice+concat fallback (always correct)."""
    if "roll" not in _HW_CACHE:
        mode = "concat"
        try:
            out = pl.pallas_call(
                _roll_probe_kernel,
                out_shape=jax.ShapeDtypeStruct((8, 128), jnp.int32),
            )()
            v = int(jax.device_get(out)[0, 0])
            if v == 7:
                mode = "jnp"
            elif v == 1:
                mode = "inv"
        except Exception:
            mode = "concat"
        _HW_CACHE["roll"] = mode
    return _HW_CACHE["roll"]


# ------------------------------ Pallas kernels ------------------------------ #

def _make_matmul_bn_single_kernel(relu, has_res):
    """Single-K fused (x @ w) + bias (+ residual) (+ ReLU): no f32 scratch."""
    def kernel(x_ref, w_ref, b_ref, *rest):
        if has_res:
            res_ref, out_ref = rest
        else:
            (out_ref,) = rest
        y = jnp.dot(x_ref[...], w_ref[...], preferred_element_type=jnp.float32)
        y = y + b_ref[...]
        if has_res:
            y = y + res_ref[...].astype(jnp.float32)
        if relu:
            y = jnp.maximum(y, 0.0)
        out_ref[...] = y.astype(out_ref.dtype)
    return kernel


def _make_matmul_bn_acc_kernel(relu, has_res):
    """K-tiled fused (x @ w) + bias (+ residual) (+ ReLU) with f32 accumulator."""
    def kernel(x_ref, w_ref, b_ref, *rest):
        if has_res:
            res_ref, out_ref, acc_ref = rest
        else:
            out_ref, acc_ref = rest
        k = pl.program_id(2)

        @pl.when(k == 0)
        def _():
            acc_ref[...] = jnp.zeros_like(acc_ref)

        acc_ref[...] += jnp.dot(x_ref[...], w_ref[...],
                                preferred_element_type=jnp.float32)

        @pl.when(k == pl.num_programs(2) - 1)
        def _():
            y = acc_ref[...] + b_ref[...]
            if has_res:
                y = y + res_ref[...].astype(jnp.float32)
            if relu:
                y = jnp.maximum(y, 0.0)
            out_ref[...] = y.astype(out_ref.dtype)
    return kernel


def _make_conv3x3_kernel(K, dilation, TH, Wb, Wo, relu, roll_mode):
    """3x3 conv (stride 1) + folded-BN bias + ReLU.

    Grid order: (Cout tile j, batch n, H tile h)  -> weights stay VMEM-resident.
    x_ref:  (1, Hp, Wb, Cin)  full padded image (bf16), Wb multiple of 8
    w_ref:  (K, K, Cin, TC)   scale-folded weights (bf16)
    b_ref:  (1, TC)           folded BN bias (f32)
    out_ref:(1, TH, Wo, TC)
    acc_ref:(TH*Wb, TC) f32 VMEM scratch
    """
    n_rows = TH * Wb

    def shift_up(rows, k):
        # Returns v with v[i] = rows[(i + k) % n_rows].  Wrap-around only lands in
        # output columns >= Wo which are discarded in the epilogue.
        if k == 0:
            return rows
        if roll_mode == "jnp":
            return pltpu.roll(rows, shift=n_rows - k, axis=0)
        if roll_mode == "inv":
            return pltpu.roll(rows, shift=k, axis=0)
        return jnp.concatenate([rows[k:], rows[:k]], axis=0)

    def kernel(x_ref, w_ref, b_ref, out_ref, acc_ref):
        h = pl.program_id(2)
        cin = x_ref.shape[-1]
        tc = w_ref.shape[-1]
        acc_ref[...] = jnp.zeros_like(acc_ref)
        for kh in range(K):
            # contiguous H-row slice only (leading dim -> no relayout), one
            # layout-trivial flatten per kh (Wb is a multiple of 8).
            rows = x_ref[0, pl.ds(h * TH + kh * dilation, TH), :, :]
            rows = rows.reshape(n_rows, cin)
            for kw in range(K):
                acc_ref[...] += jnp.dot(shift_up(rows, kw * dilation),
                                        w_ref[kh, kw],
                                        preferred_element_type=jnp.float32)
        y = acc_ref[...] + b_ref[...]
        if relu:
            y = jnp.maximum(y, 0.0)
        out_ref[0] = y.reshape(TH, Wb, tc)[:, :Wo, :].astype(out_ref.dtype)
    return kernel


# ------------------------------- tiling helpers ----------------------------- #

def _round_up(x, m):
    return ((x + m - 1) // m) * m


def _row_tiling(rows):
    """Row tile for the 1x1 matmuls: large, but >= 2 tiles so v7x's 2 TCs are fed."""
    rows_p = _round_up(rows, 128)
    for t in (512, 256, 128):
        if rows_p % t == 0 and rows_p // t >= 2:
            return t, rows_p
    return min(rows_p, 512), rows_p


def _k_tile(cin):
    if cin <= 512:
        return cin
    for t in (512, 256, 128):
        if cin % t == 0:
            return t
    return cin


def _h_tiling(Ho, Wb, TC, acc_budget=1 << 20):
    """Largest divisor of Ho whose f32 accumulator fits the budget, preferring
    >= 2 H tiles (pipelining + v7x core parallelism)."""
    divs = sorted((d for d in range(1, Ho + 1) if Ho % d == 0), reverse=True)
    for d in divs:
        if d * Wb * TC * 4 <= acc_budget and Ho // d >= 2:
            return d
    for d in divs:
        if d * Wb * TC * 4 <= acc_budget:
            return d
    return 1


# --------------------------------- conv ops --------------------------------- #

def conv1x1_bn(x, w, bias, *, stride=1, relu=True, residual=None):
    """1x1 conv (BN scale pre-folded into w, Cout zero-padded to 128-multiple)
    + bias + optional residual + ReLU.
    x: (N,H,W,Cin) bf16;  w: (Cin,Coutp) bf16;  bias: (Coutp,) f32."""
    if stride != 1:
        x = x[:, ::stride, ::stride, :]            # exact for a strided 1x1 conv
    N, H, W, Cin = x.shape
    Coutp = w.shape[-1]
    rows = N * H * W
    TM, rows_p = _row_tiling(rows)
    TC = 256 if (_wide_mxu() and Coutp % 256 == 0) else 128
    if Coutp % TC != 0:                            # safety net (init pads to 128)
        TC = Coutp
    TK = _k_tile(Cin)
    if Cin % TK != 0:
        TK = Cin
    nk = Cin // TK

    x2 = x.reshape(rows, Cin)
    res2 = residual.reshape(rows, Coutp) if residual is not None else None
    if rows_p != rows:
        x2 = jnp.pad(x2, ((0, rows_p - rows), (0, 0)))
        if res2 is not None:
            res2 = jnp.pad(res2, ((0, rows_p - rows), (0, 0)))
    bias2 = bias.reshape(1, Coutp).astype(jnp.float32)
    has_res = res2 is not None

    if nk == 1:
        # Single K step: write the output directly (no scratch init/readback).
        in_specs = [
            pl.BlockSpec((TM, TK), lambda i, j: (i, 0)),
            pl.BlockSpec((TK, TC), lambda i, j: (0, j)),
            pl.BlockSpec((1, TC), lambda i, j: (0, j)),
        ]
        args = [x2, w, bias2]
        if has_res:
            in_specs.append(pl.BlockSpec((TM, TC), lambda i, j: (i, j)))
            args.append(res2)
        out = pl.pallas_call(
            _make_matmul_bn_single_kernel(relu, has_res),
            out_shape=jax.ShapeDtypeStruct((rows_p, Coutp), x.dtype),
            grid=(rows_p // TM, Coutp // TC),
            in_specs=in_specs,
            out_specs=pl.BlockSpec((TM, TC), lambda i, j: (i, j)),
            compiler_params=_cparams(("parallel", "parallel")),
        )(*args)
    else:
        in_specs = [
            pl.BlockSpec((TM, TK), lambda i, j, k: (i, k)),
            pl.BlockSpec((TK, TC), lambda i, j, k: (k, j)),
            pl.BlockSpec((1, TC), lambda i, j, k: (0, j)),
        ]
        args = [x2, w, bias2]
        if has_res:
            in_specs.append(pl.BlockSpec((TM, TC), lambda i, j, k: (i, j)))
            args.append(res2)
        out = pl.pallas_call(
            _make_matmul_bn_acc_kernel(relu, has_res),
            out_shape=jax.ShapeDtypeStruct((rows_p, Coutp), x.dtype),
            grid=(rows_p // TM, Coutp // TC, nk),
            in_specs=in_specs,
            out_specs=pl.BlockSpec((TM, TC), lambda i, j, k: (i, j)),
            scratch_shapes=[pltpu.VMEM((TM, TC), jnp.float32)],
            compiler_params=_cparams(("parallel", "parallel", "arbitrary")),
        )(*args)
    return out[:rows].reshape(N, H, W, Coutp)


def conv3x3_bn(x, w, bias, *, stride=1, dilation=1, relu=True):
    """3x3 conv (padding=dilation, BN scale pre-folded, Cout padded) + bias + ReLU.
    x: (N,H,W,Cin) bf16;  w: (3,3,Cin,Coutp) bf16;  bias: (Coutp,) f32."""
    if stride != 1:
        # TODO(synk): real strided 3x3 path; currently stride-1 compute + subsample.
        y = conv3x3_bn(x, w, bias, stride=1, dilation=dilation, relu=relu)
        return y[:, ::stride, ::stride, :]

    N, H, W, Cin = x.shape
    K = w.shape[0]
    Coutp = w.shape[-1]
    pad = dilation * (K - 1) // 2
    Ho, Wo = H, W
    # Pad W so the padded width is a multiple of 8 -> layout-trivial flatten/rolls.
    Wb = _round_up(W + 2 * pad, 8)
    xp = jnp.pad(x, ((0, 0), (pad, pad), (pad, Wb - W - pad), (0, 0)))
    Hp = H + 2 * pad

    TC = 256 if (_wide_mxu() and Coutp % 256 == 0) else 128
    if Coutp % TC != 0:                            # safety net
        TC = Coutp
    TH = _h_tiling(Ho, Wb, TC)
    bias2 = bias.reshape(1, Coutp).astype(jnp.float32)
    roll_mode = _roll_mode()

    # Grid order (Cout tile, batch, H tile): the weight block (depends only on j)
    # stays VMEM-resident across all inner batch/H steps.
    out = pl.pallas_call(
        _make_conv3x3_kernel(K, dilation, TH, Wb, Wo, relu, roll_mode),
        out_shape=jax.ShapeDtypeStruct((N, Ho, Wo, Coutp), x.dtype),
        grid=(Coutp // TC, N, Ho // TH),
        in_specs=[
            pl.BlockSpec((1, Hp, Wb, Cin), lambda j, n, h: (n, 0, 0, 0)),
            pl.BlockSpec((K, K, Cin, TC), lambda j, n, h: (0, 0, 0, j)),
            pl.BlockSpec((1, TC), lambda j, n, h: (0, j)),
        ],
        out_specs=pl.BlockSpec((1, TH, Wo, TC), lambda j, n, h: (n, h, 0, j)),
        scratch_shapes=[pltpu.VMEM((TH * Wb, TC), jnp.float32)],
        compiler_params=_cparams(("parallel", "parallel", "parallel")),
    )(xp, w, bias2)
    return out


# --------------------------- parameter construction ------------------------- #

def _conv_w(key, kh, kw, cin, cout):
    fan_in = kh * kw * cin
    return jax.random.normal(key, (kh, kw, cin, cout), jnp.float32) * (2.0 / fan_in) ** 0.5


def _bn_fold(key, c):
    k1, k2, k3, k4 = jax.random.split(key, 4)
    gamma = 1.0 + 0.1 * jax.random.normal(k1, (c,), jnp.float32)
    beta = 0.1 * jax.random.normal(k2, (c,), jnp.float32)
    mean = 0.1 * jax.random.normal(k3, (c,), jnp.float32)
    var = 1.0 + 0.1 * jax.random.uniform(k4, (c,), jnp.float32)
    scale = gamma / jnp.sqrt(var + _EPS)
    bias = beta - mean * scale
    return scale, bias


def init_bottleneck_params(key, in_channels, channels, stride=1, dilation=1):
    expansion = 4
    out_channels = expansion * channels
    c1p = _round_up(channels, 128)                 # lane-dense Cout for conv1/conv2
    c3p = _round_up(out_channels, 128)             # lane-dense Cout for conv3/downsample
    ks = jax.random.split(key, 8)

    def fold_1x1(w, scale, bias, cin_p, cout_p):
        wf = w[0, 0] * scale[None, :]
        wf = jnp.pad(wf, ((0, cin_p - wf.shape[0]), (0, cout_p - wf.shape[1])))
        bf = jnp.pad(bias, (0, cout_p - bias.shape[0]))
        return wf.astype(jnp.bfloat16), bf.astype(jnp.float32)

    def fold_3x3(w, scale, bias, cin_p, cout_p):
        wf = w * scale[None, None, None, :]
        wf = jnp.pad(wf, ((0, 0), (0, 0),
                          (0, cin_p - wf.shape[2]), (0, cout_p - wf.shape[3])))
        bf = jnp.pad(bias, (0, cout_p - bias.shape[0]))
        return wf.astype(jnp.bfloat16), bf.astype(jnp.float32)

    p = {"stride": stride, "dilation": dilation,
         "out_channels": out_channels, "out_channels_p": c3p}
    w1 = _conv_w(ks[0], 1, 1, in_channels, channels)
    s1, b1 = _bn_fold(ks[1], channels)
    w2 = _conv_w(ks[2], 3, 3, channels, channels)
    s2, b2 = _bn_fold(ks[3], channels)
    w3 = _conv_w(ks[4], 1, 1, channels, out_channels)
    s3, b3 = _bn_fold(ks[5], out_channels)
    p["w1"], p["b1"] = fold_1x1(w1, s1, b1, in_channels, c1p)
    p["w2"], p["b2"] = fold_3x3(w2, s2, b2, c1p, c1p)
    p["w3"], p["b3"] = fold_1x1(w3, s3, b3, c1p, c3p)
    if stride != 1 or in_channels != out_channels:
        wd = _conv_w(ks[6], 1, 1, in_channels, out_channels)
        sd, bd = _bn_fold(ks[7], out_channels)
        p["wd"], p["bd"] = fold_1x1(wd, sd, bd, in_channels, c3p)
    return p


# ---------------------------------- forward ---------------------------------- #

def bottleneck_forward(params, x_nchw):
    """Bottleneck.forward:
       relu(bn3(conv3(relu(bn2(conv2(relu(bn1(conv1(x)))))))) + downsample(x))."""
    s, d = params["stride"], params["dilation"]
    x = jnp.transpose(x_nchw, (0, 2, 3, 1)).astype(jnp.bfloat16)   # NCHW -> NHWC bf16

    out = conv1x1_bn(x, params["w1"], params["b1"], relu=True)                          # conv1+bn1+relu
    out = conv3x3_bn(out, params["w2"], params["b2"], stride=s, dilation=d, relu=True)  # conv2+bn2+relu
    if "wd" in params:
        res = conv1x1_bn(x, params["wd"], params["bd"], stride=s, relu=False)           # downsample
    else:
        res = x                                                                         # identity
        cp = params["out_channels_p"]
        if res.shape[-1] != cp:
            res = jnp.pad(res, ((0, 0), (0, 0), (0, 0), (0, cp - res.shape[-1])))
    # conv3 + bn3 + residual add + relu fused into one Pallas kernel call
    out = conv1x1_bn(out, params["w3"], params["b3"], relu=True, residual=res)

    out = out[..., :params["out_channels"]]        # drop lane-padding channels (no-op here)
    return jnp.transpose(out, (0, 3, 1, 2)).astype(jnp.float32)    # NHWC -> NCHW f32


# ------------------------------------ main ------------------------------------ #

if __name__ == "__main__":
    # Bottleneck(in_channels=64, channels=32, stride=1, dilation=1) -> out_channels=128
    x = jax.random.normal(jax.random.PRNGKey(0), (2, 64, 16, 16), jnp.float32)   # NCHW
    params = init_bottleneck_params(jax.random.PRNGKey(1),
                                    in_channels=64, channels=32, stride=1, dilation=1)

    _roll_mode()   # prime the pltpu.roll direction probe eagerly (outside jit)

    fwd = jax.jit(lambda inp: bottleneck_forward(params, inp))
    out = fwd(x)
    jax.block_until_ready(out)
    assert out.shape == (2, 128, 16, 16), out.shape
    print("KERNEL_OK")
</pallas_src>

<mosaic_0001>
module attributes {stable_mosaic.version = 11 : i64} {
  func.func @kernel(%arg0: i32, %arg1: i32, %arg2: memref<256x64xbf16, #tpu.memory_space<vmem>>, %arg3: memref<64x128xbf16, #tpu.memory_space<vmem>>, %arg4: memref<1x128xf32, #tpu.memory_space<vmem>>, %arg5: memref<256x128xbf16, #tpu.memory_space<vmem>>) attributes {dimension_semantics = [#tpu.dimension_semantics<parallel>, #tpu.dimension_semantics<parallel>], iteration_bounds = array<i64: 2, 1>, scalar_prefetch = 0 : i64, scratch_operands = 0 : i64, tpu.core_type = #tpu.core_type<tc>, window_params = [{transform_indices = @transform_0, window_bounds = array<i64: 256, 64>}, {transform_indices = @transform_1, window_bounds = array<i64: 64, 128>}, {transform_indices = @transform_2, window_bounds = array<i64: 1, 128>}, {transform_indices = @transform_3, window_bounds = array<i64: 256, 128>}]} {
    %c0 = arith.constant 0 : index
    %c0_0 = arith.constant 0 : index
    %0 = vector.load %arg2[%c0, %c0_0] : memref<256x64xbf16, #tpu.memory_space<vmem>>, vector<256x64xbf16>
    %c0_1 = arith.constant 0 : index
    %c0_2 = arith.constant 0 : index
    %1 = vector.load %arg3[%c0_1, %c0_2] : memref<64x128xbf16, #tpu.memory_space<vmem>>, vector<64x128xbf16>
    %cst = arith.constant dense<0.000000e+00> : vector<256x128xf32>
    %2 = tpu.matmul %0, %1, %cst {dimension_numbers = #tpu.dot_dimension_numbers<[1], [0], [0], [1], [0, 0, 1, 1], [], []>} : vector<256x64xbf16>, vector<64x128xbf16>, vector<256x128xf32> -> vector<256x128xf32>
    %c0_3 = arith.constant 0 : index
    %c0_4 = arith.constant 0 : index
    %3 = vector.load %arg4[%c0_3, %c0_4] : memref<1x128xf32, #tpu.memory_space<vmem>>, vector<1x128xf32>
    %4 = vector.broadcast %3 : vector<1x128xf32> to vector<256x128xf32>
    %5 = arith.addf %2, %4 : vector<256x128xf32>
    %cst_5 = arith.constant 0.000000e+00 : f32
    %6 = vector.broadcast %cst_5 : f32 to vector<256x128xf32>
    %7 = arith.maximumf %5, %6 : vector<256x128xf32>
    %8 = arith.truncf %7 : vector<256x128xf32> to vector<256x128xbf16>
    %c0_6 = arith.constant 0 : index
    %c0_7 = arith.constant 0 : index
    %9 = vector.load %arg5[%c0_6, %c0_7] : memref<256x128xbf16, #tpu.memory_space<vmem>>, vector<256x128xbf16>
    tpu.vector_store %arg5[%c0_6, %c0_7], %8 {strides = array<i32>} : memref<256x128xbf16, #tpu.memory_space<vmem>>, vector<256x128xbf16>,
    return
  }
  func.func @transform_0(%arg0: i32, %arg1: i32) -> (i32, i32) {
    %c0_i32 = arith.constant 0 : i32
    %c0_i32_0 = arith.constant 0 : i32
    return %arg0, %c0_i32 : i32, i32
  }
  func.func @transform_1(%arg0: i32, %arg1: i32) -> (i32, i32) {
    %c0_i32 = arith.constant 0 : i32
    %c0_i32_0 = arith.constant 0 : i32
    return %c0_i32, %arg1 : i32, i32
  }
  func.func @transform_2(%arg0: i32, %arg1: i32) -> (i32, i32) {
    %c0_i32 = arith.constant 0 : i32
    %c0_i32_0 = arith.constant 0 : i32
    return %c0_i32, %arg1 : i32, i32
  }
  func.func @transform_3(%arg0: i32, %arg1: i32) -> (i32, i32) {
    %c0_i32 = arith.constant 0 : i32
    return %arg0, %arg1 : i32, i32
  }
}

module attributes {stable_mosaic.version = 11 : i64} {
  func.func @kernel(%arg0: i32, %arg1: i32, %arg2: memref<256x64xbf16, #tpu.memory_space<vmem>>, %arg3: memref<64x128xbf16, #tpu.memory_space<vmem>>, %arg4: memref<1x128xf32, #tpu.memory_space<vmem>>, %arg5: memref<256x128xbf16, #tpu.memory_space<vmem>>) attributes {dimension_semantics = [#tpu.dimension_semantics<parallel>, #tpu.dimension_semantics<parallel>], iteration_bounds = array<i64: 2, 1>, scalar_prefetch = 0 : i64, scratch_operands = 0 : i64, tpu.core_type = #tpu.core_type<tc>, window_params = [{transform_indices = @transform_0, window_bounds = array<i64: 256, 64>}, {transform_indices = @transform_1, window_bounds = array<i64: 64, 128>}, {transform_indices = @transform_2, window_bounds = array<i64: 1, 128>}, {transform_indices = @transform_3, window_bounds = array<i64: 256, 128>}]} {
    %c0 = arith.constant 0 : index
    %c0_0 = arith.constant 0 : index
    %0 = vector.load %arg2[%c0, %c0_0] : memref<256x64xbf16, #tpu.memory_space<vmem>>, vector<256x64xbf16>
    %c0_1 = arith.constant 0 : index
    %c0_2 = arith.constant 0 : index
    %1 = vector.load %arg3[%c0_1, %c0_2] : memref<64x128xbf16, #tpu.memory_space<vmem>>, vector<64x128xbf16>
    %cst = arith.constant dense<0.000000e+00> : vector<256x128xf32>
    %2 = tpu.matmul %0, %1, %cst {dimension_numbers = #tpu.dot_dimension_numbers<[1], [0], [0], [1], [0, 0, 1, 1], [], []>} : vector<256x64xbf16>, vector<64x128xbf16>, vector<256x128xf32> -> vector<256x128xf32>
    %c0_3 = arith.constant 0 : index
    %c0_4 = arith.constant 0 : index
    %3 = vector.load %arg4[%c0_3, %c0_4] : memref<1x128xf32, #tpu.memory_space<vmem>>, vector<1x128xf32>
    %4 = vector.broadcast %3 : vector<1x128xf32> to vector<256x128xf32>
    %5 = arith.addf %2, %4 : vector<256x128xf32>
    %6 = arith.truncf %5 : vector<256x128xf32> to vector<256x128xbf16>
    %c0_5 = arith.constant 0 : index
    %c0_6 = arith.constant 0 : index
    %7 = vector.load %arg5[%c0_5, %c0_6] : memref<256x128xbf16, #tpu.memory_space<vmem>>, vector<256x128xbf16>
    tpu.vector_store %arg5[%c0_5, %c0_6], %6 {strides = array<i32>} : memref<256x128xbf16, #tpu.memory_space<vmem>>, vector<256x128xbf16>,
    return
  }
  func.func @transform_0(%arg0: i32, %arg1: i32) -> (i32, i32) {
    %c0_i32 = arith.constant 0 : i32
    %c0_i32_0 = arith.constant 0 : i32
    return %arg0, %c0_i32 : i32, i32
  }
  func.func @transform_1(%arg0: i32, %arg1: i32) -> (i32, i32) {
    %c0_i32 = arith.constant 0 : i32
    %c0_i32_0 = arith.constant 0 : i32
    return %c0_i32, %arg1 : i32, i32
  }
  func.func @transform_2(%arg0: i32, %arg1: i32) -> (i32, i32) {
    %c0_i32 = arith.constant 0 : i32
    %c0_i32_0 = arith.constant 0 : i32
    return %c0_i32, %arg1 : i32, i32
  }
  func.func @transform_3(%arg0: i32, %arg1: i32) -> (i32, i32) {
    %c0_i32 = arith.constant 0 : i32
    return %arg0, %arg1 : i32, i32
  }
}

module attributes {stable_mosaic.version = 11 : i64} {
  func.func @kernel(%arg0: i32, %arg1: i32, %arg2: i32, %arg3: memref<1x18x24x128xbf16, #tpu.memory_space<vmem>>, %arg4: memref<3x3x128x128xbf16, #tpu.memory_space<vmem>>, %arg5: memref<1x128xf32, #tpu.memory_space<vmem>>, %arg6: memref<1x8x16x128xbf16, #tpu.memory_space<vmem>>, %arg7: memref<192x128xf32, #tpu.memory_space<vmem>>) attributes {dimension_semantics = [#tpu.dimension_semantics<parallel>, #tpu.dimension_semantics<parallel>, #tpu.dimension_semantics<parallel>], iteration_bounds = array<i64: 1, 2, 2>, scalar_prefetch = 0 : i64, scratch_operands = 1 : i64, tpu.core_type = #tpu.core_type<tc>, window_params = [{transform_indices = @transform_0, window_bounds = array<i64: 1, 18, 24, 128>}, {transform_indices = @transform_1, window_bounds = array<i64: 3, 3, 128, 128>}, {transform_indices = @transform_2, window_bounds = array<i64: 1, 128>}, {transform_indices = @transform_3, window_bounds = array<i64: 1, 8, 16, 128>}]} {
    %cst = arith.constant 0.000000e+00 : f32
    %0 = vector.broadcast %cst : f32 to vector<192x128xf32>
    %c0 = arith.constant 0 : index
    %c0_0 = arith.constant 0 : index
    %1 = vector.load %arg7[%c0, %c0_0] : memref<192x128xf32, #tpu.memory_space<vmem>>, vector<192x128xf32>
    tpu.vector_store %arg7[%c0, %c0_0], %0 {strides = array<i32>} : memref<192x128xf32, #tpu.memory_space<vmem>>, vector<192x128xf32>,
    %c8_i32 = arith.constant 8 : i32
    %2 = arith.muli %arg2, %c8_i32 : i32
    %c0_i32 = arith.constant 0 : i32
    %3 = arith.addi %2, %c0_i32 : i32
    %c0_1 = arith.constant 0 : index
    %4 = arith.index_cast %3 : i32 to index
    %c0_2 = arith.constant 0 : index
    %c0_3 = arith.constant 0 : index
    %5 = vector.load %arg3[%c0_1, %4, %c0_2, %c0_3] : memref<1x18x24x128xbf16, #tpu.memory_space<vmem>>, vector<1x8x24x128xbf16>
    %6 = vector.shape_cast %5 : vector<1x8x24x128xbf16> to vector<8x24x128xbf16>
    %7 = vector.shape_cast %6 : vector<8x24x128xbf16> to vector<192x128xbf16>
    %c0_4 = arith.constant 0 : index
    %c0_5 = arith.constant 0 : index
    %8 = vector.load %arg7[%c0_4, %c0_5] : memref<192x128xf32, #tpu.memory_space<vmem>>, vector<192x128xf32>
    %c0_6 = arith.constant 0 : index
    %c0_7 = arith.constant 0 : index
    %c0_8 = arith.constant 0 : index
    %c0_9 = arith.constant 0 : index
    %9 = vector.load %arg4[%c0_6, %c0_7, %c0_8, %c0_9] : memref<3x3x128x128xbf16, #tpu.memory_space<vmem>>, vector<1x1x128x128xbf16>
    %10 = vector.shape_cast %9 : vector<1x1x128x128xbf16> to vector<128x128xbf16>
    %cst_10 = arith.constant dense<0.000000e+00> : vector<192x128xf32>
    %11 = tpu.matmul %7, %10, %cst_10 {dimension_numbers = #tpu.dot_dimension_numbers<[1], [0], [0], [1], [0, 0, 1, 1], [], []>} : vector<192x128xbf16>, vector<128x128xbf16>, vector<192x128xf32> -> vector<192x128xf32>
    %12 = arith.addf %8, %11 : vector<192x128xf32>
    %c0_11 = arith.constant 0 : index
    %c0_12 = arith.constant 0 : index
    %13 = vector.load %arg7[%c0_11, %c0_12] : memref<192x128xf32, #tpu.memory_space<vmem>>, vector<192x128xf32>
    tpu.vector_store %arg7[%c0_11, %c0_12], %12 {strides = array<i32>} : memref<192x128xf32, #tpu.memory_space<vmem>>, vector<192x128xf32>,
    %c0_13 = arith.constant 0 : index
    %c0_14 = arith.constant 0 : index
    %14 = vector.load %arg7[%c0_13, %c0_14] : memref<192x128xf32, #tpu.memory_space<vmem>>, vector<192x128xf32>
    %15 = vector.extract_strided_slice %7 {offsets = [1, 0], sizes = [191, 128], strides = [1, 1]} : vector<192x128xbf16> to vector<191x128xbf16>
    %16 = vector.extract_strided_slice %7 {offsets = [0, 0], sizes = [1, 128], strides = [1, 1]} : vector<192x128xbf16> to vector<1x128xbf16>
    %17 = tpu.concatenate %15, %16 in 0 : vector<191x128xbf16>, vector<1x128xbf16> -> vector<192x128xbf16>
    %c0_15 = arith.constant 0 : index
    %c1 = arith.constant 1 : index
    %c0_16 = arith.constant 0 : index
    %c0_17 = arith.constant 0 : index
    %18 = vector.load %arg4[%c0_15, %c1, %c0_16, %c0_17] : memref<3x3x128x128xbf16, #tpu.memory_space<vmem>>, vector<1x1x128x128xbf16>
    %19 = vector.shape_cast %18 : vector<1x1x128x128xbf16> to vector<128x128xbf16>
    %cst_18 = arith.constant dense<0.000000e+00> : vector<192x128xf32>
    %20 = tpu.matmul %17, %19, %cst_18 {dimension_numbers = #tpu.dot_dimension_numbers<[1], [0], [0], [1], [0, 0, 1, 1], [], []>} : vector<192x128xbf16>, vector<128x128xbf16>, vector<192x128xf32> -> vector<192x128xf32>
    %21 = arith.addf %14, %20 : vector<192x128xf32>
    %c0_19 = arith.constant 0 : index
    %c0_20 = arith.constant 0 : index
    %22 = vector.load %arg7[%c0_19, %c0_20] : memref<192x128xf32, #tpu.memory_space<vmem>>, vector<192x128xf32>
    tpu.vector_store %arg7[%c0_19, %c0_20], %21 {strides = array<i32>} : memref<192x128xf32, #tpu.memory_space<vmem>>, vector<192x128xf32>,
    %c0_21 = arith.constant 0 : index
    %c0_22 = arith.constant 0 : index
    %23 = vector.load %arg7[%c0_21, %c0_22] : memref<192x128xf32, #tpu.memory_space<vmem>>, vector<192x128xf32>
    %24 = vector.extract_strided_slice %7 {offsets = [2, 0], sizes = [190, 128], strides = [1, 1]} : vector<192x128xbf16> to vector<190x128xbf16>
    %25 = vector.extract_strided_slice %7 {offsets = [0, 0], sizes = [2, 128], strides = [1, 1]} : vector<192x128xbf16> to vector<2x128xbf16>
    %26 = tpu.concatenate %24, %25 in 0 : vector<190x128xbf16>, vector<2x128xbf16> -> vector<192x128xbf16>
    %c0_23 = arith.constant 0 : index
    %c2 = arith.constant 2 : index
    %c0_24 = arith.constant 0 : index
    %c0_25 = arith.constant 0 : index
    %27 = vector.load %arg4[%c0_23, %c2, %c0_24, %c0_25] : memref<3x3x128x128xbf16, #tpu.memory_space<vmem>>, vector<1x1x128x128xbf16>
    %28 = vector.shape_cast %27 : vector<1x1x128x128xbf16> to vector<128x128xbf16>
    %cst_26 = arith.constant dense<0.000000e+00> : vector<192x128xf32>
    %29 = tpu.matmul %26, %28, %cst_26 {dimension_numbers = #tpu.dot_dimension_numbers<[1], [0], [0], [1], [0, 0, 1, 1], [], []>} : vector<192x128xbf16>, vector<128x128xbf16>, vector<192x128xf32> -> vector<192x128xf32>
    %30 = arith.addf %23, %29 : vector<192x128xf32>
    %c0_27 = arith.constant 0 : index
    %c0_28 = arith.constant 0 : index
    %31 = vector.load %arg7[%c0_27, %c0_28] : memref<192x128xf32, #tpu.memory_space<vmem>>, vector<192x128xf32>
    tpu.vector_store %arg7[%c0_27, %c0_28], %30 {strides = array<i32>} : memref<192x128xf32, #tpu.memory_space<vmem>>, vector<192x128xf32>,
    %c8_i32_29 = arith.constant 8 : i32
    %32 = arith.muli %arg2, %c8_i32_29 : i32
    %c1_i32 = arith.constant 1 : i32
    %33 = arith.addi %32, %c1_i32 : i32
    %c0_30 = arith.constant 0 : index
    %34 = arith.index_cast %33 : i32 to index
    %c0_31 = arith.constant 0 : index
    %c0_32 = arith.constant 0 : index
    %35 = vector.load %arg3[%c0_30, %34, %c0_31, %c0_32] : memref<1x18x24x128xbf16, #tpu.memory_space<vmem>>, vector<1x8x24x128xbf16>
    %36 = vector.shape_cast %35 : vector<1x8x24x128xbf16> to vector<8x24x128xbf16>
    %37 = vector.shape_cast %36 : vector<8x24x128xbf16> to vector<192x128xbf16>
    %c0_33 = arith.constant 0 : index
    %c0_34 = arith.constant 0 : index
    %38 = vector.load %arg7[%c0_33, %c0_34] : memref<192x128xf32, #tpu.memory_space<vmem>>, vector<192x128xf32>
    %c1_35 = arith.constant 1 : index
    %c0_36 = arith.constant 0 : index
    %c0_37 = arith.constant 0 : index
    %c0_38 = arith.constant 0 : index
    %39 = vector.load %arg4[%c1_35, %c0_36, %c0_37, %c0_38] : memref<3x3x128x128xbf16, #tpu.memory_space<vmem>>, vector<1x1x128x128xbf16>
    %40 = vector.shape_cast %39 : vector<1x1x128x128xbf16> to vector<128x128xbf16>
    %cst_39 = arith.constant dense<0.000000e+00> : vector<192x128xf32>
    %41 = tpu.matmul %37, %40, %cst_39 {dimension_numbers = #tpu.dot_dimension_numbers<[1], [0], [0], [1], [0, 0, 1, 1], [], []>} : vector<192x128xbf16>, vector<128x128xbf16>, vector<192x128xf32> -> vector<192x128xf32>
    %42 = arith.addf %38, %41 : vector<192x128xf32>
    %c0_40 = arith.constant 0 : index
    %c0_41 = arith.constant 0 : index
    %43 = vector.load %arg7[%c0_40, %c0_41] : memref<192x128xf32, #tpu.memory_space<vmem>>, vector<192x128xf32>
    tpu.vector_store %arg7[%c0_40, %c0_41], %42 {strides = array<i32>} : memref<192x128xf32, #tpu.memory_space<vmem>>, vector<192x128xf32>,
    %c0_42 = arith.constant 0 : index
    %c0_43 = arith.constant 0 : index
    %44 = vector.load %arg7[%c0_42, %c0_43] : memref<192x128xf32, #tpu.memory_space<vmem>>, vector<192x128xf32>
    %45 = vector.extract_strided_slice %37 {offsets = [1, 0], sizes = [191, 128], strides = [1, 1]} : vector<192x128xbf16> to vector<191x128xbf16>
    %46 = vector.extract_strided_slice %37 {offsets = [0, 0], sizes = [1, 128], strides = [1, 1]} : vector<192x128xbf16> to vector<1x128xbf16>
    %47 = tpu.concatenate %45, %46 in 0 : vector<191x128xbf16>, vector<1x128xbf16> -> vector<192x128xbf16>
    %c1_44 = arith.constant 1 : index
    %c1_45 = arith.constant 1 : index
    %c0_46 = arith.constant 0 : index
    %c0_47 = arith.constant 0 : index
    %48 = vector.load %arg4[%c1_44, %c1_45, %c0_46, %c0_47] : memref<3x3x128x128xbf16, #tpu.memory_space<vmem>>, vector<1x1x128x128xbf16>
    %49 = vector.shape_cast %48 : vector<1x1x128x128xbf16> to vector<128x128xbf16>
    %cst_48 = arith.constant dense<0.000000e+00> : vector<192x128xf32>
    %50 = tpu.matmul %47, %49, %cst_48 {dimension_numbers = #tpu.dot_dimension_numbers<[1], [0], [0], [1], [0, 0, 1, 1], [], []>} : vector<192x128xbf16>, vector<128x128xbf16>, vector<192x128xf32> -> vector<192x128xf32>
    %51 = arith.addf %44, %50 : vector<192x128xf32>
    %c0_49 = arith.constant 0 : index
    %c0_50 = arith.constant 0 : index
    %52 = vector.load %arg7[%c0_49, %c0_50] : memref<192x128xf32, #tpu.memory_space<vmem>>, vector<192x128xf32>
    tpu.vector_store %arg7[%c0_49, %c0_50], %51 {strides = array<i32>} : memref<192x128xf32, #tpu.memory_space<vmem>>, vector<192x128xf32>,
    %c0_51 = arith.constant 0 : index
    %c0_52 = arith.constant 0 : index
    %53 = vector.load %arg7[%c0_51, %c0_52] : memref<192x128xf32, #tpu.memory_space<vmem>>, vector<192x128xf32>
    %54 = vector.extract_strided_slice %37 {offsets = [2, 0], sizes = [190, 128], strides = [1, 1]} : vector<192x128xbf16> to vector<190x128xbf16>
    %55 = vector.extract_strided_slice %37 {offsets = [0, 0], sizes = [2, 128], strides = [1, 1]} : vector<192x128xbf16> to vector<2x128xbf16>
    %56 = tpu.concatenate %54, %55 in 0 : vector<190x128xbf16>, vector<2x128xbf16> -> vector<192x128xbf16>
    %c1_53 = arith.constant 1 : index
    %c2_54 = arith.constant 2 : index
    %c0_55 = arith.constant 0 : index
    %c0_56 = arith.constant 0 : index
    %57 = vector.load %arg4[%c1_53, %c2_54, %c0_55, %c0_56] : memref<3x3x128x128xbf16, #tpu.memory_space<vmem>>, vector<1x1x128x128xbf16>
    %58 = vector.shape_cast %57 : vector<1x1x128x128xbf16> to vector<128x128xbf16>
    %cst_57 = arith.constant dense<0.000000e+00> : vector<192x128xf32>
    %59 = tpu.matmul %56, %58, %cst_57 {dimension_numbers = #tpu.dot_dimension_numbers<[1], [0], [0], [1], [0, 0, 1, 1], [], []>} : vector<192x128xbf16>, vector<128x128xbf16>, vector<192x128xf32> -> vector<192x128xf32>
    %60 = arith.addf %53, %59 : vector<192x128xf32>
    %c0_58 = arith.constant 0 : index
    %c0_59 = arith.constant 0 : index
    %61 = vector.load %arg7[%c0_58, %c0_59] : memref<192x128xf32, #tpu.memory_space<vmem>>, vector<192x128xf32>
    tpu.vector_store %arg7[%c0_58, %c0_59], %60 {strides = array<i32>} : memref<192x128xf32, #tpu.memory_space<vmem>>, vector<192x128xf32>,
    %c8_i32_60 = arith.constant 8 : i32
    %62 = arith.muli %arg2, %c8_i32_60 : i32
    %c2_i32 = arith.constant 2 : i32
    %63 = arith.addi %62, %c2_i32 : i32
    %c0_61 = arith.constant 0 : index
    %64 = arith.index_cast %63 : i32 to index
    %c0_62 = arith.constant 0 : index
    %c0_63 = arith.constant 0 : index
    %65 = vector.load %arg3[%c0_61, %64, %c0_62, %c0_63] : memref<1x18x24x128xbf16, #tpu.memory_space<vmem>>, vector<1x8x24x128xbf16>
    %66 = vector.shape_cast %65 : vector<1x8x24x128xbf16> to vector<8x24x128xbf16>
    %67 = vector.shape_cast %66 : vector<8x24x128xbf16> to vector<192x128xbf16>
    %c0_64 = arith.constant 0 : index
    %c0_65 = arith.constant 0 : index
    %68 = vector.load %arg7[%c0_64, %c0_65] : memref<192x128xf32, #tpu.memory_space<vmem>>, vector<192x128xf32>
    %c2_66 = arith.constant 2 : index
    %c0_67 = arith.constant 0 : index
    %c0_68 = arith.constant 0 : index
    %c0_69 = arith.constant 0 : index
    %69 = vector.load %arg4[%c2_66, %c0_67, %c0_68, %c0_69] : memref<3x3x128x128xbf16, #tpu.memory_space<vmem>>, vector<1x1x128x128xbf16>
    %70 = vector.shape_cast %69 : vector<1x1x128x128xbf16> to vector<128x128xbf16>
    %cst_70 = arith.constant dense<0.000000e+00> : vector<192x128xf32>
    %71 = tpu.matmul %67, %70, %cst_70 {dimension_numbers = #tpu.dot_dimension_numbers<[1], [0], [0], [1], [0, 0, 1, 1], [], []>} : vector<192x128xbf16>, vector<128x128xbf16>, vector<192x128xf32> -> vector<192x128xf32>
    %72 = arith.addf %68, %71 : vector<192x128xf32>
    %c0_71 = arith.constant 0 : index
    %c0_72 = arith.constant 0 : index
    %73 = vector.load %arg7[%c0_71, %c0_72] : memref<192x128xf32, #tpu.memory_space<vmem>>, vector<192x128xf32>
    tpu.vector_store %arg7[%c0_71, %c0_72], %72 {strides = array<i32>} : memref<192x128xf32, #tpu.memory_space<vmem>>, vector<192x128xf32>,
    %c0_73 = arith.constant 0 : index
    %c0_74 = arith.constant 0 : index
    %74 = vector.load %arg7[%c0_73, %c0_74] : memref<192x128xf32, #tpu.memory_space<vmem>>, vector<192x128xf32>
    %75 = vector.extract_strided_slice %67 {offsets = [1, 0], sizes = [191, 128], strides = [1, 1]} : vector<192x128xbf16> to vector<191x128xbf16>
    %76 = vector.extract_strided_slice %67 {offsets = [0, 0], sizes = [1, 128], strides = [1, 1]} : vector<192x128xbf16> to vector<1x128xbf16>
    %77 = tpu.concatenate %75, %76 in 0 : vector<191x128xbf16>, vector<1x128xbf16> -> vector<192x128xbf16>
    %c2_75 = arith.constant 2 : index
    %c1_76 = arith.constant 1 : index
    %c0_77 = arith.constant 0 : index
    %c0_78 = arith.constant 0 : index
    %78 = vector.load %arg4[%c2_75, %c1_76, %c0_77, %c0_78] : memref<3x3x128x128xbf16, #tpu.memory_space<vmem>>, vector<1x1x128x128xbf16>
    %79 = vector.shape_cast %78 : vector<1x1x128x128xbf16> to vector<128x128xbf16>
    %cst_79 = arith.constant dense<0.000000e+00> : vector<192x128xf32>
    %80 = tpu.matmul %77, %79, %cst_79 {dimension_numbers = #tpu.dot_dimension_numbers<[1], [0], [0], [1], [0, 0, 1, 1], [], []>} : vector<192x128xbf16>, vector<128x128xbf16>, vector<192x128xf32> -> vector<192x128xf32>
    %81 = arith.addf %74, %80 : vector<192x128xf32>
    %c0_80 = arith.constant 0 : index
    %c0_81 = arith.constant 0 : index
    %82 = vector.load %arg7[%c0_80, %c0_81] : memref<192x128xf32, #tpu.memory_space<vmem>>, vector<192x128xf32>
    tpu.vector_store %arg7[%c0_80, %c0_81], %81 {strides = array<i32>} : memref<192x128xf32, #tpu.memory_space<vmem>>, vector<192x128xf32>,
    %c0_82 = arith.constant 0 : index
    %c0_83 = arith.constant 0 : index
    %83 = vector.load %arg7[%c0_82, %c0_83] : memref<192x128xf32, #tpu.memory_space<vmem>>, vector<192x128xf32>
    %84 = vector.extract_strided_slice %67 {offsets = [2, 0], sizes = [190, 128], strides = [1, 1]} : vector<192x128xbf16> to vector<190x128xbf16>
    %85 = vector.extract_strided_slice %67 {offsets = [0, 0], sizes = [2, 128], strides = [1, 1]} : vector<192x128xbf16> to vector<2x128xbf16>
    %86 = tpu.concatenate %84, %85 in 0 : vector<190x128xbf16>, vector<2x128xbf16> -> vector<192x128xbf16>
    %c2_84 = arith.constant 2 : index
    %c2_85 = arith.constant 2 : index
    %c0_86 = arith.constant 0 : index
    %c0_87 = arith.constant 0 : index
    %87 = vector.load %arg4[%c2_84, %c2_85, %c0_86, %c0_87] : memref<3x3x128x128xbf16, #tpu.memory_space<vmem>>, vector<1x1x128x128xbf16>
    %88 = vector.shape_cast %87 : vector<1x1x128x128xbf16> to vector<128x128xbf16>
    %cst_88 = arith.constant dense<0.000000e+00> : vector<192x128xf32>
    %89 = tpu.matmul %86, %88, %cst_88 {dimension_numbers = #tpu.dot_dimension_numbers<[1], [0], [0], [1], [0, 0, 1, 1], [], []>} : vector<192x128xbf16>, vector<128x128xbf16>, vector<192x128xf32> -> vector<192x128xf32>
    %90 = arith.addf %83, %89 : vector<192x128xf32>
    %c0_89 = arith.constant 0 : index
    %c0_90 = arith.constant 0 : index
    %91 = vector.load %arg7[%c0_89, %c0_90] : memref<192x128xf32, #tpu.memory_space<vmem>>, vector<192x128xf32>
    tpu.vector_store %arg7[%c0_89, %c0_90], %90 {strides = array<i32>} : memref<192x128xf32, #tpu.memory_space<vmem>>, vector<192x128xf32>,
    %c0_91 = arith.constant 0 : index
    %c0_92 = arith.constant 0 : index
    %92 = vector.load %arg7[%c0_91, %c0_92] : memref<192x128xf32, #tpu.memory_space<vmem>>, vector<192x128xf32>
    %c0_93 = arith.constant 0 : index
    %c0_94 = arith.constant 0 : index
    %93 = vector.load %arg5[%c0_93, %c0_94] : memref<1x128xf32, #tpu.memory_space<vmem>>, vector<1x128xf32>
    %94 = vector.broadcast %93 : vector<1x128xf32> to vector<192x128xf32>
    %95 = arith.addf %92, %94 : vector<192x128xf32>
    %cst_95 = arith.constant 0.000000e+00 : f32
    %96 = vector.broadcast %cst_95 : f32 to vector<192x128xf32>
    %97 = arith.maximumf %95, %96 : vector<192x128xf32>
    %98 = vector.shape_cast %97 : vector<192x128xf32> to vector<8x24x128xf32>
    %99 = vector.extract_strided_slice %98 {offsets = [0, 0, 0], sizes = [8, 16, 128], strides = [1, 1, 1]} : vector<8x24x128xf32> to vector<8x16x128xf32>
    %100 = arith.truncf %99 : vector<8x16x128xf32> to vector<8x16x128xbf16>
    %c0_96 = arith.constant 0 : index
    %c0_97 = arith.constant 0 : index
    %c0_98 = arith.constant 0 : index
    %c0_99 = arith.constant 0 : index
    %101 = vector.load %arg6[%c0_96, %c0_97, %c0_98, %c0_99] : memref<1x8x16x128xbf16, #tpu.memory_space<vmem>>, vector<1x8x16x128xbf16>
    %102 = vector.shape_cast %101 : vector<1x8x16x128xbf16> to vector<8x16x128xbf16>
    %103 = vector.shape_cast %100 : vector<8x16x128xbf16> to vector<1x8x16x128xbf16>
    tpu.vector_store %arg6[%c0_96, %c0_97, %c0_98, %c0_99], %103 {strides = array<i32>} : memref<1x8x16x128xbf16, #tpu.memory_space<vmem>>, vector<1x8x16x128xbf16>,
    return
  }
  func.func @transform_0(%arg0: i32, %arg1: i32, %arg2: i32) -> (i32, i32, i32, i32) {
    %c0_i32 = arith.constant 0 : i32
    %c0_i32_0 = arith.constant 0 : i32
    %c0_i32_1 = arith.constant 0 : i32
    %c0_i32_2 = arith.constant 0 : i32
    return %arg1, %c0_i32, %c0_i32_0, %c0_i32_1 : i32, i32, i32, i32
  }
  func.func @transform_1(%arg0: i32, %arg1: i32, %arg2: i32) -> (i32, i32, i32, i32) {
    %c0_i32 = arith.constant 0 : i32
    %c0_i32_0 = arith.constant 0 : i32
    %c0_i32_1 = arith.constant 0 : i32
    %c0_i32_2 = arith.constant 0 : i32
    return %c0_i32, %c0_i32_0, %c0_i32_1, %arg0 : i32, i32, i32, i32
  }
  func.func @transform_2(%arg0: i32, %arg1: i32, %arg2: i32) -> (i32, i32) {
    %c0_i32 = arith.constant 0 : i32
    %c0_i32_0 = arith.constant 0 : i32
    return %c0_i32, %arg0 : i32, i32
  }
  func.func @transform_3(%arg0: i32, %arg1: i32, %arg2: i32) -> (i32, i32, i32, i32) {
    %c0_i32 = arith.constant 0 : i32
    %c0_i32_0 = arith.constant 0 : i32
    return %arg1, %arg2, %c0_i32, %arg0 : i32, i32, i32, i32
  }
}

module attributes {stable_mosaic.version = 11 : i64} {
  func.func @kernel(%arg0: i32, %arg1: i32, %arg2: memref<256x128xbf16, #tpu.memory_space<vmem>>, %arg3: memref<128x128xbf16, #tpu.memory_space<vmem>>, %arg4: memref<1x128xf32, #tpu.memory_space<vmem>>, %arg5: memref<256x128xbf16, #tpu.memory_space<vmem>>, %arg6: memref<256x128xbf16, #tpu.memory_space<vmem>>) attributes {dimension_semantics = [#tpu.dimension_semantics<parallel>, #tpu.dimension_semantics<parallel>], iteration_bounds = array<i64: 2, 1>, scalar_prefetch = 0 : i64, scratch_operands = 0 : i64, tpu.core_type = #tpu.core_type<tc>, window_params = [{transform_indices = @transform_0, window_bounds = array<i64: 256, 128>}, {transform_indices = @transform_1, window_bounds = array<i64: 128, 128>}, {transform_indices = @transform_2, window_bounds = array<i64: 1, 128>}, {transform_indices = @transform_3, window_bounds = array<i64: 256, 128>}, {transform_indices = @transform_4, window_bounds = array<i64: 256, 128>}]} {
    %c0 = arith.constant 0 : index
    %c0_0 = arith.constant 0 : index
    %0 = vector.load %arg2[%c0, %c0_0] : memref<256x128xbf16, #tpu.memory_space<vmem>>, vector<256x128xbf16>
    %c0_1 = arith.constant 0 : index
    %c0_2 = arith.constant 0 : index
    %1 = vector.load %arg3[%c0_1, %c0_2] : memref<128x128xbf16, #tpu.memory_space<vmem>>, vector<128x128xbf16>
    %cst = arith.constant dense<0.000000e+00> : vector<256x128xf32>
    %2 = tpu.matmul %0, %1, %cst {dimension_numbers = #tpu.dot_dimension_numbers<[1], [0], [0], [1], [0, 0, 1, 1], [], []>} : vector<256x128xbf16>, vector<128x128xbf16>, vector<256x128xf32> -> vector<256x128xf32>
    %c0_3 = arith.constant 0 : index
    %c0_4 = arith.constant 0 : index
    %3 = vector.load %arg4[%c0_3, %c0_4] : memref<1x128xf32, #tpu.memory_space<vmem>>, vector<1x128xf32>
    %4 = vector.broadcast %3 : vector<1x128xf32> to vector<256x128xf32>
    %5 = arith.addf %2, %4 : vector<256x128xf32>
    %c0_5 = arith.constant 0 : index
    %c0_6 = arith.constant 0 : index
    %6 = vector.load %arg5[%c0_5, %c0_6] : memref<256x128xbf16, #tpu.memory_space<vmem>>, vector<256x128xbf16>
    %7 = arith.extf %6 : vector<256x128xbf16> to vector<256x128xf32>
    %8 = arith.addf %5, %7 : vector<256x128xf32>
    %cst_7 = arith.constant 0.000000e+00 : f32
    %9 = vector.broadcast %cst_7 : f32 to vector<256x128xf32>
    %10 = arith.maximumf %8, %9 : vector<256x128xf32>
    %11 = arith.truncf %10 : vector<256x128xf32> to vector<256x128xbf16>
    %c0_8 = arith.constant 0 : index
    %c0_9 = arith.constant 0 : index
    %12 = vector.load %arg6[%c0_8, %c0_9] : memref<256x128xbf16, #tpu.memory_space<vmem>>, vector<256x128xbf16>
    tpu.vector_store %arg6[%c0_8, %c0_9], %11 {strides = array<i32>} : memref<256x128xbf16, #tpu.memory_space<vmem>>, vector<256x128xbf16>,
    return
  }
  func.func @transform_0(%arg0: i32, %arg1: i32) -> (i32, i32) {
    %c0_i32 = arith.constant 0 : i32
    %c0_i32_0 = arith.constant 0 : i32
    return %arg0, %c0_i32 : i32, i32
  }
  func.func @transform_1(%arg0: i32, %arg1: i32) -> (i32, i32) {
    %c0_i32 = arith.constant 0 : i32
    %c0_i32_0 = arith.constant 0 : i32
    return %c0_i32, %arg1 : i32, i32
  }
  func.func @transform_2(%arg0: i32, %arg1: i32) -> (i32, i32) {
    %c0_i32 = arith.constant 0 : i32
    %c0_i32_0 = arith.constant 0 : i32
    return %c0_i32, %arg1 : i32, i32
  }
  func.func @transform_3(%arg0: i32, %arg1: i32) -> (i32, i32) {
    %c0_i32 = arith.constant 0 : i32
    return %arg0, %arg1 : i32, i32
  }
  func.func @transform_4(%arg0: i32, %arg1: i32) -> (i32, i32) {
    %c0_i32 = arith.constant 0 : i32
    return %arg0, %arg1 : i32, i32
  }
}

</mosaic_0001>

<llo_original>
// kernel: _lambda_.6
$region0: #{_lambda_.6}
  #allocation0 [shape = 'u32[]', space=smem, size = 0x4, offset = 0x4, fixed_abs, tag = 'smem constant byte address 0x4 - core index']
  #allocation1 [shape = 'u32[72,128]{1,0:T(1,128)}', space=vmem, size = 0x9000, scoped, tag = 'internal scratch']
  %s0 = inlined_call_operand.vmem [shape: bf16[512,64], index: 0, kind: input, shape index: {}]
  %s1 = inlined_call_operand.vmem [shape: bf16[64,128], index: 1, kind: input, shape index: {}]
  %s2 = inlined_call_operand.vmem [shape: f32[1,128], index: 2, kind: input, shape index: {}]
  %s3 = inlined_call_operand.vmem [shape: bf16[512,128], index: 3, kind: output, shape index: {}]
  %s4 = sld [smem:[#allocation0]]
  $region45: #{_lambda_.6} parent=0
    _
  %s6 = ssub.s32 1, %s4
  %s7 = scalar_select 0, %s6, %s4
  loop: start=0, step=1, limit=4
  $region2: #{_lambda_.6} parent=0 // loop_pre_header
    _
  $region3: #{_lambda_.6} parent=0 // loop_header
    %s9 = sphi 0, %s13
    %p10 = scmp.ge.s32.totalorder %s9, 4
    %s16 = sphi 0, %s28
    %s17 = sphi 0, %s24
    %s18 = sphi 0, %s16
    %s19 = sphi 0, %s17
    %s20 = sphi 0, %s18
    %s21 = sphi 0, %s19
    %s31 = sphi 0, %s33
    %s34 = sphi 0, %s31
    %s35 = sphi 0, %s34
    %s51 = sphi 0, %s35
    %s57 = sphi 0, %s59
    %s60 = sphi 0, %s57
    %s61 = sphi 0, %s60
    %s77 = sphi 0, %s61
    %s83 = sphi 0, %s85
    %s86 = sphi 0, %s83
    %s87 = sphi 0, %s86
    %s103 = sphi 0, %s87
    %s111 = sphi 0, %s113
    %s114 = sphi 0, %s111
    %s115 = sphi 0, %s114
    %s131 = sphi 0, %s115
  $region4: #{_lambda_.6} parent=0 // loop_header_branch
    %12 = sbr.rel (%p10) target = $region8
  $region5: #{_lambda_.6} parent=0 // loop_body
    %s14 = ssub.s32 %s9, 1
    %s15 = ssub.s32 %s9, 2
    %s22 = sadd.s32 1, %s17
    %p23 = scmp.ge.s32.totalorder %s22, 1
    %s24 = scalar_select %p23, 0, %s22
    %s25 = sadd.s32 1, %s16
    %s26 = scalar_select %p23, %s25, %s16
    %p27 = scmp.ge.s32.totalorder %s26, 2
    %s28 = scalar_select %p27, 0, %s26
    %s29 = ssub.s32 %s16, %s28
    %p30 = scmp.eq.s32.totalorder %s29, 0
    %s32 = sadd.s32 %s31, 1
    %s33 = scalar_select %p30, %s31, %s32
    %p36 = pneg %p30
    %p37 = scmp.eq.s32.totalorder %s9, 1
    %p38 = por %p36, %p37
    %p39 = scmp.ne.s32.totalorder %s31, %s34
    %p40 = scmp.eq.s32.totalorder %s9, 0
    %p41 = por %p39, %p40
    %p42 = scmp.ne.s32.totalorder %s31, %s34
    %p43 = scmp.eq.s32.totalorder %s14, 1
    %p44 = por %p42, %p43
    %p45 = scmp.ne.s32.totalorder %s34, %s35
    %p46 = scmp.eq.s32.totalorder %s14, 0
    %p47 = por %p45, %p46
    %p48 = scmp.ne.s32.totalorder %s34, %s35
    %p49 = scmp.eq.s32.totalorder %s15, 1
    %p50 = por %p48, %p49
    %p52 = scmp.ne.s32.totalorder %s35, %s51
    %p53 = scmp.eq.s32.totalorder %s15, 0
    %p54 = por %p52, %p53
    %s55 = ssub.s32 %s17, %s24
    %p56 = scmp.eq.s32.totalorder %s55, 0
    %s58 = sadd.s32 %s57, 1
    %s59 = scalar_select %p56, %s57, %s58
    %p62 = pneg %p56
    %p63 = scmp.eq.s32.totalorder %s9, 1
    %p64 = por %p62, %p63
    %p65 = scmp.ne.s32.totalorder %s57, %s60
    %p66 = scmp.eq.s32.totalorder %s9, 0
    %p67 = por %p65, %p66
    %p68 = scmp.ne.s32.totalorder %s57, %s60
    %p69 = scmp.eq.s32.totalorder %s14, 1
    %p70 = por %p68, %p69
    %p71 = scmp.ne.s32.totalorder %s60, %s61
    %p72 = scmp.eq.s32.totalorder %s14, 0
    %p73 = por %p71, %p72
    %p74 = scmp.ne.s32.totalorder %s60, %s61
    %p75 = scmp.eq.s32.totalorder %s15, 1
    %p76 = por %p74, %p75
    %p78 = scmp.ne.s32.totalorder %s61, %s77
    %p79 = scmp.eq.s32.totalorder %s15, 0
    %p80 = por %p78, %p79
    %s81 = ssub.s32 %s17, %s24
    %p82 = scmp.eq.s32.totalorder %s81, 0
    %s84 = sadd.s32 %s83, 1
    %s85 = scalar_select %p82, %s83, %s84
    %p88 = pneg %p82
    %p89 = scmp.eq.s32.totalorder %s9, 1
    %p90 = por %p88, %p89
    %p91 = scmp.ne.s32.totalorder %s83, %s86
    %p92 = scmp.eq.s32.totalorder %s9, 0
    %p93 = por %p91, %p92
    %p94 = scmp.ne.s32.totalorder %s83, %s86
    %p95 = scmp.eq.s32.totalorder %s14, 1
    %p96 = por %p94, %p95
    %p97 = scmp.ne.s32.totalorder %s86, %s87
    %p98 = scmp.eq.s32.totalorder %s14, 0
    %p99 = por %p97, %p98
    %p100 = scmp.ne.s32.totalorder %s86, %s87
    %p101 = scmp.eq.s32.totalorder %s15, 1
    %p102 = por %p100, %p101
    %p104 = scmp.ne.s32.totalorder %s87, %s103
    %p105 = scmp.eq.s32.totalorder %s15, 0
    %p106 = por %p104, %p105
    %s107 = ssub.s32 %s16, %s28
    %s108 = ssub.s32 %s17, %s24
    %s109 = sor.u32 %s107, %s108
    %p110 = scmp.eq.s32.totalorder %s109, 0
    %s112 = sadd.s32 %s111, 1
    %s113 = scalar_select %p110, %s111, %s112
    %p116 = pneg %p110
    %p117 = scmp.eq.s32.totalorder %s9, 1
    %p118 = por %p116, %p117
    %p119 = scmp.ne.s32.totalorder %s111, %s114
    %p120 = scmp.eq.s32.totalorder %s9, 0
    %p121 = por %p119, %p120
    %p122 = scmp.ne.s32.totalorder %s111, %s114
    %p123 = scmp.eq.s32.totalorder %s14, 1
    %p124 = por %p122, %p123
    %p125 = scmp.ne.s32.totalorder %s114, %s115
    %p126 = scmp.eq.s32.totalorder %s14, 0
    %p127 = por %p125, %p126
    %p128 = scmp.ne.s32.totalorder %s114, %s115
    %p129 = scmp.eq.s32.totalorder %s15, 1
    %p130 = por %p128, %p129
    %p132 = scmp.ne.s32.totalorder %s115, %s131
    %p133 = scmp.eq.s32.totalorder %s15, 0
    %p134 = por %p132, %p133
    %p135 = scmp.le.s32.totalorder 1, %s9
    %p136 = scmp.lt.s32.totalorder %s9, 3
    %p137 = pnand %p135, %p136
    %p138 = pneg %p137
    // Predicated region
    $region9: #{_lambda_.6} parent=5 // pred_check
      _
    $region10: #{_lambda_.6} parent=5 // pred_check_branch
      %140 = sbr.rel (%p137) target = $region12
    $region11: #{_lambda_.6} parent=5 // pred_region
      %s141 = ssub.s32 %s9, 1
      // Predicated region
      $region13: #{_lambda_.6} parent=11 // pred_check
        %p142 = pneg %p73
      $region14: #{_lambda_.6} parent=11 // pred_check_branch
        %144 = sbr.rel (%p142) target = $region16
      $region15: #{_lambda_.6} parent=11 // pred_region
        %p145 = scmp.lt.s32.totalorder %s19, 0
        %s146 = scalar_select %p145, %s19, 0
        %s147 = smul.addr %s146, 4
        %s148 = scalar_lea.vmem %s1, %s147
      $region16: #{_lambda_.6} parent=11 // pred_fallthru
        _
      // Predicated region
      $region17: #{_lambda_.6} parent=11 // pred_check
        %p149 = pneg %p99
      $region18: #{_lambda_.6} parent=11 // pred_check_branch
        %151 = sbr.rel (%p149) target = $region20
      $region19: #{_lambda_.6} parent=11 // pred_region
        %p152 = scmp.lt.s32.totalorder %s19, 0
        %s153 = scalar_select %p152, %s19, 0
        %s154 = scalar_lea.vmem %s2, %s153
      $region20: #{_lambda_.6} parent=11 // pred_fallthru
        _
    $region12: #{_lambda_.6} parent=5 // pred_fallthru
      _
    %p155 = scmp.lt.s32.totalorder %s9, 2
    // Predicated region
    $region21: #{_lambda_.6} parent=5 // pred_check
      %p156 = pneg %p155
    $region22: #{_lambda_.6} parent=5 // pred_check_branch
      %158 = sbr.rel (%p156) target = $region24
    $region23: #{_lambda_.6} parent=5 // pred_region
      // Predicated region
      $region25: #{_lambda_.6} parent=23 // pred_check
        %p159 = pneg %p41
      $region26: #{_lambda_.6} parent=23 // pred_check_branch
        %161 = sbr.rel (%p159) target = $region28
      $region27: #{_lambda_.6} parent=23 // pred_region
        %s162 = smul.u32 32, %s16
        %p163 = scmp.lt.s32.totalorder %s162, 63
        %s164 = scalar_select %p163, %s162, 63
        %s165 = smul.addr %s164, 4
        %s166 = scalar_lea.vmem %s0, %s165
        %s167 = smul.u32 32, %s16
      $region28: #{_lambda_.6} parent=23 // pred_fallthru
        _
    $region24: #{_lambda_.6} parent=5 // pred_fallthru
      _
    %p168 = scmp.le.s32.totalorder 1, %s9
    %p169 = scmp.lt.s32.totalorder %s9, 3
    %p170 = pnand %p168, %p169
    %p171 = pneg %p170
    // Predicated region
    $region29: #{_lambda_.6} parent=5 // pred_check
      _
    $region30: #{_lambda_.6} parent=5 // pred_check_branch
      %173 = sbr.rel (%p170) target = $region32
    $region31: #{_lambda_.6} parent=5 // pred_region
      %s174 = ssub.s32 %s9, 1
      %s175 = smul.u32 32, %s18
      %p176 = scmp.lt.s32.totalorder %s175, 63
      %s177 = scalar_select %p176, %s175, 63
      %s178 = smul.addr %s177, 4
      %s179 = scalar_lea.vmem %s0, %s178
      %p180 = pneg %p47
      %p181 = pneg %p44
      %p182 = scmp.lt.s32.totalorder %s19, 0
      %s183 = scalar_select %p182, %s19, 0
      %s184 = smul.addr %s183, 4
      %s185 = scalar_lea.vmem %s1, %s184
      %p186 = pneg %p73
      %p187 = pneg %p70
      %p188 = scmp.lt.s32.totalorder %s19, 0
      %s189 = scalar_select %p188, %s19, 0
      %s190 = scalar_lea.vmem %s2, %s189
      %p191 = pneg %p99
      %p192 = pneg %p96
      %p193 = pneg %p127
      %p194 = pneg %p124
      %s195 = smul.u32 32, %s18
      %p196 = scmp.lt.s32.totalorder %s195, 63
      %s197 = scalar_select %p196, %s195, 63
      %p198 = scmp.lt.s32.totalorder %s19, 0
      %s199 = scalar_select %p198, %s19, 0
      %s200 = sadd.s32 %s199, %s197
      %s201 = smul.addr %s200, 4
      %s202 = scalar_lea.vmem %s3, %s201
      %s203 = smul.u32 32, %s18
      %p204 = scmp.lt.s32.totalorder %s203, 63
      %s205 = scalar_select %p204, %s203, 63
      %s206 = smul.addr %s205, 4
      %s207 = scalar_lea.vmem %s0, %s206
      %s208 = smul.u32 32, %s18
      %p209 = scmp.lt.s32.totalorder %s19, 0
      %s210 = scalar_select %p209, %s19, 0
      %s211 = smul.addr %s210, 4
      %s212 = scalar_lea.vmem %s1, %s211
      %p213 = scmp.lt.s32.totalorder %s19, 0
      %s214 = scalar_select %p213, %s19, 0
      %s215 = scalar_lea.vmem %s2, %s214
      %s216 = smul.u32 32, %s18
      %p217 = scmp.lt.s32.totalorder %s216, 63
      %s218 = scalar_select %p217, %s216, 63
      %p219 = scmp.lt.s32.totalorder %s19, 0
      %s220 = scalar_select %p219, %s19, 0
      %s221 = sadd.s32 %s220, %s218
      %s222 = smul.addr %s221, 4
      %s223 = scalar_lea.vmem %s3, %s222
      %s224 = smul.u32 32, %s18
      %v226 = vld [vmem:[%s207] sm:$0xf]
      %v227 = vld [vmem:[%s207 + $0x4] sm:$0xf]
      %v228 = vld [vmem:[%s207 + $0x8] sm:$0xf]
      %v229 = vld [vmem:[%s207 + $0xc] sm:$0xf]
      %v230 = vld [vmem:[%s207 + $0x10] sm:$0xf]
      %v231 = vld [vmem:[%s207 + $0x14] sm:$0xf]
      %v232 = vld [vmem:[%s207 + $0x18] sm:$0xf]
      %v233 = vld [vmem:[%s207 + $0x1c] sm:$0xf]
      %v234 = vld [vmem:[%s207 + $0x20] sm:$0xf]
      %v235 = vld [vmem:[%s207 + $0x24] sm:$0xf]
      %v236 = vld [vmem:[%s207 + $0x28] sm:$0xf]
      %v237 = vld [vmem:[%s207 + $0x2c] sm:$0xf]
      %v238 = vld [vmem:[%s207 + $0x30] sm:$0xf]
      %v239 = vld [vmem:[%s207 + $0x34] sm:$0xf]
      %v240 = vld [vmem:[%s207 + $0x38] sm:$0xf]
      %v241 = vld [vmem:[%s207 + $0x3c] sm:$0xf]
      %v242 = vld [vmem:[%s207 + $0x40] sm:$0xf]
      %v243 = vld [vmem:[%s207 + $0x44] sm:$0xf]
      %v244 = vld [vmem:[%s207 + $0x48] sm:$0xf]
      %v245 = vld [vmem:[%s207 + $0x4c] sm:$0xf]
      %v246 = vld [vmem:[%s207 + $0x50] sm:$0xf]
      %v247 = vld [vmem:[%s207 + $0x54] sm:$0xf]
      %v248 = vld [vmem:[%s207 + $0x58] sm:$0xf]
      %v249 = vld [vmem:[%s207 + $0x5c] sm:$0xf]
      %v250 = vld [vmem:[%s207 + $0x60] sm:$0xf]
      %v251 = vld [vmem:[%s207 + $0x64] sm:$0xf]
      %v252 = vld [vmem:[%s207 + $0x68] sm:$0xf]
      %v253 = vld [vmem:[%s207 + $0x6c] sm:$0xf]
      %v254 = vld [vmem:[%s207 + $0x70] sm:$0xf]
      %v255 = vld [vmem:[%s207 + $0x74] sm:$0xf]
      %v256 = vld [vmem:[%s207 + $0x78] sm:$0xf]
      %v257 = vld [vmem:[%s207 + $0x7c] sm:$0xf]
      %v258 = vld [vmem:[%s212] sm:$0xf]
      %v259 = vld [vmem:[%s212 + $0x4] sm:$0xf]
      %v260 = vld [vmem:[%s212 + $0x8] sm:$0xf]
      %v261 = vld [vmem:[%s212 + $0xc] sm:$0xf]
      %v262 = vld [vmem:[%s212 + $0x10] sm:$0xf]
      %v263 = vld [vmem:[%s212 + $0x14] sm:$0xf]
      %v264 = vld [vmem:[%s212 + $0x18] sm:$0xf]
      %v265 = vld [vmem:[%s212 + $0x1c] sm:$0xf]
      %v266 = vld [vmem:[%s215] sm:$0x1]
      %v268 = vperm.slane %v266, 0
      %v302 = vunpack.c.l.b16 %v226
      %v303 = vunpack.c.l.b16 %v227
      %v304 = vunpack.c.l.b16 %v228
      %v305 = vunpack.c.l.b16 %v229
      %v306 = vunpack.c.l.b16 %v230
      %v307 = vunpack.c.l.b16 %v231
      %v308 = vunpack.c.l.b16 %v232
      %v309 = vunpack.c.l.b16 %v233
      %v310 = vunpack.c.l.b16 %v234
      %v311 = vunpack.c.l.b16 %v235
      %v312 = vunpack.c.l.b16 %v236
      %v313 = vunpack.c.l.b16 %v237
      %v314 = vunpack.c.l.b16 %v238
      %v315 = vunpack.c.l.b16 %v239
      %v316 = vunpack.c.l.b16 %v240
      %v317 = vunpack.c.l.b16 %v241
      %v318 = vunpack.c.l.b16 %v242
      %v319 = vunpack.c.l.b16 %v243
      %v320 = vunpack.c.l.b16 %v244
      %v321 = vunpack.c.l.b16 %v245
      %v322 = vunpack.c.l.b16 %v246
      %v323 = vunpack.c.l.b16 %v247
      %v324 = vunpack.c.l.b16 %v248
      %v325 = vunpack.c.l.b16 %v249
      %v326 = vunpack.c.l.b16 %v250
      %v327 = vunpack.c.l.b16 %v251
      %v328 = vunpack.c.l.b16 %v252
      %v329 = vunpack.c.l.b16 %v253
      %v330 = vunpack.c.l.b16 %v254
      %v331 = vunpack.c.l.b16 %v255
      %v332 = vunpack.c.l.b16 %v256
      %v333 = vunpack.c.l.b16 %v257
      %v334 = vpack.c.b16 %v303, %v302
      %v335 = vpack.c.b16 %v305, %v304
      %v336 = vpack.c.b16 %v307, %v306
      %v337 = vpack.c.b16 %v309, %v308
      %v338 = vpack.c.b16 %v311, %v310
      %v339 = vpack.c.b16 %v313, %v312
      %v340 = vpack.c.b16 %v315, %v314
      %v341 = vpack.c.b16 %v317, %v316
      %v342 = vpack.c.b16 %v319, %v318
      %v343 = vpack.c.b16 %v321, %v320
      %v344 = vpack.c.b16 %v323, %v322
      %v345 = vpack.c.b16 %v325, %v324
      %v346 = vpack.c.b16 %v327, %v326
      %v347 = vpack.c.b16 %v329, %v328
      %v348 = vpack.c.b16 %v331, %v330
      %v349 = vpack.c.b16 %v333, %v332
      %v358 = vunpack.c.l.b16 %v258
      %v359 = vunpack.c.l.b16 %v259
      %v360 = vunpack.c.l.b16 %v260
      %v361 = vunpack.c.l.b16 %v261
      %v362 = vunpack.c.l.b16 %v262
      %v363 = vunpack.c.l.b16 %v263
      %v364 = vunpack.c.l.b16 %v264
      %v365 = vunpack.c.l.b16 %v265
      %v366 = vpack.c.b16 %v359, %v358
      %v367 = vpack.c.b16 %v361, %v360
      %v368 = vpack.c.b16 %v363, %v362
      %v369 = vpack.c.b16 %v365, %v364
      %vm374 = vcmask 523264
      %v376 = vsel %vm374, %v334, 0
      %v379 = vsel %vm374, %v335, 0
      %v382 = vsel %vm374, %v336, 0
      %v385 = vsel %vm374, %v337, 0
      %v388 = vsel %vm374, %v338, 0
      %v391 = vsel %vm374, %v339, 0
      %v394 = vsel %vm374, %v340, 0
      %v397 = vsel %vm374, %v341, 0
      %v400 = vsel %vm374, %v342, 0
      %v403 = vsel %vm374, %v343, 0
      %v406 = vsel %vm374, %v344, 0
      %v409 = vsel %vm374, %v345, 0
      %v412 = vsel %vm374, %v346, 0
      %v415 = vsel %vm374, %v347, 0
      %v418 = vsel %vm374, %v348, 0
      %v421 = vsel %vm374, %v349, 0
      %423 = vmatpush.bf16.msra.mxu0 0
      %424 = vmatpush.bf16.msra.mxu0 0
      %425 = vmatpush.bf16.msra.mxu0 0
      %426 = vmatpush.bf16.msra.mxu0 0
      %427 = vmatpush.bf16.msra.mxu0 %v369
      %428 = vmatpush.bf16.msra.mxu0 %v368
      %429 = vmatpush.bf16.msra.mxu0 %v367
      %430 = vmatpush.bf16.msra.mxu0 %v366
      %431 = vmatmul.bf16.gmra.mxu0 %v376
      %v432 = vpop.f32.mrf.mxu0
      %v433 = vadd.f32 %v268, %v432
      %v434 = vpop.f32.mrf.mxu0
      %v435 = vadd.f32 %v268, %v434
      %436 = vmatmul.bf16.gmra.mxu0 %v379
      %v437 = vpop.f32.mrf.mxu0
      %v438 = vadd.f32 %v268, %v437
      %v439 = vpop.f32.mrf.mxu0
      %v440 = vadd.f32 %v268, %v439
      %441 = vmatmul.bf16.gmra.mxu0 %v382
      %v442 = vpop.f32.mrf.mxu0
      %v443 = vadd.f32 %v268, %v442
      %v444 = vpop.f32.mrf.mxu0
      %v445 = vadd.f32 %v268, %v444
      %446 = vmatmul.bf16.gmra.mxu0 %v385
      %v447 = vpop.f32.mrf.mxu0
      %v448 = vadd.f32 %v268, %v447
      %v449 = vpop.f32.mrf.mxu0
      %v450 = vadd.f32 %v268, %v449
      %451 = vmatmul.bf16.gmra.mxu0 %v388
      %v452 = vpop.f32.mrf.mxu0
      %v453 = vadd.f32 %v268, %v452
      %v454 = vpop.f32.mrf.mxu0
      %v455 = vadd.f32 %v268, %v454
      %456 = vmatmul.bf16.gmra.mxu0 %v391
      %v457 = vpop.f32.mrf.mxu0
      %v458 = vadd.f32 %v268, %v457
      %v459 = vpop.f32.mrf.mxu0
      %v460 = vadd.f32 %v268, %v459
      %461 = vmatmul.bf16.gmra.mxu0 %v394
      %v462 = vpop.f32.mrf.mxu0
      %v463 = vadd.f32 %v268, %v462
      %v464 = vpop.f32.mrf.mxu0
      %v465 = vadd.f32 %v268, %v464
      %466 = vmatmul.bf16.gmra.mxu0 %v397
      %v467 = vpop.f32.mrf.mxu0
      %v468 = vadd.f32 %v268, %v467
      %v469 = vpop.f32.mrf.mxu0
      %v470 = vadd.f32 %v268, %v469
      %471 = vmatmul.bf16.gmra.mxu0 %v400
      %v472 = vpop.f32.mrf.mxu0
      %v473 = vadd.f32 %v268, %v472
      %v474 = vpop.f32.mrf.mxu0
      %v475 = vadd.f32 %v268, %v474
      %476 = vmatmul.bf16.gmra.mxu0 %v403
      %v477 = vpop.f32.mrf.mxu0
      %v478 = vadd.f32 %v268, %v477
      %v479 = vpop.f32.mrf.mxu0
      %v480 = vadd.f32 %v268, %v479
      %481 = vmatmul.bf16.gmra.mxu0 %v406
      %v482 = vpop.f32.mrf.mxu0
      %v483 = vadd.f32 %v268, %v482
      %v484 = vpop.f32.mrf.mxu0
      %v485 = vadd.f32 %v268, %v484
      %486 = vmatmul.bf16.gmra.mxu0 %v409
      %v487 = vpop.f32.mrf.mxu0
      %v488 = vadd.f32 %v268, %v487
      %v489 = vpop.f32.mrf.mxu0
      %v490 = vadd.f32 %v268, %v489
      %491 = vmatmul.bf16.gmra.mxu0 %v412
      %v492 = vpop.f32.mrf.mxu0
      %v493 = vadd.f32 %v268, %v492
      %v494 = vpop.f32.mrf.mxu0
      %v495 = vadd.f32 %v268, %v494
      %496 = vmatmul.bf16.gmra.mxu0 %v415
      %v497 = vpop.f32.mrf.mxu0
      %v498 = vadd.f32 %v268, %v497
      %v499 = vpop.f32.mrf.mxu0
      %v500 = vadd.f32 %v268, %v499
      %501 = vmatmul.bf16.gmra.mxu0 %v418
      %v502 = vpop.f32.mrf.mxu0
      %v503 = vadd.f32 %v268, %v502
      %v504 = vpop.f32.mrf.mxu0
      %v505 = vadd.f32 %v268, %v504
      %506 = vmatmul.bf16.gmra.mxu0 %v421
      %v507 = vpop.f32.mrf.mxu0
      %v508 = vadd.f32 %v268, %v507
      %v509 = vpop.f32.mrf.mxu0
      %v510 = vadd.f32 %v268, %v509
      %511 = vdwg.mxu0
      %v512 = vpack.c.bf16 %v433, %v433
      %v513 = vpack.c.bf16 %v435, %v435
      %v514 = vpack.c.bf16 %v438, %v438
      %v515 = vpack.c.bf16 %v440, %v440
      %v516 = vpack.c.bf16 %v443, %v443
      %v517 = vpack.c.bf16 %v445, %v445
      %v518 = vpack.c.bf16 %v448, %v448
      %v519 = vpack.c.bf16 %v450, %v450
      %v520 = vpack.c.bf16 %v453, %v453
      %v521 = vpack.c.bf16 %v455, %v455
      %v522 = vpack.c.bf16 %v458, %v458
      %v523 = vpack.c.bf16 %v460, %v460
      %v524 = vpack.c.bf16 %v463, %v463
      %v525 = vpack.c.bf16 %v465, %v465
      %v526 = vpack.c.bf16 %v468, %v468
      %v527 = vpack.c.bf16 %v470, %v470
      %v528 = vpack.c.bf16 %v473, %v473
      %v529 = vpack.c.bf16 %v475, %v475
      %v530 = vpack.c.bf16 %v478, %v478
      %v531 = vpack.c.bf16 %v480, %v480
      %v532 = vpack.c.bf16 %v483, %v483
      %v533 = vpack.c.bf16 %v485, %v485
      %v534 = vpack.c.bf16 %v488, %v488
      %v535 = vpack.c.bf16 %v490, %v490
      %v536 = vpack.c.bf16 %v493, %v493
      %v537 = vpack.c.bf16 %v495, %v495
      %v538 = vpack.c.bf16 %v498, %v498
      %v539 = vpack.c.bf16 %v500, %v500
      %v540 = vpack.c.bf16 %v503, %v503
      %v541 = vpack.c.bf16 %v505, %v505
      %v542 = vpack.c.bf16 %v508, %v508
      %v543 = vpack.c.bf16 %v510, %v510
      %544 = vst [vmem:[%s223] sm:$0xf] %v512
      %545 = vst [vmem:[%s223 + $0x4] sm:$0xf] %v513
      %546 = vst [vmem:[%s223 + $0x8] sm:$0xf] %v514
      %547 = vst [vmem:[%s223 + $0xc] sm:$0xf] %v515
      %548 = vst [vmem:[%s223 + $0x10] sm:$0xf] %v516
      %549 = vst [vmem:[%s223 + $0x14] sm:$0xf] %v517
      %550 = vst [vmem:[%s223 + $0x18] sm:$0xf] %v518
      %551 = vst [vmem:[%s223 + $0x1c] sm:$0xf] %v519
      %552 = vst [vmem:[%s223 + $0x20] sm:$0xf] %v520
      %553 = vst [vmem:[%s223 + $0x24] sm:$0xf] %v521
      %554 = vst [vmem:[%s223 + $0x28] sm:$0xf] %v522
      %555 = vst [vmem:[%s223 + $0x2c] sm:$0xf] %v523
      %556 = vst [vmem:[%s223 + $0x30] sm:$0xf] %v524
      %557 = vst [vmem:[%s223 + $0x34] sm:$0xf] %v525
      %558 = vst [vmem:[%s223 + $0x38] sm:$0xf] %v526
      %559 = vst [vmem:[%s223 + $0x3c] sm:$0xf] %v527
      %560 = vst [vmem:[%s223 + $0x40] sm:$0xf] %v528
      %561 = vst [vmem:[%s223 + $0x44] sm:$0xf] %v529
      %562 = vst [vmem:[%s223 + $0x48] sm:$0xf] %v530
      %563 = vst [vmem:[%s223 + $0x4c] sm:$0xf] %v531
      %564 = vst [vmem:[%s223 + $0x50] sm:$0xf] %v532
      %565 = vst [vmem:[%s223 + $0x54] sm:$0xf] %v533
      %566 = vst [vmem:[%s223 + $0x58] sm:$0xf] %v534
      %567 = vst [vmem:[%s223 + $0x5c] sm:$0xf] %v535
      %568 = vst [vmem:[%s223 + $0x60] sm:$0xf] %v536
      %569 = vst [vmem:[%s223 + $0x64] sm:$0xf] %v537
      %570 = vst [vmem:[%s223 + $0x68] sm:$0xf] %v538
      %571 = vst [vmem:[%s223 + $0x6c] sm:$0xf] %v539
      %572 = vst [vmem:[%s223 + $0x70] sm:$0xf] %v540
      %573 = vst [vmem:[%s223 + $0x74] sm:$0xf] %v541
      %574 = vst [vmem:[%s223 + $0x78] sm:$0xf] %v542
      %575 = vst [vmem:[%s223 + $0x7c] sm:$0xf] %v543
      %s576 = smul.u32 32, %s18
      %p577 = scmp.lt.s32.totalorder %s576, 63
      %s578 = scalar_select %p577, %s576, 63
      %p579 = scmp.lt.s32.totalorder %s19, 0
      %s580 = scalar_select %p579, %s19, 0
      %s581 = sadd.s32 %s580, %s578
      %s582 = smul.addr %s581, 4
      %s583 = scalar_lea.vmem %s3, %s582
      // Predicated region
      $region33: #{_lambda_.6} parent=31 // pred_check
        %p584 = pneg %p124
      $region34: #{_lambda_.6} parent=31 // pred_check_branch
        %586 = sbr.rel (%p584) target = $region36
      $region35: #{_lambda_.6} parent=31 // pred_region
        %s587 = smul.u32 32, %s18
      $region36: #{_lambda_.6} parent=31 // pred_fallthru
        _
    $region32: #{_lambda_.6} parent=5 // pred_fallthru
      _
    %p588 = scmp.le.s32.totalorder 2, %s9
    // Predicated region
    $region37: #{_lambda_.6} parent=5 // pred_check
      %p589 = pneg %p588
    $region38: #{_lambda_.6} parent=5 // pred_check_branch
      %591 = sbr.rel (%p589) target = $region40
    $region39: #{_lambda_.6} parent=5 // pred_region
      %s592 = ssub.s32 %s9, 2
      // Predicated region
      $region41: #{_lambda_.6} parent=39 // pred_check
        %p593 = pneg %p130
      $region42: #{_lambda_.6} parent=39 // pred_check_branch
        %595 = sbr.rel (%p593) target = $region44
      $region43: #{_lambda_.6} parent=39 // pred_region
        %s596 = smul.u32 32, %s20
        %p597 = scmp.lt.s32.totalorder %s596, 63
        %s598 = scalar_select %p597, %s596, 63
        %p599 = scmp.lt.s32.totalorder %s21, 0
        %s600 = scalar_select %p599, %s21, 0
        %s601 = sadd.s32 %s600, %s598
        %s602 = smul.addr %s601, 4
        %s603 = scalar_lea.vmem %s3, %s602
      $region44: #{_lambda_.6} parent=39 // pred_fallthru
        _
    $region40: #{_lambda_.6} parent=5 // pred_fallthru
      _
  $region6: #{_lambda_.6} parent=0 // loop_footer
    %s13 = sadd.s32 1, %s9
  $region7: #{_lambda_.6} parent=0 // loop_footer_branch
    %8 = sbr.rel target = $region3
  $region8: #{_lambda_.6} parent=0 // loop_exit
    _

// kernel: _lambda_.4
$region0: #{_lambda_.4}
  #allocation0 [shape = 'u32[]', space=smem, size = 0x4, offset = 0x4, fixed_abs, tag = 'smem constant byte address 0x4 - core index']
  #allocation1 [shape = 'u32[72,128]{1,0:T(1,128)}', space=vmem, size = 0x9000, scoped, tag = 'internal scratch']
  %s0 = inlined_call_operand.vmem [shape: bf16[512,64], index: 0, kind: input, shape index: {}]
  %s1 = inlined_call_operand.vmem [shape: bf16[64,128], index: 1, kind: input, shape index: {}]
  %s2 = inlined_call_operand.vmem [shape: f32[1,128], index: 2, kind: input, shape index: {}]
  %s3 = inlined_call_operand.vmem [shape: bf16[512,128], index: 3, kind: output, shape index: {}]
  %s4 = sld [smem:[#allocation0]]
  $region45: #{_lambda_.4} parent=0
    _
  %s6 = ssub.s32 1, %s4
  %s7 = scalar_select 0, %s6, %s4
  loop: start=0, step=1, limit=4
  $region2: #{_lambda_.4} parent=0 // loop_pre_header
    _
  $region3: #{_lambda_.4} parent=0 // loop_header
    %s9 = sphi 0, %s13
    %p10 = scmp.ge.s32.totalorder %s9, 4
    %s16 = sphi 0, %s28
    %s17 = sphi 0, %s24
    %s18 = sphi 0, %s16
    %s19 = sphi 0, %s17
    %s20 = sphi 0, %s18
    %s21 = sphi 0, %s19
    %s31 = sphi 0, %s33
    %s34 = sphi 0, %s31
    %s35 = sphi 0, %s34
    %s51 = sphi 0, %s35
    %s57 = sphi 0, %s59
    %s60 = sphi 0, %s57
    %s61 = sphi 0, %s60
    %s77 = sphi 0, %s61
    %s83 = sphi 0, %s85
    %s86 = sphi 0, %s83
    %s87 = sphi 0, %s86
    %s103 = sphi 0, %s87
    %s111 = sphi 0, %s113
    %s114 = sphi 0, %s111
    %s115 = sphi 0, %s114
    %s131 = sphi 0, %s115
  $region4: #{_lambda_.4} parent=0 // loop_header_branch
    %12 = sbr.rel (%p10) target = $region8
  $region5: #{_lambda_.4} parent=0 // loop_body
    %s14 = ssub.s32 %s9, 1
    %s15 = ssub.s32 %s9, 2
    %s22 = sadd.s32 1, %s17
    %p23 = scmp.ge.s32.totalorder %s22, 1
    %s24 = scalar_select %p23, 0, %s22
    %s25 = sadd.s32 1, %s16
    %s26 = scalar_select %p23, %s25, %s16
    %p27 = scmp.ge.s32.totalorder %s26, 2
    %s28 = scalar_select %p27, 0, %s26
    %s29 = ssub.s32 %s16, %s28
    %p30 = scmp.eq.s32.totalorder %s29, 0
    %s32 = sadd.s32 %s31, 1
    %s33 = scalar_select %p30, %s31, %s32
    %p36 = pneg %p30
    %p37 = scmp.eq.s32.totalorder %s9, 1
    %p38 = por %p36, %p37
    %p39 = scmp.ne.s32.totalorder %s31, %s34
    %p40 = scmp.eq.s32.totalorder %s9, 0
    %p41 = por %p39, %p40
    %p42 = scmp.ne.s32.totalorder %s31, %s34
    %p43 = scmp.eq.s32.totalorder %s14, 1
    %p44 = por %p42, %p43
    %p45 = scmp.ne.s32.totalorder %s34, %s35
    %p46 = scmp.eq.s32.totalorder %s14, 0
    %p47 = por %p45, %p46
    %p48 = scmp.ne.s32.totalorder %s34, %s35
    %p49 = scmp.eq.s32.totalorder %s15, 1
    %p50 = por %p48, %p49
    %p52 = scmp.ne.s32.totalorder %s35, %s51
    %p53 = scmp.eq.s32.totalorder %s15, 0
    %p54 = por %p52, %p53
    %s55 = ssub.s32 %s17, %s24
    %p56 = scmp.eq.s32.totalorder %s55, 0
    %s58 = sadd.s32 %s57, 1
    %s59 = scalar_select %p56, %s57, %s58
    %p62 = pneg %p56
    %p63 = scmp.eq.s32.totalorder %s9, 1
    %p64 = por %p62, %p63
    %p65 = scmp.ne.s32.totalorder %s57, %s60
    %p66 = scmp.eq.s32.totalorder %s9, 0
    %p67 = por %p65, %p66
    %p68 = scmp.ne.s32.totalorder %s57, %s60
    %p69 = scmp.eq.s32.totalorder %s14, 1
    %p70 = por %p68, %p69
    %p71 = scmp.ne.s32.totalorder %s60, %s61
    %p72 = scmp.eq.s32.totalorder %s14, 0
    %p73 = por %p71, %p72
    %p74 = scmp.ne.s32.totalorder %s60, %s61
    %p75 = scmp.eq.s32.totalorder %s15, 1
    %p76 = por %p74, %p75
    %p78 = scmp.ne.s32.totalorder %s61, %s77
    %p79 = scmp.eq.s32.totalorder %s15, 0
    %p80 = por %p78, %p79
    %s81 = ssub.s32 %s17, %s24
    %p82 = scmp.eq.s32.totalorder %s81, 0
    %s84 = sadd.s32 %s83, 1
    %s85 = scalar_select %p82, %s83, %s84
    %p88 = pneg %p82
    %p89 = scmp.eq.s32.totalorder %s9, 1
    %p90 = por %p88, %p89
    %p91 = scmp.ne.s32.totalorder %s83, %s86
    %p92 = scmp.eq.s32.totalorder %s9, 0
    %p93 = por %p91, %p92
    %p94 = scmp.ne.s32.totalorder %s83, %s86
    %p95 = scmp.eq.s32.totalorder %s14, 1
    %p96 = por %p94, %p95
    %p97 = scmp.ne.s32.totalorder %s86, %s87
    %p98 = scmp.eq.s32.totalorder %s14, 0
    %p99 = por %p97, %p98
    %p100 = scmp.ne.s32.totalorder %s86, %s87
    %p101 = scmp.eq.s32.totalorder %s15, 1
    %p102 = por %p100, %p101
    %p104 = scmp.ne.s32.totalorder %s87, %s103
    %p105 = scmp.eq.s32.totalorder %s15, 0
    %p106 = por %p104, %p105
    %s107 = ssub.s32 %s16, %s28
    %s108 = ssub.s32 %s17, %s24
    %s109 = sor.u32 %s107, %s108
    %p110 = scmp.eq.s32.totalorder %s109, 0
    %s112 = sadd.s32 %s111, 1
    %s113 = scalar_select %p110, %s111, %s112
    %p116 = pneg %p110
    %p117 = scmp.eq.s32.totalorder %s9, 1
    %p118 = por %p116, %p117
    %p119 = scmp.ne.s32.totalorder %s111, %s114
    %p120 = scmp.eq.s32.totalorder %s9, 0
    %p121 = por %p119, %p120
    %p122 = scmp.ne.s32.totalorder %s111, %s114
    %p123 = scmp.eq.s32.totalorder %s14, 1
    %p124 = por %p122, %p123
    %p125 = scmp.ne.s32.totalorder %s114, %s115
    %p126 = scmp.eq.s32.totalorder %s14, 0
    %p127 = por %p125, %p126
    %p128 = scmp.ne.s32.totalorder %s114, %s115
    %p129 = scmp.eq.s32.totalorder %s15, 1
    %p130 = por %p128, %p129
    %p132 = scmp.ne.s32.totalorder %s115, %s131
    %p133 = scmp.eq.s32.totalorder %s15, 0
    %p134 = por %p132, %p133
    %p135 = scmp.le.s32.totalorder 1, %s9
    %p136 = scmp.lt.s32.totalorder %s9, 3
    %p137 = pnand %p135, %p136
    %p138 = pneg %p137
    // Predicated region
    $region9: #{_lambda_.4} parent=5 // pred_check
      _
    $region10: #{_lambda_.4} parent=5 // pred_check_branch
      %140 = sbr.rel (%p137) target = $region12
    $region11: #{_lambda_.4} parent=5 // pred_region
      %s141 = ssub.s32 %s9, 1
      // Predicated region
      $region13: #{_lambda_.4} parent=11 // pred_check
        %p142 = pneg %p73
      $region14: #{_lambda_.4} parent=11 // pred_check_branch
        %144 = sbr.rel (%p142) target = $region16
      $region15: #{_lambda_.4} parent=11 // pred_region
        %p145 = scmp.lt.s32.totalorder %s19, 0
        %s146 = scalar_select %p145, %s19, 0
        %s147 = smul.addr %s146, 4
        %s148 = scalar_lea.vmem %s1, %s147
      $region16: #{_lambda_.4} parent=11 // pred_fallthru
        _
      // Predicated region
      $region17: #{_lambda_.4} parent=11 // pred_check
        %p149 = pneg %p99
      $region18: #{_lambda_.4} parent=11 // pred_check_branch
        %151 = sbr.rel (%p149) target = $region20
      $region19: #{_lambda_.4} parent=11 // pred_region
        %p152 = scmp.lt.s32.totalorder %s19, 0
        %s153 = scalar_select %p152, %s19, 0
        %s154 = scalar_lea.vmem %s2, %s153
      $region20: #{_lambda_.4} parent=11 // pred_fallthru
        _
    $region12: #{_lambda_.4} parent=5 // pred_fallthru
      _
    %p155 = scmp.lt.s32.totalorder %s9, 2
    // Predicated region
    $region21: #{_lambda_.4} parent=5 // pred_check
      %p156 = pneg %p155
    $region22: #{_lambda_.4} parent=5 // pred_check_branch
      %158 = sbr.rel (%p156) target = $region24
    $region23: #{_lambda_.4} parent=5 // pred_region
      // Predicated region
      $region25: #{_lambda_.4} parent=23 // pred_check
        %p159 = pneg %p41
      $region26: #{_lambda_.4} parent=23 // pred_check_branch
        %161 = sbr.rel (%p159) target = $region28
      $region27: #{_lambda_.4} parent=23 // pred_region
        %s162 = smul.u32 32, %s16
        %p163 = scmp.lt.s32.totalorder %s162, 63
        %s164 = scalar_select %p163, %s162, 63
        %s165 = smul.addr %s164, 4
        %s166 = scalar_lea.vmem %s0, %s165
        %s167 = smul.u32 32, %s16
      $region28: #{_lambda_.4} parent=23 // pred_fallthru
        _
    $region24: #{_lambda_.4} parent=5 // pred_fallthru
      _
    %p168 = scmp.le.s32.totalorder 1, %s9
    %p169 = scmp.lt.s32.totalorder %s9, 3
    %p170 = pnand %p168, %p169
    %p171 = pneg %p170
    // Predicated region
    $region29: #{_lambda_.4} parent=5 // pred_check
      _
    $region30: #{_lambda_.4} parent=5 // pred_check_branch
      %173 = sbr.rel (%p170) target = $region32
    $region31: #{_lambda_.4} parent=5 // pred_region
      %s174 = ssub.s32 %s9, 1
      %s175 = smul.u32 32, %s18
      %p176 = scmp.lt.s32.totalorder %s175, 63
      %s177 = scalar_select %p176, %s175, 63
      %s178 = smul.addr %s177, 4
      %s179 = scalar_lea.vmem %s0, %s178
      %p180 = pneg %p47
      %p181 = pneg %p44
      %p182 = scmp.lt.s32.totalorder %s19, 0
      %s183 = scalar_select %p182, %s19, 0
      %s184 = smul.addr %s183, 4
      %s185 = scalar_lea.vmem %s1, %s184
      %p186 = pneg %p73
      %p187 = pneg %p70
      %p188 = scmp.lt.s32.totalorder %s19, 0
      %s189 = scalar_select %p188, %s19, 0
      %s190 = scalar_lea.vmem %s2, %s189
      %p191 = pneg %p99
      %p192 = pneg %p96
      %p193 = pneg %p127
      %p194 = pneg %p124
      %s195 = smul.u32 32, %s18
      %p196 = scmp.lt.s32.totalorder %s195, 63
      %s197 = scalar_select %p196, %s195, 63
      %p198 = scmp.lt.s32.totalorder %s19, 0
      %s199 = scalar_select %p198, %s19, 0
      %s200 = sadd.s32 %s199, %s197
      %s201 = smul.addr %s200, 4
      %s202 = scalar_lea.vmem %s3, %s201
      %s203 = smul.u32 32, %s18
      %p204 = scmp.lt.s32.totalorder %s203, 63
      %s205 = scalar_select %p204, %s203, 63
      %s206 = smul.addr %s205, 4
      %s207 = scalar_lea.vmem %s0, %s206
      %s208 = smul.u32 32, %s18
      %p209 = scmp.lt.s32.totalorder %s19, 0
      %s210 = scalar_select %p209, %s19, 0
      %s211 = smul.addr %s210, 4
      %s212 = scalar_lea.vmem %s1, %s211
      %p213 = scmp.lt.s32.totalorder %s19, 0
      %s214 = scalar_select %p213, %s19, 0
      %s215 = scalar_lea.vmem %s2, %s214
      %s216 = smul.u32 32, %s18
      %p217 = scmp.lt.s32.totalorder %s216, 63
      %s218 = scalar_select %p217, %s216, 63
      %p219 = scmp.lt.s32.totalorder %s19, 0
      %s220 = scalar_select %p219, %s19, 0
      %s221 = sadd.s32 %s220, %s218
      %s222 = smul.addr %s221, 4
      %s223 = scalar_lea.vmem %s3, %s222
      %s224 = smul.u32 32, %s18
      %v226 = vld [vmem:[%s207] sm:$0xf]
      %v227 = vld [vmem:[%s207 + $0x4] sm:$0xf]
      %v228 = vld [vmem:[%s207 + $0x8] sm:$0xf]
      %v229 = vld [vmem:[%s207 + $0xc] sm:$0xf]
      %v230 = vld [vmem:[%s207 + $0x10] sm:$0xf]
      %v231 = vld [vmem:[%s207 + $0x14] sm:$0xf]
      %v232 = vld [vmem:[%s207 + $0x18] sm:$0xf]
      %v233 = vld [vmem:[%s207 + $0x1c] sm:$0xf]
      %v234 = vld [vmem:[%s207 + $0x20] sm:$0xf]
      %v235 = vld [vmem:[%s207 + $0x24] sm:$0xf]
      %v236 = vld [vmem:[%s207 + $0x28] sm:$0xf]
      %v237 = vld [vmem:[%s207 + $0x2c] sm:$0xf]
      %v238 = vld [vmem:[%s207 + $0x30] sm:$0xf]
      %v239 = vld [vmem:[%s207 + $0x34] sm:$0xf]
      %v240 = vld [vmem:[%s207 + $0x38] sm:$0xf]
      %v241 = vld [vmem:[%s207 + $0x3c] sm:$0xf]
      %v242 = vld [vmem:[%s207 + $0x40] sm:$0xf]
      %v243 = vld [vmem:[%s207 + $0x44] sm:$0xf]
      %v244 = vld [vmem:[%s207 + $0x48] sm:$0xf]
      %v245 = vld [vmem:[%s207 + $0x4c] sm:$0xf]
      %v246 = vld [vmem:[%s207 + $0x50] sm:$0xf]
      %v247 = vld [vmem:[%s207 + $0x54] sm:$0xf]
      %v248 = vld [vmem:[%s207 + $0x58] sm:$0xf]
      %v249 = vld [vmem:[%s207 + $0x5c] sm:$0xf]
      %v250 = vld [vmem:[%s207 + $0x60] sm:$0xf]
      %v251 = vld [vmem:[%s207 + $0x64] sm:$0xf]
      %v252 = vld [vmem:[%s207 + $0x68] sm:$0xf]
      %v253 = vld [vmem:[%s207 + $0x6c] sm:$0xf]
      %v254 = vld [vmem:[%s207 + $0x70] sm:$0xf]
      %v255 = vld [vmem:[%s207 + $0x74] sm:$0xf]
      %v256 = vld [vmem:[%s207 + $0x78] sm:$0xf]
      %v257 = vld [vmem:[%s207 + $0x7c] sm:$0xf]
      %v258 = vld [vmem:[%s212] sm:$0xf]
      %v259 = vld [vmem:[%s212 + $0x4] sm:$0xf]
      %v260 = vld [vmem:[%s212 + $0x8] sm:$0xf]
      %v261 = vld [vmem:[%s212 + $0xc] sm:$0xf]
      %v262 = vld [vmem:[%s212 + $0x10] sm:$0xf]
      %v263 = vld [vmem:[%s212 + $0x14] sm:$0xf]
      %v264 = vld [vmem:[%s212 + $0x18] sm:$0xf]
      %v265 = vld [vmem:[%s212 + $0x1c] sm:$0xf]
      %v266 = vld [vmem:[%s215] sm:$0x1]
      %v268 = vperm.slane %v266, 0
      %v302 = vunpack.c.l.b16 %v226
      %v303 = vunpack.c.l.b16 %v227
      %v304 = vunpack.c.l.b16 %v228
      %v305 = vunpack.c.l.b16 %v229
      %v306 = vunpack.c.l.b16 %v230
      %v307 = vunpack.c.l.b16 %v231
      %v308 = vunpack.c.l.b16 %v232
      %v309 = vunpack.c.l.b16 %v233
      %v310 = vunpack.c.l.b16 %v234
      %v311 = vunpack.c.l.b16 %v235
      %v312 = vunpack.c.l.b16 %v236
      %v313 = vunpack.c.l.b16 %v237
      %v314 = vunpack.c.l.b16 %v238
      %v315 = vunpack.c.l.b16 %v239
      %v316 = vunpack.c.l.b16 %v240
      %v317 = vunpack.c.l.b16 %v241
      %v318 = vunpack.c.l.b16 %v242
      %v319 = vunpack.c.l.b16 %v243
      %v320 = vunpack.c.l.b16 %v244
      %v321 = vunpack.c.l.b16 %v245
      %v322 = vunpack.c.l.b16 %v246
      %v323 = vunpack.c.l.b16 %v247
      %v324 = vunpack.c.l.b16 %v248
      %v325 = vunpack.c.l.b16 %v249
      %v326 = vunpack.c.l.b16 %v250
      %v327 = vunpack.c.l.b16 %v251
      %v328 = vunpack.c.l.b16 %v252
      %v329 = vunpack.c.l.b16 %v253
      %v330 = vunpack.c.l.b16 %v254
      %v331 = vunpack.c.l.b16 %v255
      %v332 = vunpack.c.l.b16 %v256
      %v333 = vunpack.c.l.b16 %v257
      %v334 = vpack.c.b16 %v303, %v302
      %v335 = vpack.c.b16 %v305, %v304
      %v336 = vpack.c.b16 %v307, %v306
      %v337 = vpack.c.b16 %v309, %v308
      %v338 = vpack.c.b16 %v311, %v310
      %v339 = vpack.c.b16 %v313, %v312
      %v340 = vpack.c.b16 %v315, %v314
      %v341 = vpack.c.b16 %v317, %v316
      %v342 = vpack.c.b16 %v319, %v318
      %v343 = vpack.c.b16 %v321, %v320
      %v344 = vpack.c.b16 %v323, %v322
      %v345 = vpack.c.b16 %v325, %v324
      %v346 = vpack.c.b16 %v327, %v326
      %v347 = vpack.c.b16 %v329, %v328
      %v348 = vpack.c.b16 %v331, %v330
      %v349 = vpack.c.b16 %v333, %v332
      %v358 = vunpack.c.l.b16 %v258
      %v359 = vunpack.c.l.b16 %v259
      %v360 = vunpack.c.l.b16 %v260
      %v361 = vunpack.c.l.b16 %v261
      %v362 = vunpack.c.l.b16 %v262
      %v363 = vunpack.c.l.b16 %v263
      %v364 = vunpack.c.l.b16 %v264
      %v365 = vunpack.c.l.b16 %v265
      %v366 = vpack.c.b16 %v359, %v358
      %v367 = vpack.c.b16 %v361, %v360
      %v368 = vpack.c.b16 %v363, %v362
      %v369 = vpack.c.b16 %v365, %v364
      %vm374 = vcmask 523264
      %v376 = vsel %vm374, %v334, 0
      %v379 = vsel %vm374, %v335, 0
      %v382 = vsel %vm374, %v336, 0
      %v385 = vsel %vm374, %v337, 0
      %v388 = vsel %vm374, %v338, 0
      %v391 = vsel %vm374, %v339, 0
      %v394 = vsel %vm374, %v340, 0
      %v397 = vsel %vm374, %v341, 0
      %v400 = vsel %vm374, %v342, 0
      %v403 = vsel %vm374, %v343, 0
      %v406 = vsel %vm374, %v344, 0
      %v409 = vsel %vm374, %v345, 0
      %v412 = vsel %vm374, %v346, 0
      %v415 = vsel %vm374, %v347, 0
      %v418 = vsel %vm374, %v348, 0
      %v421 = vsel %vm374, %v349, 0
      %423 = vmatpush.bf16.msra.mxu0 0
      %424 = vmatpush.bf16.msra.mxu0 0
      %425 = vmatpush.bf16.msra.mxu0 0
      %426 = vmatpush.bf16.msra.mxu0 0
      %427 = vmatpush.bf16.msra.mxu0 %v369
      %428 = vmatpush.bf16.msra.mxu0 %v368
      %429 = vmatpush.bf16.msra.mxu0 %v367
      %430 = vmatpush.bf16.msra.mxu0 %v366
      %431 = vmatmul.bf16.gmra.mxu0 %v376
      %v432 = vpop.f32.mrf.mxu0
      %v433 = vadd.f32 %v268, %v432
      %v434 = vpop.f32.mrf.mxu0
      %v435 = vadd.f32 %v268, %v434
      %436 = vmatmul.bf16.gmra.mxu0 %v379
      %v437 = vpop.f32.mrf.mxu0
      %v438 = vadd.f32 %v268, %v437
      %v439 = vpop.f32.mrf.mxu0
      %v440 = vadd.f32 %v268, %v439
      %441 = vmatmul.bf16.gmra.mxu0 %v382
      %v442 = vpop.f32.mrf.mxu0
      %v443 = vadd.f32 %v268, %v442
      %v444 = vpop.f32.mrf.mxu0
      %v445 = vadd.f32 %v268, %v444
      %446 = vmatmul.bf16.gmra.mxu0 %v385
      %v447 = vpop.f32.mrf.mxu0
      %v448 = vadd.f32 %v268, %v447
      %v449 = vpop.f32.mrf.mxu0
      %v450 = vadd.f32 %v268, %v449
      %451 = vmatmul.bf16.gmra.mxu0 %v388
      %v452 = vpop.f32.mrf.mxu0
      %v453 = vadd.f32 %v268, %v452
      %v454 = vpop.f32.mrf.mxu0
      %v455 = vadd.f32 %v268, %v454
      %456 = vmatmul.bf16.gmra.mxu0 %v391
      %v457 = vpop.f32.mrf.mxu0
      %v458 = vadd.f32 %v268, %v457
      %v459 = vpop.f32.mrf.mxu0
      %v460 = vadd.f32 %v268, %v459
      %461 = vmatmul.bf16.gmra.mxu0 %v394
      %v462 = vpop.f32.mrf.mxu0
      %v463 = vadd.f32 %v268, %v462
      %v464 = vpop.f32.mrf.mxu0
      %v465 = vadd.f32 %v268, %v464
      %466 = vmatmul.bf16.gmra.mxu0 %v397
      %v467 = vpop.f32.mrf.mxu0
      %v468 = vadd.f32 %v268, %v467
      %v469 = vpop.f32.mrf.mxu0
      %v470 = vadd.f32 %v268, %v469
      %471 = vmatmul.bf16.gmra.mxu0 %v400
      %v472 = vpop.f32.mrf.mxu0
      %v473 = vadd.f32 %v268, %v472
      %v474 = vpop.f32.mrf.mxu0
      %v475 = vadd.f32 %v268, %v474
      %476 = vmatmul.bf16.gmra.mxu0 %v403
      %v477 = vpop.f32.mrf.mxu0
      %v478 = vadd.f32 %v268, %v477
      %v479 = vpop.f32.mrf.mxu0
      %v480 = vadd.f32 %v268, %v479
      %481 = vmatmul.bf16.gmra.mxu0 %v406
      %v482 = vpop.f32.mrf.mxu0
      %v483 = vadd.f32 %v268, %v482
      %v484 = vpop.f32.mrf.mxu0
      %v485 = vadd.f32 %v268, %v484
      %486 = vmatmul.bf16.gmra.mxu0 %v409
      %v487 = vpop.f32.mrf.mxu0
      %v488 = vadd.f32 %v268, %v487
      %v489 = vpop.f32.mrf.mxu0
      %v490 = vadd.f32 %v268, %v489
      %491 = vmatmul.bf16.gmra.mxu0 %v412
      %v492 = vpop.f32.mrf.mxu0
      %v493 = vadd.f32 %v268, %v492
      %v494 = vpop.f32.mrf.mxu0
      %v495 = vadd.f32 %v268, %v494
      %496 = vmatmul.bf16.gmra.mxu0 %v415
      %v497 = vpop.f32.mrf.mxu0
      %v498 = vadd.f32 %v268, %v497
      %v499 = vpop.f32.mrf.mxu0
      %v500 = vadd.f32 %v268, %v499
      %501 = vmatmul.bf16.gmra.mxu0 %v418
      %v502 = vpop.f32.mrf.mxu0
      %v503 = vadd.f32 %v268, %v502
      %v504 = vpop.f32.mrf.mxu0
      %v505 = vadd.f32 %v268, %v504
      %506 = vmatmul.bf16.gmra.mxu0 %v421
      %v507 = vpop.f32.mrf.mxu0
      %v508 = vadd.f32 %v268, %v507
      %v509 = vpop.f32.mrf.mxu0
      %v510 = vadd.f32 %v268, %v509
      %511 = vdwg.mxu0
      %v512 = vmax.f32 %v433, 0.0
      %v513 = vmax.f32 %v435, 0.0
      %v514 = vmax.f32 %v438, 0.0
      %v515 = vmax.f32 %v440, 0.0
      %v516 = vmax.f32 %v443, 0.0
      %v517 = vmax.f32 %v445, 0.0
      %v518 = vmax.f32 %v448, 0.0
      %v519 = vmax.f32 %v450, 0.0
      %v520 = vmax.f32 %v453, 0.0
      %v521 = vmax.f32 %v455, 0.0
      %v522 = vmax.f32 %v458, 0.0
      %v523 = vmax.f32 %v460, 0.0
      %v524 = vmax.f32 %v463, 0.0
      %v525 = vmax.f32 %v465, 0.0
      %v526 = vmax.f32 %v468, 0.0
      %v527 = vmax.f32 %v470, 0.0
      %v528 = vmax.f32 %v473, 0.0
      %v529 = vmax.f32 %v475, 0.0
      %v530 = vmax.f32 %v478, 0.0
      %v531 = vmax.f32 %v480, 0.0
      %v532 = vmax.f32 %v483, 0.0
      %v533 = vmax.f32 %v485, 0.0
      %v534 = vmax.f32 %v488, 0.0
      %v535 = vmax.f32 %v490, 0.0
      %v536 = vmax.f32 %v493, 0.0
      %v537 = vmax.f32 %v495, 0.0
      %v538 = vmax.f32 %v498, 0.0
      %v539 = vmax.f32 %v500, 0.0
      %v540 = vmax.f32 %v503, 0.0
      %v541 = vmax.f32 %v505, 0.0
      %v542 = vmax.f32 %v508, 0.0
      %v543 = vmax.f32 %v510, 0.0
      %v544 = vpack.c.bf16 %v512, %v512
      %v545 = vpack.c.bf16 %v513, %v513
      %v546 = vpack.c.bf16 %v514, %v514
      %v547 = vpack.c.bf16 %v515, %v515
      %v548 = vpack.c.bf16 %v516, %v516
      %v549 = vpack.c.bf16 %v517, %v517
      %v550 = vpack.c.bf16 %v518, %v518
      %v551 = vpack.c.bf16 %v519, %v519
      %v552 = vpack.c.bf16 %v520, %v520
      %v553 = vpack.c.bf16 %v521, %v521
      %v554 = vpack.c.bf16 %v522, %v522
      %v555 = vpack.c.bf16 %v523, %v523
      %v556 = vpack.c.bf16 %v524, %v524
      %v557 = vpack.c.bf16 %v525, %v525
      %v558 = vpack.c.bf16 %v526, %v526
      %v559 = vpack.c.bf16 %v527, %v527
      %v560 = vpack.c.bf16 %v528, %v528
      %v561 = vpack.c.bf16 %v529, %v529
      %v562 = vpack.c.bf16 %v530, %v530
      %v563 = vpack.c.bf16 %v531, %v531
      %v564 = vpack.c.bf16 %v532, %v532
      %v565 = vpack.c.bf16 %v533, %v533
      %v566 = vpack.c.bf16 %v534, %v534
      %v567 = vpack.c.bf16 %v535, %v535
      %v568 = vpack.c.bf16 %v536, %v536
      %v569 = vpack.c.bf16 %v537, %v537
      %v570 = vpack.c.bf16 %v538, %v538
      %v571 = vpack.c.bf16 %v539, %v539
      %v572 = vpack.c.bf16 %v540, %v540
      %v573 = vpack.c.bf16 %v541, %v541
      %v574 = vpack.c.bf16 %v542, %v542
      %v575 = vpack.c.bf16 %v543, %v543
      %576 = vst [vmem:[%s223] sm:$0xf] %v544
      %577 = vst [vmem:[%s223 + $0x4] sm:$0xf] %v545
      %578 = vst [vmem:[%s223 + $0x8] sm:$0xf] %v546
      %579 = vst [vmem:[%s223 + $0xc] sm:$0xf] %v547
      %580 = vst [vmem:[%s223 + $0x10] sm:$0xf] %v548
      %581 = vst [vmem:[%s223 + $0x14] sm:$0xf] %v549
      %582 = vst [vmem:[%s223 + $0x18] sm:$0xf] %v550
      %583 = vst [vmem:[%s223 + $0x1c] sm:$0xf] %v551
      %584 = vst [vmem:[%s223 + $0x20] sm:$0xf] %v552
      %585 = vst [vmem:[%s223 + $0x24] sm:$0xf] %v553
      %586 = vst [vmem:[%s223 + $0x28] sm:$0xf] %v554
      %587 = vst [vmem:[%s223 + $0x2c] sm:$0xf] %v555
      %588 = vst [vmem:[%s223 + $0x30] sm:$0xf] %v556
      %589 = vst [vmem:[%s223 + $0x34] sm:$0xf] %v557
      %590 = vst [vmem:[%s223 + $0x38] sm:$0xf] %v558
      %591 = vst [vmem:[%s223 + $0x3c] sm:$0xf] %v559
      %592 = vst [vmem:[%s223 + $0x40] sm:$0xf] %v560
      %593 = vst [vmem:[%s223 + $0x44] sm:$0xf] %v561
      %594 = vst [vmem:[%s223 + $0x48] sm:$0xf] %v562
      %595 = vst [vmem:[%s223 + $0x4c] sm:$0xf] %v563
      %596 = vst [vmem:[%s223 + $0x50] sm:$0xf] %v564
      %597 = vst [vmem:[%s223 + $0x54] sm:$0xf] %v565
      %598 = vst [vmem:[%s223 + $0x58] sm:$0xf] %v566
      %599 = vst [vmem:[%s223 + $0x5c] sm:$0xf] %v567
      %600 = vst [vmem:[%s223 + $0x60] sm:$0xf] %v568
      %601 = vst [vmem:[%s223 + $0x64] sm:$0xf] %v569
      %602 = vst [vmem:[%s223 + $0x68] sm:$0xf] %v570
      %603 = vst [vmem:[%s223 + $0x6c] sm:$0xf] %v571
      %604 = vst [vmem:[%s223 + $0x70] sm:$0xf] %v572
      %605 = vst [vmem:[%s223 + $0x74] sm:$0xf] %v573
      %606 = vst [vmem:[%s223 + $0x78] sm:$0xf] %v574
      %607 = vst [vmem:[%s223 + $0x7c] sm:$0xf] %v575
      %s608 = smul.u32 32, %s18
      %p609 = scmp.lt.s32.totalorder %s608, 63
      %s610 = scalar_select %p609, %s608, 63
      %p611 = scmp.lt.s32.totalorder %s19, 0
      %s612 = scalar_select %p611, %s19, 0
      %s613 = sadd.s32 %s612, %s610
      %s614 = smul.addr %s613, 4
      %s615 = scalar_lea.vmem %s3, %s614
      // Predicated region
      $region33: #{_lambda_.4} parent=31 // pred_check
        %p616 = pneg %p124
      $region34: #{_lambda_.4} parent=31 // pred_check_branch
        %618 = sbr.rel (%p616) target = $region36
      $region35: #{_lambda_.4} parent=31 // pred_region
        %s619 = smul.u32 32, %s18
      $region36: #{_lambda_.4} parent=31 // pred_fallthru
        _
    $region32: #{_lambda_.4} parent=5 // pred_fallthru
      _
    %p620 = scmp.le.s32.totalorder 2, %s9
    // Predicated region
    $region37: #{_lambda_.4} parent=5 // pred_check
      %p621 = pneg %p620
    $region38: #{_lambda_.4} parent=5 // pred_check_branch
      %623 = sbr.rel (%p621) target = $region40
    $region39: #{_lambda_.4} parent=5 // pred_region
      %s624 = ssub.s32 %s9, 2
      // Predicated region
      $region41: #{_lambda_.4} parent=39 // pred_check
        %p625 = pneg %p130
      $region42: #{_lambda_.4} parent=39 // pred_check_branch
        %627 = sbr.rel (%p625) target = $region44
      $region43: #{_lambda_.4} parent=39 // pred_region
        %s628 = smul.u32 32, %s20
        %p629 = scmp.lt.s32.totalorder %s628, 63
        %s630 = scalar_select %p629, %s628, 63
        %p631 = scmp.lt.s32.totalorder %s21, 0
        %s632 = scalar_select %p631, %s21, 0
        %s633 = sadd.s32 %s632, %s630
        %s634 = smul.addr %s633, 4
        %s635 = scalar_lea.vmem %s3, %s634
      $region44: #{_lambda_.4} parent=39 // pred_fallthru
        _
    $region40: #{_lambda_.4} parent=5 // pred_fallthru
      _
  $region6: #{_lambda_.4} parent=0 // loop_footer
    %s13 = sadd.s32 1, %s9
  $region7: #{_lambda_.4} parent=0 // loop_footer_branch
    %8 = sbr.rel target = $region3
  $region8: #{_lambda_.4} parent=0 // loop_exit
    _

// kernel: _lambda_.7
$region0: #{_lambda_.7}
  #allocation0 [shape = 'u32[]', space=smem, size = 0x4, offset = 0x4, fixed_abs, tag = 'smem constant byte address 0x4 - core index']
  #allocation1 [shape = 'u32[72,128]{1,0:T(1,128)}', space=vmem, size = 0x9000, scoped, tag = 'internal scratch']
  %s0 = inlined_call_operand.vmem [shape: bf16[512,128], index: 0, kind: input, shape index: {}]
  %s1 = inlined_call_operand.vmem [shape: bf16[128,128], index: 1, kind: input, shape index: {}]
  %s2 = inlined_call_operand.vmem [shape: f32[1,128], index: 2, kind: input, shape index: {}]
  %s3 = inlined_call_operand.vmem [shape: bf16[512,128], index: 3, kind: input, shape index: {}]
  %s4 = inlined_call_operand.vmem [shape: bf16[512,128], index: 4, kind: output, shape index: {}]
  %s5 = sld [smem:[#allocation0]]
  $region49: #{_lambda_.7} parent=0
    _
  %s7 = ssub.s32 1, %s5
  %s8 = scalar_select 0, %s7, %s5
  loop: start=0, step=1, limit=4
  $region2: #{_lambda_.7} parent=0 // loop_pre_header
    _
  $region3: #{_lambda_.7} parent=0 // loop_header
    %s10 = sphi 0, %s14
    %p11 = scmp.ge.s32.totalorder %s10, 4
    %s17 = sphi 0, %s29
    %s18 = sphi 0, %s25
    %s19 = sphi 0, %s17
    %s20 = sphi 0, %s18
    %s21 = sphi 0, %s19
    %s22 = sphi 0, %s20
    %s32 = sphi 0, %s34
    %s35 = sphi 0, %s32
    %s36 = sphi 0, %s35
    %s52 = sphi 0, %s36
    %s58 = sphi 0, %s60
    %s61 = sphi 0, %s58
    %s62 = sphi 0, %s61
    %s78 = sphi 0, %s62
    %s84 = sphi 0, %s86
    %s87 = sphi 0, %s84
    %s88 = sphi 0, %s87
    %s104 = sphi 0, %s88
    %s112 = sphi 0, %s114
    %s115 = sphi 0, %s112
    %s116 = sphi 0, %s115
    %s132 = sphi 0, %s116
    %s140 = sphi 0, %s142
    %s143 = sphi 0, %s140
    %s144 = sphi 0, %s143
    %s160 = sphi 0, %s144
  $region4: #{_lambda_.7} parent=0 // loop_header_branch
    %13 = sbr.rel (%p11) target = $region8
  $region5: #{_lambda_.7} parent=0 // loop_body
    %s15 = ssub.s32 %s10, 1
    %s16 = ssub.s32 %s10, 2
    %s23 = sadd.s32 1, %s18
    %p24 = scmp.ge.s32.totalorder %s23, 1
    %s25 = scalar_select %p24, 0, %s23
    %s26 = sadd.s32 1, %s17
    %s27 = scalar_select %p24, %s26, %s17
    %p28 = scmp.ge.s32.totalorder %s27, 2
    %s29 = scalar_select %p28, 0, %s27
    %s30 = ssub.s32 %s17, %s29
    %p31 = scmp.eq.s32.totalorder %s30, 0
    %s33 = sadd.s32 %s32, 1
    %s34 = scalar_select %p31, %s32, %s33
    %p37 = pneg %p31
    %p38 = scmp.eq.s32.totalorder %s10, 1
    %p39 = por %p37, %p38
    %p40 = scmp.ne.s32.totalorder %s32, %s35
    %p41 = scmp.eq.s32.totalorder %s10, 0
    %p42 = por %p40, %p41
    %p43 = scmp.ne.s32.totalorder %s32, %s35
    %p44 = scmp.eq.s32.totalorder %s15, 1
    %p45 = por %p43, %p44
    %p46 = scmp.ne.s32.totalorder %s35, %s36
    %p47 = scmp.eq.s32.totalorder %s15, 0
    %p48 = por %p46, %p47
    %p49 = scmp.ne.s32.totalorder %s35, %s36
    %p50 = scmp.eq.s32.totalorder %s16, 1
    %p51 = por %p49, %p50
    %p53 = scmp.ne.s32.totalorder %s36, %s52
    %p54 = scmp.eq.s32.totalorder %s16, 0
    %p55 = por %p53, %p54
    %s56 = ssub.s32 %s18, %s25
    %p57 = scmp.eq.s32.totalorder %s56, 0
    %s59 = sadd.s32 %s58, 1
    %s60 = scalar_select %p57, %s58, %s59
    %p63 = pneg %p57
    %p64 = scmp.eq.s32.totalorder %s10, 1
    %p65 = por %p63, %p64
    %p66 = scmp.ne.s32.totalorder %s58, %s61
    %p67 = scmp.eq.s32.totalorder %s10, 0
    %p68 = por %p66, %p67
    %p69 = scmp.ne.s32.totalorder %s58, %s61
    %p70 = scmp.eq.s32.totalorder %s15, 1
    %p71 = por %p69, %p70
    %p72 = scmp.ne.s32.totalorder %s61, %s62
    %p73 = scmp.eq.s32.totalorder %s15, 0
    %p74 = por %p72, %p73
    %p75 = scmp.ne.s32.totalorder %s61, %s62
    %p76 = scmp.eq.s32.totalorder %s16, 1
    %p77 = por %p75, %p76
    %p79 = scmp.ne.s32.totalorder %s62, %s78
    %p80 = scmp.eq.s32.totalorder %s16, 0
    %p81 = por %p79, %p80
    %s82 = ssub.s32 %s18, %s25
    %p83 = scmp.eq.s32.totalorder %s82, 0
    %s85 = sadd.s32 %s84, 1
    %s86 = scalar_select %p83, %s84, %s85
    %p89 = pneg %p83
    %p90 = scmp.eq.s32.totalorder %s10, 1
    %p91 = por %p89, %p90
    %p92 = scmp.ne.s32.totalorder %s84, %s87
    %p93 = scmp.eq.s32.totalorder %s10, 0
    %p94 = por %p92, %p93
    %p95 = scmp.ne.s32.totalorder %s84, %s87
    %p96 = scmp.eq.s32.totalorder %s15, 1
    %p97 = por %p95, %p96
    %p98 = scmp.ne.s32.totalorder %s87, %s88
    %p99 = scmp.eq.s32.totalorder %s15, 0
    %p100 = por %p98, %p99
    %p101 = scmp.ne.s32.totalorder %s87, %s88
    %p102 = scmp.eq.s32.totalorder %s16, 1
    %p103 = por %p101, %p102
    %p105 = scmp.ne.s32.totalorder %s88, %s104
    %p106 = scmp.eq.s32.totalorder %s16, 0
    %p107 = por %p105, %p106
    %s108 = ssub.s32 %s17, %s29
    %s109 = ssub.s32 %s18, %s25
    %s110 = sor.u32 %s108, %s109
    %p111 = scmp.eq.s32.totalorder %s110, 0
    %s113 = sadd.s32 %s112, 1
    %s114 = scalar_select %p111, %s112, %s113
    %p117 = pneg %p111
    %p118 = scmp.eq.s32.totalorder %s10, 1
    %p119 = por %p117, %p118
    %p120 = scmp.ne.s32.totalorder %s112, %s115
    %p121 = scmp.eq.s32.totalorder %s10, 0
    %p122 = por %p120, %p121
    %p123 = scmp.ne.s32.totalorder %s112, %s115
    %p124 = scmp.eq.s32.totalorder %s15, 1
    %p125 = por %p123, %p124
    %p126 = scmp.ne.s32.totalorder %s115, %s116
    %p127 = scmp.eq.s32.totalorder %s15, 0
    %p128 = por %p126, %p127
    %p129 = scmp.ne.s32.totalorder %s115, %s116
    %p130 = scmp.eq.s32.totalorder %s16, 1
    %p131 = por %p129, %p130
    %p133 = scmp.ne.s32.totalorder %s116, %s132
    %p134 = scmp.eq.s32.totalorder %s16, 0
    %p135 = por %p133, %p134
    %s136 = ssub.s32 %s17, %s29
    %s137 = ssub.s32 %s18, %s25
    %s138 = sor.u32 %s136, %s137
    %p139 = scmp.eq.s32.totalorder %s138, 0
    %s141 = sadd.s32 %s140, 1
    %s142 = scalar_select %p139, %s140, %s141
    %p145 = pneg %p139
    %p146 = scmp.eq.s32.totalorder %s10, 1
    %p147 = por %p145, %p146
    %p148 = scmp.ne.s32.totalorder %s140, %s143
    %p149 = scmp.eq.s32.totalorder %s10, 0
    %p150 = por %p148, %p149
    %p151 = scmp.ne.s32.totalorder %s140, %s143
    %p152 = scmp.eq.s32.totalorder %s15, 1
    %p153 = por %p151, %p152
    %p154 = scmp.ne.s32.totalorder %s143, %s144
    %p155 = scmp.eq.s32.totalorder %s15, 0
    %p156 = por %p154, %p155
    %p157 = scmp.ne.s32.totalorder %s143, %s144
    %p158 = scmp.eq.s32.totalorder %s16, 1
    %p159 = por %p157, %p158
    %p161 = scmp.ne.s32.totalorder %s144, %s160
    %p162 = scmp.eq.s32.totalorder %s16, 0
    %p163 = por %p161, %p162
    %p164 = scmp.le.s32.totalorder 1, %s10
    %p165 = scmp.lt.s32.totalorder %s10, 3
    %p166 = pnand %p164, %p165
    %p167 = pneg %p166
    // Predicated region
    $region9: #{_lambda_.7} parent=5 // pred_check
      _
    $region10: #{_lambda_.7} parent=5 // pred_check_branch
      %169 = sbr.rel (%p166) target = $region12
    $region11: #{_lambda_.7} parent=5 // pred_region
      %s170 = ssub.s32 %s10, 1
      // Predicated region
      $region13: #{_lambda_.7} parent=11 // pred_check
        %p171 = pneg %p74
      $region14: #{_lambda_.7} parent=11 // pred_check_branch
        %173 = sbr.rel (%p171) target = $region16
      $region15: #{_lambda_.7} parent=11 // pred_region
        %p174 = scmp.lt.s32.totalorder %s20, 0
        %s175 = scalar_select %p174, %s20, 0
        %s176 = smul.addr %s175, 4
        %s177 = scalar_lea.vmem %s1, %s176
      $region16: #{_lambda_.7} parent=11 // pred_fallthru
        _
      // Predicated region
      $region17: #{_lambda_.7} parent=11 // pred_check
        %p178 = pneg %p100
      $region18: #{_lambda_.7} parent=11 // pred_check_branch
        %180 = sbr.rel (%p178) target = $region20
      $region19: #{_lambda_.7} parent=11 // pred_region
        %p181 = scmp.lt.s32.totalorder %s20, 0
        %s182 = scalar_select %p181, %s20, 0
        %s183 = scalar_lea.vmem %s2, %s182
      $region20: #{_lambda_.7} parent=11 // pred_fallthru
        _
    $region12: #{_lambda_.7} parent=5 // pred_fallthru
      _
    %p184 = scmp.lt.s32.totalorder %s10, 2
    // Predicated region
    $region21: #{_lambda_.7} parent=5 // pred_check
      %p185 = pneg %p184
    $region22: #{_lambda_.7} parent=5 // pred_check_branch
      %187 = sbr.rel (%p185) target = $region24
    $region23: #{_lambda_.7} parent=5 // pred_region
      // Predicated region
      $region25: #{_lambda_.7} parent=23 // pred_check
        %p188 = pneg %p42
      $region26: #{_lambda_.7} parent=23 // pred_check_branch
        %190 = sbr.rel (%p188) target = $region28
      $region27: #{_lambda_.7} parent=23 // pred_region
        %s191 = smul.u32 32, %s17
        %p192 = scmp.lt.s32.totalorder %s191, 63
        %s193 = scalar_select %p192, %s191, 63
        %s194 = smul.addr %s193, 4
        %s195 = scalar_lea.vmem %s0, %s194
        %s196 = smul.u32 32, %s17
      $region28: #{_lambda_.7} parent=23 // pred_fallthru
        _
      // Predicated region
      $region29: #{_lambda_.7} parent=23 // pred_check
        %p197 = pneg %p122
      $region30: #{_lambda_.7} parent=23 // pred_check_branch
        %199 = sbr.rel (%p197) target = $region32
      $region31: #{_lambda_.7} parent=23 // pred_region
        %s200 = smul.u32 32, %s17
        %p201 = scmp.lt.s32.totalorder %s200, 63
        %s202 = scalar_select %p201, %s200, 63
        %p203 = scmp.lt.s32.totalorder %s18, 0
        %s204 = scalar_select %p203, %s18, 0
        %s205 = sadd.s32 %s204, %s202
        %s206 = smul.addr %s205, 4
        %s207 = scalar_lea.vmem %s3, %s206
        %s208 = smul.u32 32, %s17
      $region32: #{_lambda_.7} parent=23 // pred_fallthru
        _
    $region24: #{_lambda_.7} parent=5 // pred_fallthru
      _
    %p209 = scmp.le.s32.totalorder 1, %s10
    %p210 = scmp.lt.s32.totalorder %s10, 3
    %p211 = pnand %p209, %p210
    %p212 = pneg %p211
    // Predicated region
    $region33: #{_lambda_.7} parent=5 // pred_check
      _
    $region34: #{_lambda_.7} parent=5 // pred_check_branch
      %214 = sbr.rel (%p211) target = $region36
    $region35: #{_lambda_.7} parent=5 // pred_region
      %s215 = ssub.s32 %s10, 1
      %s216 = smul.u32 32, %s19
      %p217 = scmp.lt.s32.totalorder %s216, 63
      %s218 = scalar_select %p217, %s216, 63
      %s219 = smul.addr %s218, 4
      %s220 = scalar_lea.vmem %s0, %s219
      %p221 = pneg %p48
      %p222 = pneg %p45
      %p223 = scmp.lt.s32.totalorder %s20, 0
      %s224 = scalar_select %p223, %s20, 0
      %s225 = smul.addr %s224, 4
      %s226 = scalar_lea.vmem %s1, %s225
      %p227 = pneg %p74
      %p228 = pneg %p71
      %p229 = scmp.lt.s32.totalorder %s20, 0
      %s230 = scalar_select %p229, %s20, 0
      %s231 = scalar_lea.vmem %s2, %s230
      %p232 = pneg %p100
      %p233 = pneg %p97
      %s234 = smul.u32 32, %s19
      %p235 = scmp.lt.s32.totalorder %s234, 63
      %s236 = scalar_select %p235, %s234, 63
      %p237 = scmp.lt.s32.totalorder %s20, 0
      %s238 = scalar_select %p237, %s20, 0
      %s239 = sadd.s32 %s238, %s236
      %s240 = smul.addr %s239, 4
      %s241 = scalar_lea.vmem %s3, %s240
      %p242 = pneg %p128
      %p243 = pneg %p125
      %p244 = pneg %p156
      %p245 = pneg %p153
      %s246 = smul.u32 32, %s19
      %p247 = scmp.lt.s32.totalorder %s246, 63
      %s248 = scalar_select %p247, %s246, 63
      %p249 = scmp.lt.s32.totalorder %s20, 0
      %s250 = scalar_select %p249, %s20, 0
      %s251 = sadd.s32 %s250, %s248
      %s252 = smul.addr %s251, 4
      %s253 = scalar_lea.vmem %s4, %s252
      %s254 = smul.u32 32, %s19
      %p255 = scmp.lt.s32.totalorder %s254, 63
      %s256 = scalar_select %p255, %s254, 63
      %s257 = smul.addr %s256, 4
      %s258 = scalar_lea.vmem %s0, %s257
      %s259 = smul.u32 32, %s19
      %p260 = scmp.lt.s32.totalorder %s20, 0
      %s261 = scalar_select %p260, %s20, 0
      %s262 = smul.addr %s261, 4
      %s263 = scalar_lea.vmem %s1, %s262
      %p264 = scmp.lt.s32.totalorder %s20, 0
      %s265 = scalar_select %p264, %s20, 0
      %s266 = scalar_lea.vmem %s2, %s265
      %s267 = smul.u32 32, %s19
      %p268 = scmp.lt.s32.totalorder %s267, 63
      %s269 = scalar_select %p268, %s267, 63
      %p270 = scmp.lt.s32.totalorder %s20, 0
      %s271 = scalar_select %p270, %s20, 0
      %s272 = sadd.s32 %s271, %s269
      %s273 = smul.addr %s272, 4
      %s274 = scalar_lea.vmem %s3, %s273
      %s275 = smul.u32 32, %s19
      %s276 = smul.u32 32, %s19
      %p277 = scmp.lt.s32.totalorder %s276, 63
      %s278 = scalar_select %p277, %s276, 63
      %p279 = scmp.lt.s32.totalorder %s20, 0
      %s280 = scalar_select %p279, %s20, 0
      %s281 = sadd.s32 %s280, %s278
      %s282 = smul.addr %s281, 4
      %s283 = scalar_lea.vmem %s4, %s282
      %s284 = smul.u32 32, %s19
      %v285 = vld [vmem:[%s258] sm:$0xf]
      %v286 = vld [vmem:[%s258 + $0x4] sm:$0xf]
      %v287 = vld [vmem:[%s258 + $0x8] sm:$0xf]
      %v288 = vld [vmem:[%s258 + $0xc] sm:$0xf]
      %v289 = vld [vmem:[%s258 + $0x10] sm:$0xf]
      %v290 = vld [vmem:[%s258 + $0x14] sm:$0xf]
      %v291 = vld [vmem:[%s258 + $0x18] sm:$0xf]
      %v292 = vld [vmem:[%s258 + $0x1c] sm:$0xf]
      %v293 = vld [vmem:[%s258 + $0x20] sm:$0xf]
      %v294 = vld [vmem:[%s258 + $0x24] sm:$0xf]
      %v295 = vld [vmem:[%s258 + $0x28] sm:$0xf]
      %v296 = vld [vmem:[%s258 + $0x2c] sm:$0xf]
      %v297 = vld [vmem:[%s258 + $0x30] sm:$0xf]
      %v298 = vld [vmem:[%s258 + $0x34] sm:$0xf]
      %v299 = vld [vmem:[%s258 + $0x38] sm:$0xf]
      %v300 = vld [vmem:[%s258 + $0x3c] sm:$0xf]
      %v301 = vld [vmem:[%s258 + $0x40] sm:$0xf]
      %v302 = vld [vmem:[%s258 + $0x44] sm:$0xf]
      %v303 = vld [vmem:[%s258 + $0x48] sm:$0xf]
      %v304 = vld [vmem:[%s258 + $0x4c] sm:$0xf]
      %v305 = vld [vmem:[%s258 + $0x50] sm:$0xf]
      %v306 = vld [vmem:[%s258 + $0x54] sm:$0xf]
      %v307 = vld [vmem:[%s258 + $0x58] sm:$0xf]
      %v308 = vld [vmem:[%s258 + $0x5c] sm:$0xf]
      %v309 = vld [vmem:[%s258 + $0x60] sm:$0xf]
      %v310 = vld [vmem:[%s258 + $0x64] sm:$0xf]
      %v311 = vld [vmem:[%s258 + $0x68] sm:$0xf]
      %v312 = vld [vmem:[%s258 + $0x6c] sm:$0xf]
      %v313 = vld [vmem:[%s258 + $0x70] sm:$0xf]
      %v314 = vld [vmem:[%s258 + $0x74] sm:$0xf]
      %v315 = vld [vmem:[%s258 + $0x78] sm:$0xf]
      %v316 = vld [vmem:[%s258 + $0x7c] sm:$0xf]
      %v317 = vld [vmem:[%s263] sm:$0xf]
      %v318 = vld [vmem:[%s263 + $0x4] sm:$0xf]
      %v319 = vld [vmem:[%s263 + $0x8] sm:$0xf]
      %v320 = vld [vmem:[%s263 + $0xc] sm:$0xf]
      %v321 = vld [vmem:[%s263 + $0x10] sm:$0xf]
      %v322 = vld [vmem:[%s263 + $0x14] sm:$0xf]
      %v323 = vld [vmem:[%s263 + $0x18] sm:$0xf]
      %v324 = vld [vmem:[%s263 + $0x1c] sm:$0xf]
      %v325 = vld [vmem:[%s263 + $0x20] sm:$0xf]
      %v326 = vld [vmem:[%s263 + $0x24] sm:$0xf]
      %v327 = vld [vmem:[%s263 + $0x28] sm:$0xf]
      %v328 = vld [vmem:[%s263 + $0x2c] sm:$0xf]
      %v329 = vld [vmem:[%s263 + $0x30] sm:$0xf]
      %v330 = vld [vmem:[%s263 + $0x34] sm:$0xf]
      %v331 = vld [vmem:[%s263 + $0x38] sm:$0xf]
      %v332 = vld [vmem:[%s263 + $0x3c] sm:$0xf]
      %v333 = vld [vmem:[%s266] sm:$0x1]
      %v335 = vperm.slane %v333, 0
      %v369 = vunpack.c.l.b16 %v285
      %v370 = vunpack.c.l.b16 %v286
      %v371 = vunpack.c.l.b16 %v287
      %v372 = vunpack.c.l.b16 %v288
      %v373 = vunpack.c.l.b16 %v289
      %v374 = vunpack.c.l.b16 %v290
      %v375 = vunpack.c.l.b16 %v291
      %v376 = vunpack.c.l.b16 %v292
      %v377 = vunpack.c.l.b16 %v293
      %v378 = vunpack.c.l.b16 %v294
      %v379 = vunpack.c.l.b16 %v295
      %v380 = vunpack.c.l.b16 %v296
      %v381 = vunpack.c.l.b16 %v297
      %v382 = vunpack.c.l.b16 %v298
      %v383 = vunpack.c.l.b16 %v299
      %v384 = vunpack.c.l.b16 %v300
      %v385 = vunpack.c.l.b16 %v301
      %v386 = vunpack.c.l.b16 %v302
      %v387 = vunpack.c.l.b16 %v303
      %v388 = vunpack.c.l.b16 %v304
      %v389 = vunpack.c.l.b16 %v305
      %v390 = vunpack.c.l.b16 %v306
      %v391 = vunpack.c.l.b16 %v307
      %v392 = vunpack.c.l.b16 %v308
      %v393 = vunpack.c.l.b16 %v309
      %v394 = vunpack.c.l.b16 %v310
      %v395 = vunpack.c.l.b16 %v311
      %v396 = vunpack.c.l.b16 %v312
      %v397 = vunpack.c.l.b16 %v313
      %v398 = vunpack.c.l.b16 %v314
      %v399 = vunpack.c.l.b16 %v315
      %v400 = vunpack.c.l.b16 %v316
      %v401 = vpack.c.b16 %v370, %v369
      %v402 = vpack.c.b16 %v372, %v371
      %v403 = vpack.c.b16 %v374, %v373
      %v404 = vpack.c.b16 %v376, %v375
      %v405 = vpack.c.b16 %v378, %v377
      %v406 = vpack.c.b16 %v380, %v379
      %v407 = vpack.c.b16 %v382, %v381
      %v408 = vpack.c.b16 %v384, %v383
      %v409 = vpack.c.b16 %v386, %v385
      %v410 = vpack.c.b16 %v388, %v387
      %v411 = vpack.c.b16 %v390, %v389
      %v412 = vpack.c.b16 %v392, %v391
      %v413 = vpack.c.b16 %v394, %v393
      %v414 = vpack.c.b16 %v396, %v395
      %v415 = vpack.c.b16 %v398, %v397
      %v416 = vpack.c.b16 %v400, %v399
      %v449 = vunpack.c.l.b16 %v317
      %v450 = vunpack.c.l.b16 %v318
      %v451 = vunpack.c.l.b16 %v319
      %v452 = vunpack.c.l.b16 %v320
      %v453 = vunpack.c.l.b16 %v321
      %v454 = vunpack.c.l.b16 %v322
      %v455 = vunpack.c.l.b16 %v323
      %v456 = vunpack.c.l.b16 %v324
      %v457 = vunpack.c.l.b16 %v325
      %v458 = vunpack.c.l.b16 %v326
      %v459 = vunpack.c.l.b16 %v327
      %v460 = vunpack.c.l.b16 %v328
      %v461 = vunpack.c.l.b16 %v329
      %v462 = vunpack.c.l.b16 %v330
      %v463 = vunpack.c.l.b16 %v331
      %v464 = vunpack.c.l.b16 %v332
      %v465 = vpack.c.b16 %v450, %v449
      %v466 = vpack.c.b16 %v452, %v451
      %v467 = vpack.c.b16 %v454, %v453
      %v468 = vpack.c.b16 %v456, %v455
      %v469 = vpack.c.b16 %v458, %v457
      %v470 = vpack.c.b16 %v460, %v459
      %v471 = vpack.c.b16 %v462, %v461
      %v472 = vpack.c.b16 %v464, %v463
      %481 = vmatpush.bf16.msra.mxu0 %v472
      %482 = vmatpush.bf16.msra.mxu0 %v471
      %483 = vmatpush.bf16.msra.mxu0 %v470
      %484 = vmatpush.bf16.msra.mxu0 %v469
      %485 = vmatpush.bf16.msra.mxu0 %v468
      %486 = vmatpush.bf16.msra.mxu0 %v467
      %487 = vmatpush.bf16.msra.mxu0 %v466
      %488 = vmatpush.bf16.msra.mxu0 %v465
      %489 = vmatmul.bf16.gmra.mxu0 %v401
      %v490 = vpop.f32.mrf.mxu0
      %v491 = vadd.f32 %v335, %v490
      %v492 = vpop.f32.mrf.mxu0
      %v493 = vadd.f32 %v335, %v492
      %494 = vmatmul.bf16.gmra.mxu0 %v402
      %v495 = vpop.f32.mrf.mxu0
      %v496 = vadd.f32 %v335, %v495
      %v497 = vpop.f32.mrf.mxu0
      %v498 = vadd.f32 %v335, %v497
      %499 = vmatmul.bf16.gmra.mxu0 %v403
      %v500 = vpop.f32.mrf.mxu0
      %v501 = vadd.f32 %v335, %v500
      %v502 = vpop.f32.mrf.mxu0
      %v503 = vadd.f32 %v335, %v502
      %504 = vmatmul.bf16.gmra.mxu0 %v404
      %v505 = vpop.f32.mrf.mxu0
      %v506 = vadd.f32 %v335, %v505
      %v507 = vpop.f32.mrf.mxu0
      %v508 = vadd.f32 %v335, %v507
      %509 = vmatmul.bf16.gmra.mxu0 %v405
      %v510 = vpop.f32.mrf.mxu0
      %v511 = vadd.f32 %v335, %v510
      %v512 = vpop.f32.mrf.mxu0
      %v513 = vadd.f32 %v335, %v512
      %514 = vmatmul.bf16.gmra.mxu0 %v406
      %v515 = vpop.f32.mrf.mxu0
      %v516 = vadd.f32 %v335, %v515
      %v517 = vpop.f32.mrf.mxu0
      %v518 = vadd.f32 %v335, %v517
      %519 = vmatmul.bf16.gmra.mxu0 %v407
      %v520 = vpop.f32.mrf.mxu0
      %v521 = vadd.f32 %v335, %v520
      %v522 = vpop.f32.mrf.mxu0
      %v523 = vadd.f32 %v335, %v522
      %524 = vmatmul.bf16.gmra.mxu0 %v408
      %v525 = vpop.f32.mrf.mxu0
      %v526 = vadd.f32 %v335, %v525
      %v527 = vpop.f32.mrf.mxu0
      %v528 = vadd.f32 %v335, %v527
      %529 = vmatmul.bf16.gmra.mxu0 %v409
      %v530 = vpop.f32.mrf.mxu0
      %v531 = vadd.f32 %v335, %v530
      %v532 = vpop.f32.mrf.mxu0
      %v533 = vadd.f32 %v335, %v532
      %534 = vmatmul.bf16.gmra.mxu0 %v410
      %v535 = vpop.f32.mrf.mxu0
      %v536 = vadd.f32 %v335, %v535
      %v537 = vpop.f32.mrf.mxu0
      %v538 = vadd.f32 %v335, %v537
      %539 = vmatmul.bf16.gmra.mxu0 %v411
      %v540 = vpop.f32.mrf.mxu0
      %v541 = vadd.f32 %v335, %v540
      %v542 = vpop.f32.mrf.mxu0
      %v543 = vadd.f32 %v335, %v542
      %544 = vmatmul.bf16.gmra.mxu0 %v412
      %v545 = vpop.f32.mrf.mxu0
      %v546 = vadd.f32 %v335, %v545
      %v547 = vpop.f32.mrf.mxu0
      %v548 = vadd.f32 %v335, %v547
      %549 = vmatmul.bf16.gmra.mxu0 %v413
      %v550 = vpop.f32.mrf.mxu0
      %v551 = vadd.f32 %v335, %v550
      %v552 = vpop.f32.mrf.mxu0
      %v553 = vadd.f32 %v335, %v552
      %554 = vmatmul.bf16.gmra.mxu0 %v414
      %v555 = vpop.f32.mrf.mxu0
      %v556 = vadd.f32 %v335, %v555
      %v557 = vpop.f32.mrf.mxu0
      %v558 = vadd.f32 %v335, %v557
      %559 = vmatmul.bf16.gmra.mxu0 %v415
      %v560 = vpop.f32.mrf.mxu0
      %v561 = vadd.f32 %v335, %v560
      %v562 = vpop.f32.mrf.mxu0
      %v563 = vadd.f32 %v335, %v562
      %564 = vmatmul.bf16.gmra.mxu0 %v416
      %v565 = vpop.f32.mrf.mxu0
      %v566 = vadd.f32 %v335, %v565
      %v567 = vpop.f32.mrf.mxu0
      %v568 = vadd.f32 %v335, %v567
      %569 = vdwg.mxu0
      %v570 = vld [vmem:[%s274] sm:$0xf]
      %v571 = vld [vmem:[%s274 + $0x4] sm:$0xf]
      %v572 = vld [vmem:[%s274 + $0x8] sm:$0xf]
      %v573 = vld [vmem:[%s274 + $0xc] sm:$0xf]
      %v574 = vld [vmem:[%s274 + $0x10] sm:$0xf]
      %v575 = vld [vmem:[%s274 + $0x14] sm:$0xf]
      %v576 = vld [vmem:[%s274 + $0x18] sm:$0xf]
      %v577 = vld [vmem:[%s274 + $0x1c] sm:$0xf]
      %v578 = vld [vmem:[%s274 + $0x20] sm:$0xf]
      %v579 = vld [vmem:[%s274 + $0x24] sm:$0xf]
      %v580 = vld [vmem:[%s274 + $0x28] sm:$0xf]
      %v581 = vld [vmem:[%s274 + $0x2c] sm:$0xf]
      %v582 = vld [vmem:[%s274 + $0x30] sm:$0xf]
      %v583 = vld [vmem:[%s274 + $0x34] sm:$0xf]
      %v584 = vld [vmem:[%s274 + $0x38] sm:$0xf]
      %v585 = vld [vmem:[%s274 + $0x3c] sm:$0xf]
      %v586 = vld [vmem:[%s274 + $0x40] sm:$0xf]
      %v587 = vld [vmem:[%s274 + $0x44] sm:$0xf]
      %v588 = vld [vmem:[%s274 + $0x48] sm:$0xf]
      %v589 = vld [vmem:[%s274 + $0x4c] sm:$0xf]
      %v590 = vld [vmem:[%s274 + $0x50] sm:$0xf]
      %v591 = vld [vmem:[%s274 + $0x54] sm:$0xf]
      %v592 = vld [vmem:[%s274 + $0x58] sm:$0xf]
      %v593 = vld [vmem:[%s274 + $0x5c] sm:$0xf]
      %v594 = vld [vmem:[%s274 + $0x60] sm:$0xf]
      %v595 = vld [vmem:[%s274 + $0x64] sm:$0xf]
      %v596 = vld [vmem:[%s274 + $0x68] sm:$0xf]
      %v597 = vld [vmem:[%s274 + $0x6c] sm:$0xf]
      %v598 = vld [vmem:[%s274 + $0x70] sm:$0xf]
      %v599 = vld [vmem:[%s274 + $0x74] sm:$0xf]
      %v600 = vld [vmem:[%s274 + $0x78] sm:$0xf]
      %v601 = vld [vmem:[%s274 + $0x7c] sm:$0xf]
      %v602 = vunpack.c.l.bf16 %v570
      %v603 = vunpack.c.l.bf16 %v571
      %v604 = vunpack.c.l.bf16 %v572
      %v605 = vunpack.c.l.bf16 %v573
      %v606 = vunpack.c.l.bf16 %v574
      %v607 = vunpack.c.l.bf16 %v575
      %v608 = vunpack.c.l.bf16 %v576
      %v609 = vunpack.c.l.bf16 %v577
      %v610 = vunpack.c.l.bf16 %v578
      %v611 = vunpack.c.l.bf16 %v579
      %v612 = vunpack.c.l.bf16 %v580
      %v613 = vunpack.c.l.bf16 %v581
      %v614 = vunpack.c.l.bf16 %v582
      %v615 = vunpack.c.l.bf16 %v583
      %v616 = vunpack.c.l.bf16 %v584
      %v617 = vunpack.c.l.bf16 %v585
      %v618 = vunpack.c.l.bf16 %v586
      %v619 = vunpack.c.l.bf16 %v587
      %v620 = vunpack.c.l.bf16 %v588
      %v621 = vunpack.c.l.bf16 %v589
      %v622 = vunpack.c.l.bf16 %v590
      %v623 = vunpack.c.l.bf16 %v591
      %v624 = vunpack.c.l.bf16 %v592
      %v625 = vunpack.c.l.bf16 %v593
      %v626 = vunpack.c.l.bf16 %v594
      %v627 = vunpack.c.l.bf16 %v595
      %v628 = vunpack.c.l.bf16 %v596
      %v629 = vunpack.c.l.bf16 %v597
      %v630 = vunpack.c.l.bf16 %v598
      %v631 = vunpack.c.l.bf16 %v599
      %v632 = vunpack.c.l.bf16 %v600
      %v633 = vunpack.c.l.bf16 %v601
      %v634 = vadd.f32 %v491, %v602
      %v635 = vadd.f32 %v493, %v603
      %v636 = vadd.f32 %v496, %v604
      %v637 = vadd.f32 %v498, %v605
      %v638 = vadd.f32 %v501, %v606
      %v639 = vadd.f32 %v503, %v607
      %v640 = vadd.f32 %v506, %v608
      %v641 = vadd.f32 %v508, %v609
      %v642 = vadd.f32 %v511, %v610
      %v643 = vadd.f32 %v513, %v611
      %v644 = vadd.f32 %v516, %v612
      %v645 = vadd.f32 %v518, %v613
      %v646 = vadd.f32 %v521, %v614
      %v647 = vadd.f32 %v523, %v615
      %v648 = vadd.f32 %v526, %v616
      %v649 = vadd.f32 %v528, %v617
      %v650 = vadd.f32 %v531, %v618
      %v651 = vadd.f32 %v533, %v619
      %v652 = vadd.f32 %v536, %v620
      %v653 = vadd.f32 %v538, %v621
      %v654 = vadd.f32 %v541, %v622
      %v655 = vadd.f32 %v543, %v623
      %v656 = vadd.f32 %v546, %v624
      %v657 = vadd.f32 %v548, %v625
      %v658 = vadd.f32 %v551, %v626
      %v659 = vadd.f32 %v553, %v627
      %v660 = vadd.f32 %v556, %v628
      %v661 = vadd.f32 %v558, %v629
      %v662 = vadd.f32 %v561, %v630
      %v663 = vadd.f32 %v563, %v631
      %v664 = vadd.f32 %v566, %v632
      %v665 = vadd.f32 %v568, %v633
      %v666 = vmax.f32 %v634, 0.0
      %v667 = vmax.f32 %v635, 0.0
      %v668 = vmax.f32 %v636, 0.0
      %v669 = vmax.f32 %v637, 0.0
      %v670 = vmax.f32 %v638, 0.0
      %v671 = vmax.f32 %v639, 0.0
      %v672 = vmax.f32 %v640, 0.0
      %v673 = vmax.f32 %v641, 0.0
      %v674 = vmax.f32 %v642, 0.0
      %v675 = vmax.f32 %v643, 0.0
      %v676 = vmax.f32 %v644, 0.0
      %v677 = vmax.f32 %v645, 0.0
      %v678 = vmax.f32 %v646, 0.0
      %v679 = vmax.f32 %v647, 0.0
      %v680 = vmax.f32 %v648, 0.0
      %v681 = vmax.f32 %v649, 0.0
      %v682 = vmax.f32 %v650, 0.0
      %v683 = vmax.f32 %v651, 0.0
      %v684 = vmax.f32 %v652, 0.0
      %v685 = vmax.f32 %v653, 0.0
      %v686 = vmax.f32 %v654, 0.0
      %v687 = vmax.f32 %v655, 0.0
      %v688 = vmax.f32 %v656, 0.0
      %v689 = vmax.f32 %v657, 0.0
      %v690 = vmax.f32 %v658, 0.0
      %v691 = vmax.f32 %v659, 0.0
      %v692 = vmax.f32 %v660, 0.0
      %v693 = vmax.f32 %v661, 0.0
      %v694 = vmax.f32 %v662, 0.0
      %v695 = vmax.f32 %v663, 0.0
      %v696 = vmax.f32 %v664, 0.0
      %v697 = vmax.f32 %v665, 0.0
      %v698 = vpack.c.bf16 %v666, %v666
      %v699 = vpack.c.bf16 %v667, %v667
      %v700 = vpack.c.bf16 %v668, %v668
      %v701 = vpack.c.bf16 %v669, %v669
      %v702 = vpack.c.bf16 %v670, %v670
      %v703 = vpack.c.bf16 %v671, %v671
      %v704 = vpack.c.bf16 %v672, %v672
      %v705 = vpack.c.bf16 %v673, %v673
      %v706 = vpack.c.bf16 %v674, %v674
      %v707 = vpack.c.bf16 %v675, %v675
      %v708 = vpack.c.bf16 %v676, %v676
      %v709 = vpack.c.bf16 %v677, %v677
      %v710 = vpack.c.bf16 %v678, %v678
      %v711 = vpack.c.bf16 %v679, %v679
      %v712 = vpack.c.bf16 %v680, %v680
      %v713 = vpack.c.bf16 %v681, %v681
      %v714 = vpack.c.bf16 %v682, %v682
      %v715 = vpack.c.bf16 %v683, %v683
      %v716 = vpack.c.bf16 %v684, %v684
      %v717 = vpack.c.bf16 %v685, %v685
      %v718 = vpack.c.bf16 %v686, %v686
      %v719 = vpack.c.bf16 %v687, %v687
      %v720 = vpack.c.bf16 %v688, %v688
      %v721 = vpack.c.bf16 %v689, %v689
      %v722 = vpack.c.bf16 %v690, %v690
      %v723 = vpack.c.bf16 %v691, %v691
      %v724 = vpack.c.bf16 %v692, %v692
      %v725 = vpack.c.bf16 %v693, %v693
      %v726 = vpack.c.bf16 %v694, %v694
      %v727 = vpack.c.bf16 %v695, %v695
      %v728 = vpack.c.bf16 %v696, %v696
      %v729 = vpack.c.bf16 %v697, %v697
      %730 = vst [vmem:[%s283] sm:$0xf] %v698
      %731 = vst [vmem:[%s283 + $0x4] sm:$0xf] %v699
      %732 = vst [vmem:[%s283 + $0x8] sm:$0xf] %v700
      %733 = vst [vmem:[%s283 + $0xc] sm:$0xf] %v701
      %734 = vst [vmem:[%s283 + $0x10] sm:$0xf] %v702
      %735 = vst [vmem:[%s283 + $0x14] sm:$0xf] %v703
      %736 = vst [vmem:[%s283 + $0x18] sm:$0xf] %v704
      %737 = vst [vmem:[%s283 + $0x1c] sm:$0xf] %v705
      %738 = vst [vmem:[%s283 + $0x20] sm:$0xf] %v706
      %739 = vst [vmem:[%s283 + $0x24] sm:$0xf] %v707
      %740 = vst [vmem:[%s283 + $0x28] sm:$0xf] %v708
      %741 = vst [vmem:[%s283 + $0x2c] sm:$0xf] %v709
      %742 = vst [vmem:[%s283 + $0x30] sm:$0xf] %v710
      %743 = vst [vmem:[%s283 + $0x34] sm:$0xf] %v711
      %744 = vst [vmem:[%s283 + $0x38] sm:$0xf] %v712
      %745 = vst [vmem:[%s283 + $0x3c] sm:$0xf] %v713
      %746 = vst [vmem:[%s283 + $0x40] sm:$0xf] %v714
      %747 = vst [vmem:[%s283 + $0x44] sm:$0xf] %v715
      %748 = vst [vmem:[%s283 + $0x48] sm:$0xf] %v716
      %749 = vst [vmem:[%s283 + $0x4c] sm:$0xf] %v717
      %750 = vst [vmem:[%s283 + $0x50] sm:$0xf] %v718
      %751 = vst [vmem:[%s283 + $0x54] sm:$0xf] %v719
      %752 = vst [vmem:[%s283 + $0x58] sm:$0xf] %v720
      %753 = vst [vmem:[%s283 + $0x5c] sm:$0xf] %v721
      %754 = vst [vmem:[%s283 + $0x60] sm:$0xf] %v722
      %755 = vst [vmem:[%s283 + $0x64] sm:$0xf] %v723
      %756 = vst [vmem:[%s283 + $0x68] sm:$0xf] %v724
      %757 = vst [vmem:[%s283 + $0x6c] sm:$0xf] %v725
      %758 = vst [vmem:[%s283 + $0x70] sm:$0xf] %v726
      %759 = vst [vmem:[%s283 + $0x74] sm:$0xf] %v727
      %760 = vst [vmem:[%s283 + $0x78] sm:$0xf] %v728
      %761 = vst [vmem:[%s283 + $0x7c] sm:$0xf] %v729
      %s762 = smul.u32 32, %s19
      %p763 = scmp.lt.s32.totalorder %s762, 63
      %s764 = scalar_select %p763, %s762, 63
      %p765 = scmp.lt.s32.totalorder %s20, 0
      %s766 = scalar_select %p765, %s20, 0
      %s767 = sadd.s32 %s766, %s764
      %s768 = smul.addr %s767, 4
      %s769 = scalar_lea.vmem %s4, %s768
      // Predicated region
      $region37: #{_lambda_.7} parent=35 // pred_check
        %p770 = pneg %p153
      $region38: #{_lambda_.7} parent=35 // pred_check_branch
        %772 = sbr.rel (%p770) target = $region40
      $region39: #{_lambda_.7} parent=35 // pred_region
        %s773 = smul.u32 32, %s19
      $region40: #{_lambda_.7} parent=35 // pred_fallthru
        _
    $region36: #{_lambda_.7} parent=5 // pred_fallthru
      _
    %p774 = scmp.le.s32.totalorder 2, %s10
    // Predicated region
    $region41: #{_lambda_.7} parent=5 // pred_check
      %p775 = pneg %p774
    $region42: #{_lambda_.7} parent=5 // pred_check_branch
      %777 = sbr.rel (%p775) target = $region44
    $region43: #{_lambda_.7} parent=5 // pred_region
      %s778 = ssub.s32 %s10, 2
      // Predicated region
      $region45: #{_lambda_.7} parent=43 // pred_check
        %p779 = pneg %p159
      $region46: #{_lambda_.7} parent=43 // pred_check_branch
        %781 = sbr.rel (%p779) target = $region48
      $region47: #{_lambda_.7} parent=43 // pred_region
        %s782 = smul.u32 32, %s21
        %p783 = scmp.lt.s32.totalorder %s782, 63
        %s784 = scalar_select %p783, %s782, 63
        %p785 = scmp.lt.s32.totalorder %s22, 0
        %s786 = scalar_select %p785, %s22, 0
        %s787 = sadd.s32 %s786, %s784
        %s788 = smul.addr %s787, 4
        %s789 = scalar_lea.vmem %s4, %s788
      $region48: #{_lambda_.7} parent=43 // pred_fallthru
        _
    $region44: #{_lambda_.7} parent=5 // pred_fallthru
      _
  $region6: #{_lambda_.7} parent=0 // loop_footer
    %s14 = sadd.s32 1, %s10
  $region7: #{_lambda_.7} parent=0 // loop_footer_branch
    %9 = sbr.rel target = $region3
  $region8: #{_lambda_.7} parent=0 // loop_exit
    _

// kernel: _lambda_.5
$region0: #{_lambda_.5}
  #allocation0 [shape = 'u32[]', space=smem, size = 0x4, offset = 0x4, fixed_abs, tag = 'smem constant byte address 0x4 - core index']
  #allocation1 [shape = 'u32[72,128]{1,0:T(1,128)}', space=vmem, size = 0x9000, scoped, tag = 'internal scratch']
  #allocation2 [shape = 'f32[192,128]{1,0:T(8,128)}', space=vmem, size = 0x18000, scoped, tag = 'scratch operand']
  %s0 = inlined_call_operand.vmem [shape: bf16[2,18,24,128], index: 0, kind: input, shape index: {}]
  %s1 = inlined_call_operand.vmem [shape: bf16[3,3,128,128], index: 1, kind: input, shape index: {}]
  %s2 = inlined_call_operand.vmem [shape: f32[1,128], index: 2, kind: input, shape index: {}]
  %s3 = inlined_call_operand.vmem [shape: bf16[2,16,16,128], index: 3, kind: output, shape index: {}]
  %s4 = sld [smem:[#allocation0]]
  $region45: #{_lambda_.5} parent=0
    _
  %s6 = ssub.s32 1, %s4
  %s7 = scalar_select 0, %s6, %s4
  loop: start=0, step=1, limit=6
  $region2: #{_lambda_.5} parent=0 // loop_pre_header
    _
  $region3: #{_lambda_.5} parent=0 // loop_header
    %s9 = sphi 0, %s13
    %p10 = scmp.ge.s32.totalorder %s9, 6
    %s16 = sphi 0, %s35
    %s17 = sphi 0, %s31
    %s18 = sphi 0, %s27
    %s19 = sphi 0, %s16
    %s20 = sphi 0, %s17
    %s21 = sphi 0, %s18
    %s22 = sphi 0, %s19
    %s23 = sphi 0, %s20
    %s24 = sphi 0, %s21
    %s38 = sphi 0, %s40
    %s41 = sphi 0, %s38
    %s42 = sphi 0, %s41
    %s58 = sphi 0, %s42
    %s64 = sphi 0, %s66
    %s67 = sphi 0, %s64
    %s68 = sphi 0, %s67
    %s84 = sphi 0, %s68
    %s90 = sphi 0, %s92
    %s93 = sphi 0, %s90
    %s94 = sphi 0, %s93
    %s110 = sphi 0, %s94
    %s120 = sphi 0, %s122
    %s123 = sphi 0, %s120
    %s124 = sphi 0, %s123
    %s140 = sphi 0, %s124
  $region4: #{_lambda_.5} parent=0 // loop_header_branch
    %12 = sbr.rel (%p10) target = $region8
  $region5: #{_lambda_.5} parent=0 // loop_body
    %s14 = ssub.s32 %s9, 1
    %s15 = ssub.s32 %s9, 2
    %s25 = sadd.s32 1, %s18
    %p26 = scmp.ge.s32.totalorder %s25, 2
    %s27 = scalar_select %p26, 0, %s25
    %s28 = sadd.s32 1, %s17
    %s29 = scalar_select %p26, %s28, %s17
    %p30 = scmp.ge.s32.totalorder %s29, 2
    %s31 = scalar_select %p30, 0, %s29
    %s32 = sadd.s32 1, %s16
    %s33 = scalar_select %p30, %s32, %s16
    %p34 = scmp.ge.s32.totalorder %s33, 1
    %s35 = scalar_select %p34, 0, %s33
    %s36 = ssub.s32 %s17, %s31
    %p37 = scmp.eq.s32.totalorder %s36, 0
    %s39 = sadd.s32 %s38, 1
    %s40 = scalar_select %p37, %s38, %s39
    %p43 = pneg %p37
    %p44 = scmp.eq.s32.totalorder %s9, 3
    %p45 = por %p43, %p44
    %p46 = scmp.ne.s32.totalorder %s38, %s41
    %p47 = scmp.eq.s32.totalorder %s9, 0
    %p48 = por %p46, %p47
    %p49 = scmp.ne.s32.totalorder %s38, %s41
    %p50 = scmp.eq.s32.totalorder %s14, 3
    %p51 = por %p49, %p50
    %p52 = scmp.ne.s32.totalorder %s41, %s42
    %p53 = scmp.eq.s32.totalorder %s14, 0
    %p54 = por %p52, %p53
    %p55 = scmp.ne.s32.totalorder %s41, %s42
    %p56 = scmp.eq.s32.totalorder %s15, 3
    %p57 = por %p55, %p56
    %p59 = scmp.ne.s32.totalorder %s42, %s58
    %p60 = scmp.eq.s32.totalorder %s15, 0
    %p61 = por %p59, %p60
    %s62 = ssub.s32 %s16, %s35
    %p63 = scmp.eq.s32.totalorder %s62, 0
    %s65 = sadd.s32 %s64, 1
    %s66 = scalar_select %p63, %s64, %s65
    %p69 = pneg %p63
    %p70 = scmp.eq.s32.totalorder %s9, 3
    %p71 = por %p69, %p70
    %p72 = scmp.ne.s32.totalorder %s64, %s67
    %p73 = scmp.eq.s32.totalorder %s9, 0
    %p74 = por %p72, %p73
    %p75 = scmp.ne.s32.totalorder %s64, %s67
    %p76 = scmp.eq.s32.totalorder %s14, 3
    %p77 = por %p75, %p76
    %p78 = scmp.ne.s32.totalorder %s67, %s68
    %p79 = scmp.eq.s32.totalorder %s14, 0
    %p80 = por %p78, %p79
    %p81 = scmp.ne.s32.totalorder %s67, %s68
    %p82 = scmp.eq.s32.totalorder %s15, 3
    %p83 = por %p81, %p82
    %p85 = scmp.ne.s32.totalorder %s68, %s84
    %p86 = scmp.eq.s32.totalorder %s15, 0
    %p87 = por %p85, %p86
    %s88 = ssub.s32 %s16, %s35
    %p89 = scmp.eq.s32.totalorder %s88, 0
    %s91 = sadd.s32 %s90, 1
    %s92 = scalar_select %p89, %s90, %s91
    %p95 = pneg %p89
    %p96 = scmp.eq.s32.totalorder %s9, 3
    %p97 = por %p95, %p96
    %p98 = scmp.ne.s32.totalorder %s90, %s93
    %p99 = scmp.eq.s32.totalorder %s9, 0
    %p100 = por %p98, %p99
    %p101 = scmp.ne.s32.totalorder %s90, %s93
    %p102 = scmp.eq.s32.totalorder %s14, 3
    %p103 = por %p101, %p102
    %p104 = scmp.ne.s32.totalorder %s93, %s94
    %p105 = scmp.eq.s32.totalorder %s14, 0
    %p106 = por %p104, %p105
    %p107 = scmp.ne.s32.totalorder %s93, %s94
    %p108 = scmp.eq.s32.totalorder %s15, 3
    %p109 = por %p107, %p108
    %p111 = scmp.ne.s32.totalorder %s94, %s110
    %p112 = scmp.eq.s32.totalorder %s15, 0
    %p113 = por %p111, %p112
    %s114 = ssub.s32 %s17, %s31
    %s115 = ssub.s32 %s18, %s27
    %s116 = sor.u32 %s114, %s115
    %s117 = ssub.s32 %s16, %s35
    %s118 = sor.u32 %s116, %s117
    %p119 = scmp.eq.s32.totalorder %s118, 0
    %s121 = sadd.s32 %s120, 1
    %s122 = scalar_select %p119, %s120, %s121
    %p125 = pneg %p119
    %p126 = scmp.eq.s32.totalorder %s9, 3
    %p127 = por %p125, %p126
    %p128 = scmp.ne.s32.totalorder %s120, %s123
    %p129 = scmp.eq.s32.totalorder %s9, 0
    %p130 = por %p128, %p129
    %p131 = scmp.ne.s32.totalorder %s120, %s123
    %p132 = scmp.eq.s32.totalorder %s14, 3
    %p133 = por %p131, %p132
    %p134 = scmp.ne.s32.totalorder %s123, %s124
    %p135 = scmp.eq.s32.totalorder %s14, 0
    %p136 = por %p134, %p135
    %p137 = scmp.ne.s32.totalorder %s123, %s124
    %p138 = scmp.eq.s32.totalorder %s15, 3
    %p139 = por %p137, %p138
    %p141 = scmp.ne.s32.totalorder %s124, %s140
    %p142 = scmp.eq.s32.totalorder %s15, 0
    %p143 = por %p141, %p142
    %p144 = scmp.le.s32.totalorder 1, %s9
    %p145 = scmp.lt.s32.totalorder %s9, 5
    %p146 = pnand %p144, %p145
    %p147 = pneg %p146
    // Predicated region
    $region9: #{_lambda_.5} parent=5 // pred_check
      _
    $region10: #{_lambda_.5} parent=5 // pred_check_branch
      %149 = sbr.rel (%p146) target = $region12
    $region11: #{_lambda_.5} parent=5 // pred_region
      %s150 = ssub.s32 %s9, 1
      // Predicated region
      $region13: #{_lambda_.5} parent=11 // pred_check
        %p151 = pneg %p80
      $region14: #{_lambda_.5} parent=11 // pred_check_branch
        %153 = sbr.rel (%p151) target = $region16
      $region15: #{_lambda_.5} parent=11 // pred_region
        %p154 = scmp.lt.s32.totalorder %s19, 0
        %s155 = scalar_select %p154, %s19, 0
        %s156 = smul.addr %s155, 4
        %s157 = scalar_lea.vmem %s1, %s156
      $region16: #{_lambda_.5} parent=11 // pred_fallthru
        _
      // Predicated region
      $region17: #{_lambda_.5} parent=11 // pred_check
        %p158 = pneg %p106
      $region18: #{_lambda_.5} parent=11 // pred_check_branch
        %160 = sbr.rel (%p158) target = $region20
      $region19: #{_lambda_.5} parent=11 // pred_region
        %p161 = scmp.lt.s32.totalorder %s19, 0
        %s162 = scalar_select %p161, %s19, 0
        %s163 = scalar_lea.vmem %s2, %s162
      $region20: #{_lambda_.5} parent=11 // pred_fallthru
        _
    $region12: #{_lambda_.5} parent=5 // pred_fallthru
      _
    %p164 = scmp.lt.s32.totalorder %s9, 4
    // Predicated region
    $region21: #{_lambda_.5} parent=5 // pred_check
      %p165 = pneg %p164
    $region22: #{_lambda_.5} parent=5 // pred_check_branch
      %167 = sbr.rel (%p165) target = $region24
    $region23: #{_lambda_.5} parent=5 // pred_region
      // Predicated region
      $region25: #{_lambda_.5} parent=23 // pred_check
        %p168 = pneg %p48
      $region26: #{_lambda_.5} parent=23 // pred_check_branch
        %170 = sbr.rel (%p168) target = $region28
      $region27: #{_lambda_.5} parent=23 // pred_region
        %p171 = scmp.lt.s32.totalorder %s17, 1
        %s172 = scalar_select %p171, %s17, 1
        %s173 = smul.addr %s172, 54
        %s174 = smul.addr %s173, 4
        %s175 = scalar_lea.vmem %s0, %s174
      $region28: #{_lambda_.5} parent=23 // pred_fallthru
        _
    $region24: #{_lambda_.5} parent=5 // pred_fallthru
      _
    %p176 = scmp.le.s32.totalorder 1, %s9
    %p177 = scmp.lt.s32.totalorder %s9, 5
    %p178 = pnand %p176, %p177
    %p179 = pneg %p178
    // Predicated region
    $region29: #{_lambda_.5} parent=5 // pred_check
      _
    $region30: #{_lambda_.5} parent=5 // pred_check_branch
      %181 = sbr.rel (%p178) target = $region32
    $region31: #{_lambda_.5} parent=5 // pred_region
      %s182 = ssub.s32 %s9, 1
      %p183 = scmp.lt.s32.totalorder %s20, 1
      %s184 = scalar_select %p183, %s20, 1
      %s185 = smul.addr %s184, 54
      %s186 = smul.addr %s185, 4
      %s187 = scalar_lea.vmem %s0, %s186
      %p188 = pneg %p54
      %p189 = pneg %p51
      %p190 = scmp.lt.s32.totalorder %s19, 0
      %s191 = scalar_select %p190, %s19, 0
      %s192 = smul.addr %s191, 4
      %s193 = scalar_lea.vmem %s1, %s192
      %p194 = pneg %p80
      %p195 = pneg %p77
      %p196 = scmp.lt.s32.totalorder %s19, 0
      %s197 = scalar_select %p196, %s19, 0
      %s198 = scalar_lea.vmem %s2, %s197
      %p199 = pneg %p106
      %p200 = pneg %p103
      %p201 = pneg %p136
      %p202 = pneg %p133
      %s203 = smul.u32 8, %s21
      %p204 = scmp.lt.s32.totalorder %s20, 1
      %s205 = scalar_select %p204, %s20, 1
      %p206 = scmp.lt.s32.totalorder %s203, 15
      %s207 = scalar_select %p206, %s203, 15
      %p208 = scmp.lt.s32.totalorder %s19, 0
      %s209 = scalar_select %p208, %s19, 0
      %s210 = smul.addr %s207, 2
      %s211 = sadd.s32 %s209, %s210
      %s212 = smul.addr %s205, 32
      %s213 = sadd.s32 %s211, %s212
      %s214 = smul.addr %s213, 4
      %s215 = scalar_lea.vmem %s3, %s214
      %p216 = scmp.lt.s32.totalorder %s20, 1
      %s217 = scalar_select %p216, %s20, 1
      %s218 = smul.addr %s217, 54
      %s219 = smul.addr %s218, 4
      %s220 = scalar_lea.vmem %s0, %s219
      %p221 = scmp.lt.s32.totalorder %s19, 0
      %s222 = scalar_select %p221, %s19, 0
      %s223 = smul.addr %s222, 4
      %s224 = scalar_lea.vmem %s1, %s223
      %p225 = scmp.lt.s32.totalorder %s19, 0
      %s226 = scalar_select %p225, %s19, 0
      %s227 = scalar_lea.vmem %s2, %s226
      %s228 = smul.u32 8, %s21
      %p229 = scmp.lt.s32.totalorder %s20, 1
      %s230 = scalar_select %p229, %s20, 1
      %p231 = scmp.lt.s32.totalorder %s228, 15
      %s232 = scalar_select %p231, %s228, 15
      %p233 = scmp.lt.s32.totalorder %s19, 0
      %s234 = scalar_select %p233, %s19, 0
      %s235 = smul.addr %s232, 2
      %s236 = sadd.s32 %s234, %s235
      %s237 = smul.addr %s230, 32
      %s238 = sadd.s32 %s236, %s237
      %s239 = smul.addr %s238, 4
      %s240 = scalar_lea.vmem %s3, %s239
      %s241 = smul.u32 8, %s21
      %242 = vst [vmem:[#allocation2] sm:$0xff] 0.0
      %243 = vst [vmem:[#allocation2 + $0x8] sm:$0xff] 0.0
      %244 = vst [vmem:[#allocation2 + $0x10] sm:$0xff] 0.0
      %245 = vst [vmem:[#allocation2 + $0x18] sm:$0xff] 0.0
      %246 = vst [vmem:[#allocation2 + $0x20] sm:$0xff] 0.0
      %247 = vst [vmem:[#allocation2 + $0x28] sm:$0xff] 0.0
      %248 = vst [vmem:[#allocation2 + $0x30] sm:$0xff] 0.0
      %249 = vst [vmem:[#allocation2 + $0x38] sm:$0xff] 0.0
      %250 = vst [vmem:[#allocation2 + $0x40] sm:$0xff] 0.0
      %251 = vst [vmem:[#allocation2 + $0x48] sm:$0xff] 0.0
      %252 = vst [vmem:[#allocation2 + $0x50] sm:$0xff] 0.0
      %253 = vst [vmem:[#allocation2 + $0x58] sm:$0xff] 0.0
      %254 = vst [vmem:[#allocation2 + $0x60] sm:$0xff] 0.0
      %255 = vst [vmem:[#allocation2 + $0x68] sm:$0xff] 0.0
      %256 = vst [vmem:[#allocation2 + $0x70] sm:$0xff] 0.0
      %257 = vst [vmem:[#allocation2 + $0x78] sm:$0xff] 0.0
      %258 = vst [vmem:[#allocation2 + $0x80] sm:$0xff] 0.0
      %259 = vst [vmem:[#allocation2 + $0x88] sm:$0xff] 0.0
      %260 = vst [vmem:[#allocation2 + $0x90] sm:$0xff] 0.0
      %261 = vst [vmem:[#allocation2 + $0x98] sm:$0xff] 0.0
      %262 = vst [vmem:[#allocation2 + $0xa0] sm:$0xff] 0.0
      %263 = vst [vmem:[#allocation2 + $0xa8] sm:$0xff] 0.0
      %264 = vst [vmem:[#allocation2 + $0xb0] sm:$0xff] 0.0
      %265 = vst [vmem:[#allocation2 + $0xb8] sm:$0xff] 0.0
      %s266 = smul.u32 %s21, 8
      %s267 = smul.u32 %s266, 3
      %s268 = smul.addr %s267, 4
      %s269 = scalar_lea.vmem %s220, %s268
      %v270 = vld [vmem:[%s269] sm:$0xf]
      %v271 = vld [vmem:[%s269 + $0x4] sm:$0xf]
      %v272 = vld [vmem:[%s269 + $0x8] sm:$0xf]
      %v273 = vld [vmem:[%s269 + $0xc] sm:$0xf]
      %v274 = vld [vmem:[%s269 + $0x10] sm:$0xf]
      %v275 = vld [vmem:[%s269 + $0x14] sm:$0xf]
      %v276 = vld [vmem:[%s269 + $0x18] sm:$0xf]
      %v277 = vld [vmem:[%s269 + $0x1c] sm:$0xf]
      %v278 = vld [vmem:[%s269 + $0x20] sm:$0xf]
      %v279 = vld [vmem:[%s269 + $0x24] sm:$0xf]
      %v280 = vld [vmem:[%s269 + $0x28] sm:$0xf]
      %v281 = vld [vmem:[%s269 + $0x2c] sm:$0xf]
      %v282 = vld [vmem:[%s269 + $0x30] sm:$0xf]
      %v283 = vld [vmem:[%s269 + $0x34] sm:$0xf]
      %v284 = vld [vmem:[%s269 + $0x38] sm:$0xf]
      %v285 = vld [vmem:[%s269 + $0x3c] sm:$0xf]
      %v286 = vld [vmem:[%s269 + $0x40] sm:$0xf]
      %v287 = vld [vmem:[%s269 + $0x44] sm:$0xf]
      %v288 = vld [vmem:[%s269 + $0x48] sm:$0xf]
      %v289 = vld [vmem:[%s269 + $0x4c] sm:$0xf]
      %v290 = vld [vmem:[%s269 + $0x50] sm:$0xf]
      %v291 = vld [vmem:[%s269 + $0x54] sm:$0xf]
      %v292 = vld [vmem:[%s269 + $0x58] sm:$0xf]
      %v293 = vld [vmem:[%s269 + $0x5c] sm:$0xf]
      %v294 = vld [vmem:[#allocation2] sm:$0xff]
      %v295 = vld [vmem:[#allocation2 + $0x8] sm:$0xff]
      %v296 = vld [vmem:[#allocation2 + $0x10] sm:$0xff]
      %v297 = vld [vmem:[#allocation2 + $0x18] sm:$0xff]
      %v298 = vld [vmem:[#allocation2 + $0x20] sm:$0xff]
      %v299 = vld [vmem:[#allocation2 + $0x28] sm:$0xff]
      %v300 = vld [vmem:[#allocation2 + $0x30] sm:$0xff]
      %v301 = vld [vmem:[#allocation2 + $0x38] sm:$0xff]
      %v302 = vld [vmem:[#allocation2 + $0x40] sm:$0xff]
      %v303 = vld [vmem:[#allocation2 + $0x48] sm:$0xff]
      %v304 = vld [vmem:[#allocation2 + $0x50] sm:$0xff]
      %v305 = vld [vmem:[#allocation2 + $0x58] sm:$0xff]
      %v306 = vld [vmem:[#allocation2 + $0x60] sm:$0xff]
      %v307 = vld [vmem:[#allocation2 + $0x68] sm:$0xff]
      %v308 = vld [vmem:[#allocation2 + $0x70] sm:$0xff]
      %v309 = vld [vmem:[#allocation2 + $0x78] sm:$0xff]
      %v310 = vld [vmem:[#allocation2 + $0x80] sm:$0xff]
      %v311 = vld [vmem:[#allocation2 + $0x88] sm:$0xff]
      %v312 = vld [vmem:[#allocation2 + $0x90] sm:$0xff]
      %v313 = vld [vmem:[#allocation2 + $0x98] sm:$0xff]
      %v314 = vld [vmem:[#allocation2 + $0xa0] sm:$0xff]
      %v315 = vld [vmem:[#allocation2 + $0xa8] sm:$0xff]
      %v316 = vld [vmem:[#allocation2 + $0xb0] sm:$0xff]
      %v317 = vld [vmem:[#allocation2 + $0xb8] sm:$0xff]
      %v318 = vld [vmem:[%s224] sm:$0xf]
      %v319 = vld [vmem:[%s224 + $0x4] sm:$0xf]
      %v320 = vld [vmem:[%s224 + $0x8] sm:$0xf]
      %v321 = vld [vmem:[%s224 + $0xc] sm:$0xf]
      %v322 = vld [vmem:[%s224 + $0x10] sm:$0xf]
      %v323 = vld [vmem:[%s224 + $0x14] sm:$0xf]
      %v324 = vld [vmem:[%s224 + $0x18] sm:$0xf]
      %v325 = vld [vmem:[%s224 + $0x1c] sm:$0xf]
      %v326 = vld [vmem:[%s224 + $0x20] sm:$0xf]
      %v327 = vld [vmem:[%s224 + $0x24] sm:$0xf]
      %v328 = vld [vmem:[%s224 + $0x28] sm:$0xf]
      %v329 = vld [vmem:[%s224 + $0x2c] sm:$0xf]
      %v330 = vld [vmem:[%s224 + $0x30] sm:$0xf]
      %v331 = vld [vmem:[%s224 + $0x34] sm:$0xf]
      %v332 = vld [vmem:[%s224 + $0x38] sm:$0xf]
      %v333 = vld [vmem:[%s224 + $0x3c] sm:$0xf]
      %v358 = vunpack.c.l.b16 %v270
      %v359 = vunpack.c.l.b16 %v271
      %v360 = vunpack.c.l.b16 %v272
      %v361 = vunpack.c.l.b16 %v273
      %v362 = vunpack.c.l.b16 %v274
      %v363 = vunpack.c.l.b16 %v275
      %v364 = vunpack.c.l.b16 %v276
      %v365 = vunpack.c.l.b16 %v277
      %v366 = vunpack.c.l.b16 %v278
      %v367 = vunpack.c.l.b16 %v279
      %v368 = vunpack.c.l.b16 %v280
      %v369 = vunpack.c.l.b16 %v281
      %v370 = vunpack.c.l.b16 %v282
      %v371 = vunpack.c.l.b16 %v283
      %v372 = vunpack.c.l.b16 %v284
      %v373 = vunpack.c.l.b16 %v285
      %v374 = vunpack.c.l.b16 %v286
      %v375 = vunpack.c.l.b16 %v287
      %v376 = vunpack.c.l.b16 %v288
      %v377 = vunpack.c.l.b16 %v289
      %v378 = vunpack.c.l.b16 %v290
      %v379 = vunpack.c.l.b16 %v291
      %v380 = vunpack.c.l.b16 %v292
      %v381 = vunpack.c.l.b16 %v293
      %v382 = vpack.c.b16 %v359, %v358
      %v383 = vpack.c.b16 %v361, %v360
      %v384 = vpack.c.b16 %v363, %v362
      %v385 = vpack.c.b16 %v365, %v364
      %v386 = vpack.c.b16 %v367, %v366
      %v387 = vpack.c.b16 %v369, %v368
      %v388 = vpack.c.b16 %v371, %v370
      %v389 = vpack.c.b16 %v373, %v372
      %v390 = vpack.c.b16 %v375, %v374
      %v391 = vpack.c.b16 %v377, %v376
      %v392 = vpack.c.b16 %v379, %v378
      %v393 = vpack.c.b16 %v381, %v380
      %v422 = vunpack.c.l.b16 %v318
      %v423 = vunpack.c.l.b16 %v319
      %v424 = vunpack.c.l.b16 %v320
      %v425 = vunpack.c.l.b16 %v321
      %v426 = vunpack.c.l.b16 %v322
      %v427 = vunpack.c.l.b16 %v323
      %v428 = vunpack.c.l.b16 %v324
      %v429 = vunpack.c.l.b16 %v325
      %v430 = vunpack.c.l.b16 %v326
      %v431 = vunpack.c.l.b16 %v327
      %v432 = vunpack.c.l.b16 %v328
      %v433 = vunpack.c.l.b16 %v329
      %v434 = vunpack.c.l.b16 %v330
      %v435 = vunpack.c.l.b16 %v331
      %v436 = vunpack.c.l.b16 %v332
      %v437 = vunpack.c.l.b16 %v333
      %v438 = vpack.c.b16 %v423, %v422
      %v439 = vpack.c.b16 %v425, %v424
      %v440 = vpack.c.b16 %v427, %v426
      %v441 = vpack.c.b16 %v429, %v428
      %v442 = vpack.c.b16 %v431, %v430
      %v443 = vpack.c.b16 %v433, %v432
      %v444 = vpack.c.b16 %v435, %v434
      %v445 = vpack.c.b16 %v437, %v436
      %454 = vmatpush.bf16.msra.mxu0 %v445
      %455 = vmatpush.bf16.msra.mxu0 %v444
      %456 = vmatpush.bf16.msra.mxu0 %v443
      %457 = vmatpush.bf16.msra.mxu0 %v442
      %458 = vmatpush.bf16.msra.mxu0 %v441
      %459 = vmatpush.bf16.msra.mxu0 %v440
      %460 = vmatpush.bf16.msra.mxu0 %v439
      %461 = vmatpush.bf16.msra.mxu0 %v438
      %462 = vmatmul.bf16.gmra.mxu0 %v382
      %v463 = vpop.f32.mrf.mxu0
      %v464 = vadd.f32 0.0, %v463
      %v465 = vpop.f32.mrf.mxu0
      %v466 = vadd.f32 0.0, %v465
      %467 = vmatmul.bf16.gmra.mxu0 %v383
      %v468 = vpop.f32.mrf.mxu0
      %v469 = vadd.f32 0.0, %v468
      %v470 = vpop.f32.mrf.mxu0
      %v471 = vadd.f32 0.0, %v470
      %472 = vmatmul.bf16.gmra.mxu0 %v384
      %v473 = vpop.f32.mrf.mxu0
      %v474 = vadd.f32 0.0, %v473
      %v475 = vpop.f32.mrf.mxu0
      %v476 = vadd.f32 0.0, %v475
      %477 = vmatmul.bf16.gmra.mxu0 %v385
      %v478 = vpop.f32.mrf.mxu0
      %v479 = vadd.f32 0.0, %v478
      %v480 = vpop.f32.mrf.mxu0
      %v481 = vadd.f32 0.0, %v480
      %482 = vmatmul.bf16.gmra.mxu0 %v386
      %v483 = vpop.f32.mrf.mxu0
      %v484 = vadd.f32 0.0, %v483
      %v485 = vpop.f32.mrf.mxu0
      %v486 = vadd.f32 0.0, %v485
      %487 = vmatmul.bf16.gmra.mxu0 %v387
      %v488 = vpop.f32.mrf.mxu0
      %v489 = vadd.f32 0.0, %v488
      %v490 = vpop.f32.mrf.mxu0
      %v491 = vadd.f32 0.0, %v490
      %492 = vmatmul.bf16.gmra.mxu0 %v388
      %v493 = vpop.f32.mrf.mxu0
      %v494 = vadd.f32 0.0, %v493
      %v495 = vpop.f32.mrf.mxu0
      %v496 = vadd.f32 0.0, %v495
      %497 = vmatmul.bf16.gmra.mxu0 %v389
      %v498 = vpop.f32.mrf.mxu0
      %v499 = vadd.f32 0.0, %v498
      %v500 = vpop.f32.mrf.mxu0
      %v501 = vadd.f32 0.0, %v500
      %502 = vmatmul.bf16.gmra.mxu0 %v390
      %v503 = vpop.f32.mrf.mxu0
      %v504 = vadd.f32 0.0, %v503
      %v505 = vpop.f32.mrf.mxu0
      %v506 = vadd.f32 0.0, %v505
      %507 = vmatmul.bf16.gmra.mxu0 %v391
      %v508 = vpop.f32.mrf.mxu0
      %v509 = vadd.f32 0.0, %v508
      %v510 = vpop.f32.mrf.mxu0
      %v511 = vadd.f32 0.0, %v510
      %512 = vmatmul.bf16.gmra.mxu0 %v392
      %v513 = vpop.f32.mrf.mxu0
      %v514 = vadd.f32 0.0, %v513
      %v515 = vpop.f32.mrf.mxu0
      %v516 = vadd.f32 0.0, %v515
      %517 = vmatmul.bf16.gmra.mxu0 %v393
      %v518 = vpop.f32.mrf.mxu0
      %v519 = vadd.f32 0.0, %v518
      %v520 = vpop.f32.mrf.mxu0
      %v521 = vadd.f32 0.0, %v520
      %522 = vdwg.mxu0
      %v523 = vadd.f32 %v294, %v464
      %v524 = vadd.f32 %v295, %v466
      %v525 = vadd.f32 %v296, %v469
      %v526 = vadd.f32 %v297, %v471
      %v527 = vadd.f32 %v298, %v474
      %v528 = vadd.f32 %v299, %v476
      %v529 = vadd.f32 %v300, %v479
      %v530 = vadd.f32 %v301, %v481
      %v531 = vadd.f32 %v302, %v484
      %v532 = vadd.f32 %v303, %v486
      %v533 = vadd.f32 %v304, %v489
      %v534 = vadd.f32 %v305, %v491
      %v535 = vadd.f32 %v306, %v494
      %v536 = vadd.f32 %v307, %v496
      %v537 = vadd.f32 %v308, %v499
      %v538 = vadd.f32 %v309, %v501
      %v539 = vadd.f32 %v310, %v504
      %v540 = vadd.f32 %v311, %v506
      %v541 = vadd.f32 %v312, %v509
      %v542 = vadd.f32 %v313, %v511
      %v543 = vadd.f32 %v314, %v514
      %v544 = vadd.f32 %v315, %v516
      %v545 = vadd.f32 %v316, %v519
      %v546 = vadd.f32 %v317, %v521
      %547 = vst [vmem:[#allocation2] sm:$0xff] %v523
      %548 = vst [vmem:[#allocation2 + $0x8] sm:$0xff] %v524
      %549 = vst [vmem:[#allocation2 + $0x10] sm:$0xff] %v525
      %550 = vst [vmem:[#allocation2 + $0x18] sm:$0xff] %v526
      %551 = vst [vmem:[#allocation2 + $0x20] sm:$0xff] %v527
      %552 = vst [vmem:[#allocation2 + $0x28] sm:$0xff] %v528
      %553 = vst [vmem:[#allocation2 + $0x30] sm:$0xff] %v529
      %554 = vst [vmem:[#allocation2 + $0x38] sm:$0xff] %v530
      %555 = vst [vmem:[#allocation2 + $0x40] sm:$0xff] %v531
      %556 = vst [vmem:[#allocation2 + $0x48] sm:$0xff] %v532
      %557 = vst [vmem:[#allocation2 + $0x50] sm:$0xff] %v533
      %558 = vst [vmem:[#allocation2 + $0x58] sm:$0xff] %v534
      %559 = vst [vmem:[#allocation2 + $0x60] sm:$0xff] %v535
      %560 = vst [vmem:[#allocation2 + $0x68] sm:$0xff] %v536
      %561 = vst [vmem:[#allocation2 + $0x70] sm:$0xff] %v537
      %562 = vst [vmem:[#allocation2 + $0x78] sm:$0xff] %v538
      %563 = vst [vmem:[#allocation2 + $0x80] sm:$0xff] %v539
      %564 = vst [vmem:[#allocation2 + $0x88] sm:$0xff] %v540
      %565 = vst [vmem:[#allocation2 + $0x90] sm:$0xff] %v541
      %566 = vst [vmem:[#allocation2 + $0x98] sm:$0xff] %v542
      %567 = vst [vmem:[#allocation2 + $0xa0] sm:$0xff] %v543
      %568 = vst [vmem:[#allocation2 + $0xa8] sm:$0xff] %v544
      %569 = vst [vmem:[#allocation2 + $0xb0] sm:$0xff] %v545
      %570 = vst [vmem:[#allocation2 + $0xb8] sm:$0xff] %v546
      %v571 = vld [vmem:[#allocation2] sm:$0xff]
      %v572 = vld [vmem:[#allocation2 + $0x8] sm:$0xff]
      %v573 = vld [vmem:[#allocation2 + $0x10] sm:$0xff]
      %v574 = vld [vmem:[#allocation2 + $0x18] sm:$0xff]
      %v575 = vld [vmem:[#allocation2 + $0x20] sm:$0xff]
      %v576 = vld [vmem:[#allocation2 + $0x28] sm:$0xff]
      %v577 = vld [vmem:[#allocation2 + $0x30] sm:$0xff]
      %v578 = vld [vmem:[#allocation2 + $0x38] sm:$0xff]
      %v579 = vld [vmem:[#allocation2 + $0x40] sm:$0xff]
      %v580 = vld [vmem:[#allocation2 + $0x48] sm:$0xff]
      %v581 = vld [vmem:[#allocation2 + $0x50] sm:$0xff]
      %v582 = vld [vmem:[#allocation2 + $0x58] sm:$0xff]
      %v583 = vld [vmem:[#allocation2 + $0x60] sm:$0xff]
      %v584 = vld [vmem:[#allocation2 + $0x68] sm:$0xff]
      %v585 = vld [vmem:[#allocation2 + $0x70] sm:$0xff]
      %v586 = vld [vmem:[#allocation2 + $0x78] sm:$0xff]
      %v587 = vld [vmem:[#allocation2 + $0x80] sm:$0xff]
      %v588 = vld [vmem:[#allocation2 + $0x88] sm:$0xff]
      %v589 = vld [vmem:[#allocation2 + $0x90] sm:$0xff]
      %v590 = vld [vmem:[#allocation2 + $0x98] sm:$0xff]
      %v591 = vld [vmem:[#allocation2 + $0xa0] sm:$0xff]
      %v592 = vld [vmem:[#allocation2 + $0xa8] sm:$0xff]
      %v593 = vld [vmem:[#allocation2 + $0xb0] sm:$0xff]
      %v594 = vld [vmem:[#allocation2 + $0xb8] sm:$0xff]
      %vm595 = vsmask.f32 7424
      %v597 = vshrl.u32 %v382, 16
      %v599 = vshll.u32 %v382, 16
      %v601 = vrot.slane %v599, 1
      %v602 = vor.u32 %v597, %v601
      %v604 = vshll.u32 %v383, 16
      %v606 = vrot.slane %v604, 1
      %v607 = vsel %vm595, %v602, %v606
      %v608 = vshrl.u32 %v383, 16
      %v610 = vor.u32 %v608, %v606
      %v612 = vshll.u32 %v384, 16
      %v614 = vrot.slane %v612, 1
      %v615 = vsel %vm595, %v610, %v614
      %v616 = vshrl.u32 %v384, 16
      %v618 = vor.u32 %v616, %v614
      %v620 = vshll.u32 %v385, 16
      %v622 = vrot.slane %v620, 1
      %v623 = vsel %vm595, %v618, %v622
      %v624 = vshrl.u32 %v385, 16
      %v626 = vor.u32 %v624, %v622
      %v628 = vshll.u32 %v386, 16
      %v630 = vrot.slane %v628, 1
      %v631 = vsel %vm595, %v626, %v630
      %v632 = vshrl.u32 %v386, 16
      %v634 = vor.u32 %v632, %v630
      %v636 = vshll.u32 %v387, 16
      %v638 = vrot.slane %v636, 1
      %v639 = vsel %vm595, %v634, %v638
      %v640 = vshrl.u32 %v387, 16
      %v642 = vor.u32 %v640, %v638
      %v644 = vshll.u32 %v388, 16
      %v646 = vrot.slane %v644, 1
      %v647 = vsel %vm595, %v642, %v646
      %v648 = vshrl.u32 %v388, 16
      %v650 = vor.u32 %v648, %v646
      %v652 = vshll.u32 %v389, 16
      %v654 = vrot.slane %v652, 1
      %v655 = vsel %vm595, %v650, %v654
      %v656 = vshrl.u32 %v389, 16
      %v658 = vor.u32 %v656, %v654
      %v660 = vshll.u32 %v390, 16
      %v662 = vrot.slane %v660, 1
      %v663 = vsel %vm595, %v658, %v662
      %v664 = vshrl.u32 %v390, 16
      %v666 = vor.u32 %v664, %v662
      %v668 = vshll.u32 %v391, 16
      %v670 = vrot.slane %v668, 1
      %v671 = vsel %vm595, %v666, %v670
      %v672 = vshrl.u32 %v391, 16
      %v674 = vor.u32 %v672, %v670
      %v676 = vshll.u32 %v392, 16
      %v678 = vrot.slane %v676, 1
      %v679 = vsel %vm595, %v674, %v678
      %v680 = vshrl.u32 %v392, 16
      %v682 = vor.u32 %v680, %v678
      %v684 = vshll.u32 %v393, 16
      %v686 = vrot.slane %v684, 1
      %v687 = vsel %vm595, %v682, %v686
      %v688 = vshrl.u32 %v393, 16
      %v690 = vor.u32 %v688, %v686
      %v703 = vpack.c.b16 %v358, %v358
      %v705 = vshll.u32 %v703, 16
      %v707 = vrot.slane %v705, 1
      %vm709 = vcmask 1047552
      %vm710 = vmand %vm709, %vm595
      %v711 = vsel %vm710, %v690, %v707
      %s712 = scalar_lea.vmem %s224, 64
      %v713 = vld [vmem:[%s712] sm:$0xf]
      %v714 = vld [vmem:[%s712 + $0x4] sm:$0xf]
      %v715 = vld [vmem:[%s712 + $0x8] sm:$0xf]
      %v716 = vld [vmem:[%s712 + $0xc] sm:$0xf]
      %v717 = vld [vmem:[%s712 + $0x10] sm:$0xf]
      %v718 = vld [vmem:[%s712 + $0x14] sm:$0xf]
      %v719 = vld [vmem:[%s712 + $0x18] sm:$0xf]
      %v720 = vld [vmem:[%s712 + $0x1c] sm:$0xf]
      %v721 = vld [vmem:[%s712 + $0x20] sm:$0xf]
      %v722 = vld [vmem:[%s712 + $0x24] sm:$0xf]
      %v723 = vld [vmem:[%s712 + $0x28] sm:$0xf]
      %v724 = vld [vmem:[%s712 + $0x2c] sm:$0xf]
      %v725 = vld [vmem:[%s712 + $0x30] sm:$0xf]
      %v726 = vld [vmem:[%s712 + $0x34] sm:$0xf]
      %v727 = vld [vmem:[%s712 + $0x38] sm:$0xf]
      %v728 = vld [vmem:[%s712 + $0x3c] sm:$0xf]
      %v745 = vunpack.c.l.b16 %v713
      %v746 = vunpack.c.l.b16 %v714
      %v747 = vunpack.c.l.b16 %v715
      %v748 = vunpack.c.l.b16 %v716
      %v749 = vunpack.c.l.b16 %v717
      %v750 = vunpack.c.l.b16 %v718
      %v751 = vunpack.c.l.b16 %v719
      %v752 = vunpack.c.l.b16 %v720
      %v753 = vunpack.c.l.b16 %v721
      %v754 = vunpack.c.l.b16 %v722
      %v755 = vunpack.c.l.b16 %v723
      %v756 = vunpack.c.l.b16 %v724
      %v757 = vunpack.c.l.b16 %v725
      %v758 = vunpack.c.l.b16 %v726
      %v759 = vunpack.c.l.b16 %v727
      %v760 = vunpack.c.l.b16 %v728
      %v761 = vpack.c.b16 %v746, %v745
      %v762 = vpack.c.b16 %v748, %v747
      %v763 = vpack.c.b16 %v750, %v749
      %v764 = vpack.c.b16 %v752, %v751
      %v765 = vpack.c.b16 %v754, %v753
      %v766 = vpack.c.b16 %v756, %v755
      %v767 = vpack.c.b16 %v758, %v757
      %v768 = vpack.c.b16 %v760, %v759
      %777 = vmatpush.bf16.msra.mxu0 %v768
      %778 = vmatpush.bf16.msra.mxu0 %v767
      %779 = vmatpush.bf16.msra.mxu0 %v766
      %780 = vmatpush.bf16.msra.mxu0 %v765
      %781 = vmatpush.bf16.msra.mxu0 %v764
      %782 = vmatpush.bf16.msra.mxu0 %v763
      %783 = vmatpush.bf16.msra.mxu0 %v762
      %784 = vmatpush.bf16.msra.mxu0 %v761
      %785 = vmatmul.bf16.gmra.mxu0 %v607
      %v786 = vpop.f32.mrf.mxu0
      %v787 = vadd.f32 0.0, %v786
      %v788 = vpop.f32.mrf.mxu0
      %v789 = vadd.f32 0.0, %v788
      %790 = vmatmul.bf16.gmra.mxu0 %v615
      %v791 = vpop.f32.mrf.mxu0
      %v792 = vadd.f32 0.0, %v791
      %v793 = vpop.f32.mrf.mxu0
      %v794 = vadd.f32 0.0, %v793
      %795 = vmatmul.bf16.gmra.mxu0 %v623
      %v796 = vpop.f32.mrf.mxu0
      %v797 = vadd.f32 0.0, %v796
      %v798 = vpop.f32.mrf.mxu0
      %v799 = vadd.f32 0.0, %v798
      %800 = vmatmul.bf16.gmra.mxu0 %v631
      %v801 = vpop.f32.mrf.mxu0
      %v802 = vadd.f32 0.0, %v801
      %v803 = vpop.f32.mrf.mxu0
      %v804 = vadd.f32 0.0, %v803
      %805 = vmatmul.bf16.gmra.mxu0 %v639
      %v806 = vpop.f32.mrf.mxu0
      %v807 = vadd.f32 0.0, %v806
      %v808 = vpop.f32.mrf.mxu0
      %v809 = vadd.f32 0.0, %v808
      %810 = vmatmul.bf16.gmra.mxu0 %v647
      %v811 = vpop.f32.mrf.mxu0
      %v812 = vadd.f32 0.0, %v811
      %v813 = vpop.f32.mrf.mxu0
      %v814 = vadd.f32 0.0, %v813
      %815 = vmatmul.bf16.gmra.mxu0 %v655
      %v816 = vpop.f32.mrf.mxu0
      %v817 = vadd.f32 0.0, %v816
      %v818 = vpop.f32.mrf.mxu0
      %v819 = vadd.f32 0.0, %v818
      %820 = vmatmul.bf16.gmra.mxu0 %v663
      %v821 = vpop.f32.mrf.mxu0
      %v822 = vadd.f32 0.0, %v821
      %v823 = vpop.f32.mrf.mxu0
      %v824 = vadd.f32 0.0, %v823
      %825 = vmatmul.bf16.gmra.mxu0 %v671
      %v826 = vpop.f32.mrf.mxu0
      %v827 = vadd.f32 0.0, %v826
      %v828 = vpop.f32.mrf.mxu0
      %v829 = vadd.f32 0.0, %v828
      %830 = vmatmul.bf16.gmra.mxu0 %v679
      %v831 = vpop.f32.mrf.mxu0
      %v832 = vadd.f32 0.0, %v831
      %v833 = vpop.f32.mrf.mxu0
      %v834 = vadd.f32 0.0, %v833
      %835 = vmatmul.bf16.gmra.mxu0 %v687
      %v836 = vpop.f32.mrf.mxu0
      %v837 = vadd.f32 0.0, %v836
      %v838 = vpop.f32.mrf.mxu0
      %v839 = vadd.f32 0.0, %v838
      %840 = vmatmul.bf16.gmra.mxu0 %v711
      %v841 = vpop.f32.mrf.mxu0
      %v842 = vadd.f32 0.0, %v841
      %v843 = vpop.f32.mrf.mxu0
      %v844 = vadd.f32 0.0, %v843
      %845 = vdwg.mxu0
      %v846 = vadd.f32 %v571, %v787
      %v847 = vadd.f32 %v572, %v789
      %v848 = vadd.f32 %v573, %v792
      %v849 = vadd.f32 %v574, %v794
      %v850 = vadd.f32 %v575, %v797
      %v851 = vadd.f32 %v576, %v799
      %v852 = vadd.f32 %v577, %v802
      %v853 = vadd.f32 %v578, %v804
      %v854 = vadd.f32 %v579, %v807
      %v855 = vadd.f32 %v580, %v809
      %v856 = vadd.f32 %v581, %v812
      %v857 = vadd.f32 %v582, %v814
      %v858 = vadd.f32 %v583, %v817
      %v859 = vadd.f32 %v584, %v819
      %v860 = vadd.f32 %v585, %v822
      %v861 = vadd.f32 %v586, %v824
      %v862 = vadd.f32 %v587, %v827
      %v863 = vadd.f32 %v588, %v829
      %v864 = vadd.f32 %v589, %v832
      %v865 = vadd.f32 %v590, %v834
      %v866 = vadd.f32 %v591, %v837
      %v867 = vadd.f32 %v592, %v839
      %v868 = vadd.f32 %v593, %v842
      %v869 = vadd.f32 %v594, %v844
      %870 = vst [vmem:[#allocation2] sm:$0xff] %v846
      %871 = vst [vmem:[#allocation2 + $0x8] sm:$0xff] %v847
      %872 = vst [vmem:[#allocation2 + $0x10] sm:$0xff] %v848
      %873 = vst [vmem:[#allocation2 + $0x18] sm:$0xff] %v849
      %874 = vst [vmem:[#allocation2 + $0x20] sm:$0xff] %v850
      %875 = vst [vmem:[#allocation2 + $0x28] sm:$0xff] %v851
      %876 = vst [vmem:[#allocation2 + $0x30] sm:$0xff] %v852
      %877 = vst [vmem:[#allocation2 + $0x38] sm:$0xff] %v853
      %878 = vst [vmem:[#allocation2 + $0x40] sm:$0xff] %v854
      %879 = vst [vmem:[#allocation2 + $0x48] sm:$0xff] %v855
      %880 = vst [vmem:[#allocation2 + $0x50] sm:$0xff] %v856
      %881 = vst [vmem:[#allocation2 + $0x58] sm:$0xff] %v857
      %882 = vst [vmem:[#allocation2 + $0x60] sm:$0xff] %v858
      %883 = vst [vmem:[#allocation2 + $0x68] sm:$0xff] %v859
      %884 = vst [vmem:[#allocation2 + $0x70] sm:$0xff] %v860
      %885 = vst [vmem:[#allocation2 + $0x78] sm:$0xff] %v861
      %886 = vst [vmem:[#allocation2 + $0x80] sm:$0xff] %v862
      %887 = vst [vmem:[#allocation2 + $0x88] sm:$0xff] %v863
      %888 = vst [vmem:[#allocation2 + $0x90] sm:$0xff] %v864
      %889 = vst [vmem:[#allocation2 + $0x98] sm:$0xff] %v865
      %890 = vst [vmem:[#allocation2 + $0xa0] sm:$0xff] %v866
      %891 = vst [vmem:[#allocation2 + $0xa8] sm:$0xff] %v867
      %892 = vst [vmem:[#allocation2 + $0xb0] sm:$0xff] %v868
      %893 = vst [vmem:[#allocation2 + $0xb8] sm:$0xff] %v869
      %v894 = vld [vmem:[#allocation2] sm:$0xff]
      %v895 = vld [vmem:[#allocation2 + $0x8] sm:$0xff]
      %v896 = vld [vmem:[#allocation2 + $0x10] sm:$0xff]
      %v897 = vld [vmem:[#allocation2 + $0x18] sm:$0xff]
      %v898 = vld [vmem:[#allocation2 + $0x20] sm:$0xff]
      %v899 = vld [vmem:[#allocation2 + $0x28] sm:$0xff]
      %v900 = vld [vmem:[#allocation2 + $0x30] sm:$0xff]
      %v901 = vld [vmem:[#allocation2 + $0x38] sm:$0xff]
      %v902 = vld [vmem:[#allocation2 + $0x40] sm:$0xff]
      %v903 = vld [vmem:[#allocation2 + $0x48] sm:$0xff]
      %v904 = vld [vmem:[#allocation2 + $0x50] sm:$0xff]
      %v905 = vld [vmem:[#allocation2 + $0x58] sm:$0xff]
      %v906 = vld [vmem:[#allocation2 + $0x60] sm:$0xff]
      %v907 = vld [vmem:[#allocation2 + $0x68] sm:$0xff]
      %v908 = vld [vmem:[#allocation2 + $0x70] sm:$0xff]
      %v909 = vld [vmem:[#allocation2 + $0x78] sm:$0xff]
      %v910 = vld [vmem:[#allocation2 + $0x80] sm:$0xff]
      %v911 = vld [vmem:[#allocation2 + $0x88] sm:$0xff]
      %v912 = vld [vmem:[#allocation2 + $0x90] sm:$0xff]
      %v913 = vld [vmem:[#allocation2 + $0x98] sm:$0xff]
      %v914 = vld [vmem:[#allocation2 + $0xa0] sm:$0xff]
      %v915 = vld [vmem:[#allocation2 + $0xa8] sm:$0xff]
      %v916 = vld [vmem:[#allocation2 + $0xb0] sm:$0xff]
      %v917 = vld [vmem:[#allocation2 + $0xb8] sm:$0xff]
      %vm918 = vcmask 1046528
      %v919 = vrot.slane %v382, 1
      %v920 = vrot.slane %v383, 1
      %v921 = vsel %vm918, %v919, %v920
      %v922 = vrot.slane %v384, 1
      %v923 = vsel %vm918, %v920, %v922
      %v924 = vrot.slane %v385, 1
      %v925 = vsel %vm918, %v922, %v924
      %v926 = vrot.slane %v386, 1
      %v927 = vsel %vm918, %v924, %v926
      %v928 = vrot.slane %v387, 1
      %v929 = vsel %vm918, %v926, %v928
      %v930 = vrot.slane %v388, 1
      %v931 = vsel %vm918, %v928, %v930
      %v932 = vrot.slane %v389, 1
      %v933 = vsel %vm918, %v930, %v932
      %v934 = vrot.slane %v390, 1
      %v935 = vsel %vm918, %v932, %v934
      %v936 = vrot.slane %v391, 1
      %v937 = vsel %vm918, %v934, %v936
      %v938 = vrot.slane %v392, 1
      %v939 = vsel %vm918, %v936, %v938
      %v940 = vrot.slane %v393, 1
      %v941 = vsel %vm918, %v938, %v940
      %v953 = vrot.slane %v703, 1
      %vm954 = vcmask 1046528
      %v957 = vsel %vm954, %v940, %v953
      %s959 = scalar_lea.vmem %s224, 128
      %v960 = vld [vmem:[%s959] sm:$0xf]
      %v961 = vld [vmem:[%s959 + $0x4] sm:$0xf]
      %v962 = vld [vmem:[%s959 + $0x8] sm:$0xf]
      %v963 = vld [vmem:[%s959 + $0xc] sm:$0xf]
      %v964 = vld [vmem:[%s959 + $0x10] sm:$0xf]
      %v965 = vld [vmem:[%s959 + $0x14] sm:$0xf]
      %v966 = vld [vmem:[%s959 + $0x18] sm:$0xf]
      %v967 = vld [vmem:[%s959 + $0x1c] sm:$0xf]
      %v968 = vld [vmem:[%s959 + $0x20] sm:$0xf]
      %v969 = vld [vmem:[%s959 + $0x24] sm:$0xf]
      %v970 = vld [vmem:[%s959 + $0x28] sm:$0xf]
      %v971 = vld [vmem:[%s959 + $0x2c] sm:$0xf]
      %v972 = vld [vmem:[%s959 + $0x30] sm:$0xf]
      %v973 = vld [vmem:[%s959 + $0x34] sm:$0xf]
      %v974 = vld [vmem:[%s959 + $0x38] sm:$0xf]
      %v975 = vld [vmem:[%s959 + $0x3c] sm:$0xf]
      %v992 = vunpack.c.l.b16 %v960
      %v993 = vunpack.c.l.b16 %v961
      %v994 = vunpack.c.l.b16 %v962
      %v995 = vunpack.c.l.b16 %v963
      %v996 = vunpack.c.l.b16 %v964
      %v997 = vunpack.c.l.b16 %v965
      %v998 = vunpack.c.l.b16 %v966
      %v999 = vunpack.c.l.b16 %v967
      %v1000 = vunpack.c.l.b16 %v968
      %v1001 = vunpack.c.l.b16 %v969
      %v1002 = vunpack.c.l.b16 %v970
      %v1003 = vunpack.c.l.b16 %v971
      %v1004 = vunpack.c.l.b16 %v972
      %v1005 = vunpack.c.l.b16 %v973
      %v1006 = vunpack.c.l.b16 %v974
      %v1007 = vunpack.c.l.b16 %v975
      %v1008 = vpack.c.b16 %v993, %v992
      %v1009 = vpack.c.b16 %v995, %v994
      %v1010 = vpack.c.b16 %v997, %v996
      %v1011 = vpack.c.b16 %v999, %v998
      %v1012 = vpack.c.b16 %v1001, %v1000
      %v1013 = vpack.c.b16 %v1003, %v1002
      %v1014 = vpack.c.b16 %v1005, %v1004
      %v1015 = vpack.c.b16 %v1007, %v1006
      %1024 = vmatpush.bf16.msra.mxu0 %v1015
      %1025 = vmatpush.bf16.msra.mxu0 %v1014
      %1026 = vmatpush.bf16.msra.mxu0 %v1013
      %1027 = vmatpush.bf16.msra.mxu0 %v1012
      %1028 = vmatpush.bf16.msra.mxu0 %v1011
      %1029 = vmatpush.bf16.msra.mxu0 %v1010
      %1030 = vmatpush.bf16.msra.mxu0 %v1009
      %1031 = vmatpush.bf16.msra.mxu0 %v1008
      %1032 = vmatmul.bf16.gmra.mxu0 %v921
      %v1033 = vpop.f32.mrf.mxu0
      %v1034 = vadd.f32 0.0, %v1033
      %v1035 = vpop.f32.mrf.mxu0
      %v1036 = vadd.f32 0.0, %v1035
      %1037 = vmatmul.bf16.gmra.mxu0 %v923
      %v1038 = vpop.f32.mrf.mxu0
      %v1039 = vadd.f32 0.0, %v1038
      %v1040 = vpop.f32.mrf.mxu0
      %v1041 = vadd.f32 0.0, %v1040
      %1042 = vmatmul.bf16.gmra.mxu0 %v925
      %v1043 = vpop.f32.mrf.mxu0
      %v1044 = vadd.f32 0.0, %v1043
      %v1045 = vpop.f32.mrf.mxu0
      %v1046 = vadd.f32 0.0, %v1045
      %1047 = vmatmul.bf16.gmra.mxu0 %v927
      %v1048 = vpop.f32.mrf.mxu0
      %v1049 = vadd.f32 0.0, %v1048
      %v1050 = vpop.f32.mrf.mxu0
      %v1051 = vadd.f32 0.0, %v1050
      %1052 = vmatmul.bf16.gmra.mxu0 %v929
      %v1053 = vpop.f32.mrf.mxu0
      %v1054 = vadd.f32 0.0, %v1053
      %v1055 = vpop.f32.mrf.mxu0
      %v1056 = vadd.f32 0.0, %v1055
      %1057 = vmatmul.bf16.gmra.mxu0 %v931
      %v1058 = vpop.f32.mrf.mxu0
      %v1059 = vadd.f32 0.0, %v1058
      %v1060 = vpop.f32.mrf.mxu0
      %v1061 = vadd.f32 0.0, %v1060
      %1062 = vmatmul.bf16.gmra.mxu0 %v933
      %v1063 = vpop.f32.mrf.mxu0
      %v1064 = vadd.f32 0.0, %v1063
      %v1065 = vpop.f32.mrf.mxu0
      %v1066 = vadd.f32 0.0, %v1065
      %1067 = vmatmul.bf16.gmra.mxu0 %v935
      %v1068 = vpop.f32.mrf.mxu0
      %v1069 = vadd.f32 0.0, %v1068
      %v1070 = vpop.f32.mrf.mxu0
      %v1071 = vadd.f32 0.0, %v1070
      %1072 = vmatmul.bf16.gmra.mxu0 %v937
      %v1073 = vpop.f32.mrf.mxu0
      %v1074 = vadd.f32 0.0, %v1073
      %v1075 = vpop.f32.mrf.mxu0
      %v1076 = vadd.f32 0.0, %v1075
      %1077 = vmatmul.bf16.gmra.mxu0 %v939
      %v1078 = vpop.f32.mrf.mxu0
      %v1079 = vadd.f32 0.0, %v1078
      %v1080 = vpop.f32.mrf.mxu0
      %v1081 = vadd.f32 0.0, %v1080
      %1082 = vmatmul.bf16.gmra.mxu0 %v941
      %v1083 = vpop.f32.mrf.mxu0
      %v1084 = vadd.f32 0.0, %v1083
      %v1085 = vpop.f32.mrf.mxu0
      %v1086 = vadd.f32 0.0, %v1085
      %1087 = vmatmul.bf16.gmra.mxu0 %v957
      %v1088 = vpop.f32.mrf.mxu0
      %v1089 = vadd.f32 0.0, %v1088
      %v1090 = vpop.f32.mrf.mxu0
      %v1091 = vadd.f32 0.0, %v1090
      %1092 = vdwg.mxu0
      %v1093 = vadd.f32 %v894, %v1034
      %v1094 = vadd.f32 %v895, %v1036
      %v1095 = vadd.f32 %v896, %v1039
      %v1096 = vadd.f32 %v897, %v1041
      %v1097 = vadd.f32 %v898, %v1044
      %v1098 = vadd.f32 %v899, %v1046
      %v1099 = vadd.f32 %v900, %v1049
      %v1100 = vadd.f32 %v901, %v1051
      %v1101 = vadd.f32 %v902, %v1054
      %v1102 = vadd.f32 %v903, %v1056
      %v1103 = vadd.f32 %v904, %v1059
      %v1104 = vadd.f32 %v905, %v1061
      %v1105 = vadd.f32 %v906, %v1064
      %v1106 = vadd.f32 %v907, %v1066
      %v1107 = vadd.f32 %v908, %v1069
      %v1108 = vadd.f32 %v909, %v1071
      %v1109 = vadd.f32 %v910, %v1074
      %v1110 = vadd.f32 %v911, %v1076
      %v1111 = vadd.f32 %v912, %v1079
      %v1112 = vadd.f32 %v913, %v1081
      %v1113 = vadd.f32 %v914, %v1084
      %v1114 = vadd.f32 %v915, %v1086
      %v1115 = vadd.f32 %v916, %v1089
      %v1116 = vadd.f32 %v917, %v1091
      %1117 = vst [vmem:[#allocation2] sm:$0xff] %v1093
      %1118 = vst [vmem:[#allocation2 + $0x8] sm:$0xff] %v1094
      %1119 = vst [vmem:[#allocation2 + $0x10] sm:$0xff] %v1095
      %1120 = vst [vmem:[#allocation2 + $0x18] sm:$0xff] %v1096
      %1121 = vst [vmem:[#allocation2 + $0x20] sm:$0xff] %v1097
      %1122 = vst [vmem:[#allocation2 + $0x28] sm:$0xff] %v1098
      %1123 = vst [vmem:[#allocation2 + $0x30] sm:$0xff] %v1099
      %1124 = vst [vmem:[#allocation2 + $0x38] sm:$0xff] %v1100
      %1125 = vst [vmem:[#allocation2 + $0x40] sm:$0xff] %v1101
      %1126 = vst [vmem:[#allocation2 + $0x48] sm:$0xff] %v1102
      %1127 = vst [vmem:[#allocation2 + $0x50] sm:$0xff] %v1103
      %1128 = vst [vmem:[#allocation2 + $0x58] sm:$0xff] %v1104
      %1129 = vst [vmem:[#allocation2 + $0x60] sm:$0xff] %v1105
      %1130 = vst [vmem:[#allocation2 + $0x68] sm:$0xff] %v1106
      %1131 = vst [vmem:[#allocation2 + $0x70] sm:$0xff] %v1107
      %1132 = vst [vmem:[#allocation2 + $0x78] sm:$0xff] %v1108
      %1133 = vst [vmem:[#allocation2 + $0x80] sm:$0xff] %v1109
      %1134 = vst [vmem:[#allocation2 + $0x88] sm:$0xff] %v1110
      %1135 = vst [vmem:[#allocation2 + $0x90] sm:$0xff] %v1111
      %1136 = vst [vmem:[#allocation2 + $0x98] sm:$0xff] %v1112
      %1137 = vst [vmem:[#allocation2 + $0xa0] sm:$0xff] %v1113
      %1138 = vst [vmem:[#allocation2 + $0xa8] sm:$0xff] %v1114
      %1139 = vst [vmem:[#allocation2 + $0xb0] sm:$0xff] %v1115
      %1140 = vst [vmem:[#allocation2 + $0xb8] sm:$0xff] %v1116
      %s1141 = sadd.s32 %s266, 1
      %s1142 = smul.u32 %s1141, 3
      %s1143 = smul.addr %s1142, 4
      %s1144 = scalar_lea.vmem %s220, %s1143
      %v1145 = vld [vmem:[%s1144] sm:$0xf]
      %v1146 = vld [vmem:[%s1144 + $0x4] sm:$0xf]
      %v1147 = vld [vmem:[%s1144 + $0x8] sm:$0xf]
      %v1148 = vld [vmem:[%s1144 + $0xc] sm:$0xf]
      %v1149 = vld [vmem:[%s1144 + $0x10] sm:$0xf]
      %v1150 = vld [vmem:[%s1144 + $0x14] sm:$0xf]
      %v1151 = vld [vmem:[%s1144 + $0x18] sm:$0xf]
      %v1152 = vld [vmem:[%s1144 + $0x1c] sm:$0xf]
      %v1153 = vld [vmem:[%s1144 + $0x20] sm:$0xf]
      %v1154 = vld [vmem:[%s1144 + $0x24] sm:$0xf]
      %v1155 = vld [vmem:[%s1144 + $0x28] sm:$0xf]
      %v1156 = vld [vmem:[%s1144 + $0x2c] sm:$0xf]
      %v1157 = vld [vmem:[%s1144 + $0x30] sm:$0xf]
      %v1158 = vld [vmem:[%s1144 + $0x34] sm:$0xf]
      %v1159 = vld [vmem:[%s1144 + $0x38] sm:$0xf]
      %v1160 = vld [vmem:[%s1144 + $0x3c] sm:$0xf]
      %v1161 = vld [vmem:[%s1144 + $0x40] sm:$0xf]
      %v1162 = vld [vmem:[%s1144 + $0x44] sm:$0xf]
      %v1163 = vld [vmem:[%s1144 + $0x48] sm:$0xf]
      %v1164 = vld [vmem:[%s1144 + $0x4c] sm:$0xf]
      %v1165 = vld [vmem:[%s1144 + $0x50] sm:$0xf]
      %v1166 = vld [vmem:[%s1144 + $0x54] sm:$0xf]
      %v1167 = vld [vmem:[%s1144 + $0x58] sm:$0xf]
      %v1168 = vld [vmem:[%s1144 + $0x5c] sm:$0xf]
      %v1169 = vld [vmem:[#allocation2] sm:$0xff]
      %v1170 = vld [vmem:[#allocation2 + $0x8] sm:$0xff]
      %v1171 = vld [vmem:[#allocation2 + $0x10] sm:$0xff]
      %v1172 = vld [vmem:[#allocation2 + $0x18] sm:$0xff]
      %v1173 = vld [vmem:[#allocation2 + $0x20] sm:$0xff]
      %v1174 = vld [vmem:[#allocation2 + $0x28] sm:$0xff]
      %v1175 = vld [vmem:[#allocation2 + $0x30] sm:$0xff]
      %v1176 = vld [vmem:[#allocation2 + $0x38] sm:$0xff]
      %v1177 = vld [vmem:[#allocation2 + $0x40] sm:$0xff]
      %v1178 = vld [vmem:[#allocation2 + $0x48] sm:$0xff]
      %v1179 = vld [vmem:[#allocation2 + $0x50] sm:$0xff]
      %v1180 = vld [vmem:[#allocation2 + $0x58] sm:$0xff]
      %v1181 = vld [vmem:[#allocation2 + $0x60] sm:$0xff]
      %v1182 = vld [vmem:[#allocation2 + $0x68] sm:$0xff]
      %v1183 = vld [vmem:[#allocation2 + $0x70] sm:$0xff]
      %v1184 = vld [vmem:[#allocation2 + $0x78] sm:$0xff]
      %v1185 = vld [vmem:[#allocation2 + $0x80] sm:$0xff]
      %v1186 = vld [vmem:[#allocation2 + $0x88] sm:$0xff]
      %v1187 = vld [vmem:[#allocation2 + $0x90] sm:$0xff]
      %v1188 = vld [vmem:[#allocation2 + $0x98] sm:$0xff]
      %v1189 = vld [vmem:[#allocation2 + $0xa0] sm:$0xff]
      %v1190 = vld [vmem:[#allocation2 + $0xa8] sm:$0xff]
      %v1191 = vld [vmem:[#allocation2 + $0xb0] sm:$0xff]
      %v1192 = vld [vmem:[#allocation2 + $0xb8] sm:$0xff]
      %s1193 = scalar_lea.vmem %s224, 192
      %v1194 = vld [vmem:[%s1193] sm:$0xf]
      %v1195 = vld [vmem:[%s1193 + $0x4] sm:$0xf]
      %v1196 = vld [vmem:[%s1193 + $0x8] sm:$0xf]
      %v1197 = vld [vmem:[%s1193 + $0xc] sm:$0xf]
      %v1198 = vld [vmem:[%s1193 + $0x10] sm:$0xf]
      %v1199 = vld [vmem:[%s1193 + $0x14] sm:$0xf]
      %v1200 = vld [vmem:[%s1193 + $0x18] sm:$0xf]
      %v1201 = vld [vmem:[%s1193 + $0x1c] sm:$0xf]
      %v1202 = vld [vmem:[%s1193 + $0x20] sm:$0xf]
      %v1203 = vld [vmem:[%s1193 + $0x24] sm:$0xf]
      %v1204 = vld [vmem:[%s1193 + $0x28] sm:$0xf]
      %v1205 = vld [vmem:[%s1193 + $0x2c] sm:$0xf]
      %v1206 = vld [vmem:[%s1193 + $0x30] sm:$0xf]
      %v1207 = vld [vmem:[%s1193 + $0x34] sm:$0xf]
      %v1208 = vld [vmem:[%s1193 + $0x38] sm:$0xf]
      %v1209 = vld [vmem:[%s1193 + $0x3c] sm:$0xf]
      %v1234 = vunpack.c.l.b16 %v1145
      %v1235 = vunpack.c.l.b16 %v1146
      %v1236 = vunpack.c.l.b16 %v1147
      %v1237 = vunpack.c.l.b16 %v1148
      %v1238 = vunpack.c.l.b16 %v1149
      %v1239 = vunpack.c.l.b16 %v1150
      %v1240 = vunpack.c.l.b16 %v1151
      %v1241 = vunpack.c.l.b16 %v1152
      %v1242 = vunpack.c.l.b16 %v1153
      %v1243 = vunpack.c.l.b16 %v1154
      %v1244 = vunpack.c.l.b16 %v1155
      %v1245 = vunpack.c.l.b16 %v1156
      %v1246 = vunpack.c.l.b16 %v1157
      %v1247 = vunpack.c.l.b16 %v1158
      %v1248 = vunpack.c.l.b16 %v1159
      %v1249 = vunpack.c.l.b16 %v1160
      %v1250 = vunpack.c.l.b16 %v1161
      %v1251 = vunpack.c.l.b16 %v1162
      %v1252 = vunpack.c.l.b16 %v1163
      %v1253 = vunpack.c.l.b16 %v1164
      %v1254 = vunpack.c.l.b16 %v1165
      %v1255 = vunpack.c.l.b16 %v1166
      %v1256 = vunpack.c.l.b16 %v1167
      %v1257 = vunpack.c.l.b16 %v1168
      %v1258 = vpack.c.b16 %v1235, %v1234
      %v1259 = vpack.c.b16 %v1237, %v1236
      %v1260 = vpack.c.b16 %v1239, %v1238
      %v1261 = vpack.c.b16 %v1241, %v1240
      %v1262 = vpack.c.b16 %v1243, %v1242
      %v1263 = vpack.c.b16 %v1245, %v1244
      %v1264 = vpack.c.b16 %v1247, %v1246
      %v1265 = vpack.c.b16 %v1249, %v1248
      %v1266 = vpack.c.b16 %v1251, %v1250
      %v1267 = vpack.c.b16 %v1253, %v1252
      %v1268 = vpack.c.b16 %v1255, %v1254
      %v1269 = vpack.c.b16 %v1257, %v1256
      %v1298 = vunpack.c.l.b16 %v1194
      %v1299 = vunpack.c.l.b16 %v1195
      %v1300 = vunpack.c.l.b16 %v1196
      %v1301 = vunpack.c.l.b16 %v1197
      %v1302 = vunpack.c.l.b16 %v1198
      %v1303 = vunpack.c.l.b16 %v1199
      %v1304 = vunpack.c.l.b16 %v1200
      %v1305 = vunpack.c.l.b16 %v1201
      %v1306 = vunpack.c.l.b16 %v1202
      %v1307 = vunpack.c.l.b16 %v1203
      %v1308 = vunpack.c.l.b16 %v1204
      %v1309 = vunpack.c.l.b16 %v1205
      %v1310 = vunpack.c.l.b16 %v1206
      %v1311 = vunpack.c.l.b16 %v1207
      %v1312 = vunpack.c.l.b16 %v1208
      %v1313 = vunpack.c.l.b16 %v1209
      %v1314 = vpack.c.b16 %v1299, %v1298
      %v1315 = vpack.c.b16 %v1301, %v1300
      %v1316 = vpack.c.b16 %v1303, %v1302
      %v1317 = vpack.c.b16 %v1305, %v1304
      %v1318 = vpack.c.b16 %v1307, %v1306
      %v1319 = vpack.c.b16 %v1309, %v1308
      %v1320 = vpack.c.b16 %v1311, %v1310
      %v1321 = vpack.c.b16 %v1313, %v1312
      %1330 = vmatpush.bf16.msra.mxu0 %v1321
      %1331 = vmatpush.bf16.msra.mxu0 %v1320
      %1332 = vmatpush.bf16.msra.mxu0 %v1319
      %1333 = vmatpush.bf16.msra.mxu0 %v1318
      %1334 = vmatpush.bf16.msra.mxu0 %v1317
      %1335 = vmatpush.bf16.msra.mxu0 %v1316
      %1336 = vmatpush.bf16.msra.mxu0 %v1315
      %1337 = vmatpush.bf16.msra.mxu0 %v1314
      %1338 = vmatmul.bf16.gmra.mxu0 %v1258
      %v1339 = vpop.f32.mrf.mxu0
      %v1340 = vadd.f32 0.0, %v1339
      %v1341 = vpop.f32.mrf.mxu0
      %v1342 = vadd.f32 0.0, %v1341
      %1343 = vmatmul.bf16.gmra.mxu0 %v1259
      %v1344 = vpop.f32.mrf.mxu0
      %v1345 = vadd.f32 0.0, %v1344
      %v1346 = vpop.f32.mrf.mxu0
      %v1347 = vadd.f32 0.0, %v1346
      %1348 = vmatmul.bf16.gmra.mxu0 %v1260
      %v1349 = vpop.f32.mrf.mxu0
      %v1350 = vadd.f32 0.0, %v1349
      %v1351 = vpop.f32.mrf.mxu0
      %v1352 = vadd.f32 0.0, %v1351
      %1353 = vmatmul.bf16.gmra.mxu0 %v1261
      %v1354 = vpop.f32.mrf.mxu0
      %v1355 = vadd.f32 0.0, %v1354
      %v1356 = vpop.f32.mrf.mxu0
      %v1357 = vadd.f32 0.0, %v1356
      %1358 = vmatmul.bf16.gmra.mxu0 %v1262
      %v1359 = vpop.f32.mrf.mxu0
      %v1360 = vadd.f32 0.0, %v1359
      %v1361 = vpop.f32.mrf.mxu0
      %v1362 = vadd.f32 0.0, %v1361
      %1363 = vmatmul.bf16.gmra.mxu0 %v1263
      %v1364 = vpop.f32.mrf.mxu0
      %v1365 = vadd.f32 0.0, %v1364
      %v1366 = vpop.f32.mrf.mxu0
      %v1367 = vadd.f32 0.0, %v1366
      %1368 = vmatmul.bf16.gmra.mxu0 %v1264
      %v1369 = vpop.f32.mrf.mxu0
      %v1370 = vadd.f32 0.0, %v1369
      %v1371 = vpop.f32.mrf.mxu0
      %v1372 = vadd.f32 0.0, %v1371
      %1373 = vmatmul.bf16.gmra.mxu0 %v1265
      %v1374 = vpop.f32.mrf.mxu0
      %v1375 = vadd.f32 0.0, %v1374
      %v1376 = vpop.f32.mrf.mxu0
      %v1377 = vadd.f32 0.0, %v1376
      %1378 = vmatmul.bf16.gmra.mxu0 %v1266
      %v1379 = vpop.f32.mrf.mxu0
      %v1380 = vadd.f32 0.0, %v1379
      %v1381 = vpop.f32.mrf.mxu0
      %v1382 = vadd.f32 0.0, %v1381
      %1383 = vmatmul.bf16.gmra.mxu0 %v1267
      %v1384 = vpop.f32.mrf.mxu0
      %v1385 = vadd.f32 0.0, %v1384
      %v1386 = vpop.f32.mrf.mxu0
      %v1387 = vadd.f32 0.0, %v1386
      %1388 = vmatmul.bf16.gmra.mxu0 %v1268
      %v1389 = vpop.f32.mrf.mxu0
      %v1390 = vadd.f32 0.0, %v1389
      %v1391 = vpop.f32.mrf.mxu0
      %v1392 = vadd.f32 0.0, %v1391
      %1393 = vmatmul.bf16.gmra.mxu0 %v1269
      %v1394 = vpop.f32.mrf.mxu0
      %v1395 = vadd.f32 0.0, %v1394
      %v1396 = vpop.f32.mrf.mxu0
      %v1397 = vadd.f32 0.0, %v1396
      %1398 = vdwg.mxu0
      %v1399 = vadd.f32 %v1169, %v1340
      %v1400 = vadd.f32 %v1170, %v1342
      %v1401 = vadd.f32 %v1171, %v1345
      %v1402 = vadd.f32 %v1172, %v1347
      %v1403 = vadd.f32 %v1173, %v1350
      %v1404 = vadd.f32 %v1174, %v1352
      %v1405 = vadd.f32 %v1175, %v1355
      %v1406 = vadd.f32 %v1176, %v1357
      %v1407 = vadd.f32 %v1177, %v1360
      %v1408 = vadd.f32 %v1178, %v1362
      %v1409 = vadd.f32 %v1179, %v1365
      %v1410 = vadd.f32 %v1180, %v1367
      %v1411 = vadd.f32 %v1181, %v1370
      %v1412 = vadd.f32 %v1182, %v1372
      %v1413 = vadd.f32 %v1183, %v1375
      %v1414 = vadd.f32 %v1184, %v1377
      %v1415 = vadd.f32 %v1185, %v1380
      %v1416 = vadd.f32 %v1186, %v1382
      %v1417 = vadd.f32 %v1187, %v1385
      %v1418 = vadd.f32 %v1188, %v1387
      %v1419 = vadd.f32 %v1189, %v1390
      %v1420 = vadd.f32 %v1190, %v1392
      %v1421 = vadd.f32 %v1191, %v1395
      %v1422 = vadd.f32 %v1192, %v1397
      %1423 = vst [vmem:[#allocation2] sm:$0xff] %v1399
      %1424 = vst [vmem:[#allocation2 + $0x8] sm:$0xff] %v1400
      %1425 = vst [vmem:[#allocation2 + $0x10] sm:$0xff] %v1401
      %1426 = vst [vmem:[#allocation2 + $0x18] sm:$0xff] %v1402
      %1427 = vst [vmem:[#allocation2 + $0x20] sm:$0xff] %v1403
      %1428 = vst [vmem:[#allocation2 + $0x28] sm:$0xff] %v1404
      %1429 = vst [vmem:[#allocation2 + $0x30] sm:$0xff] %v1405
      %1430 = vst [vmem:[#allocation2 + $0x38] sm:$0xff] %v1406
      %1431 = vst [vmem:[#allocation2 + $0x40] sm:$0xff] %v1407
      %1432 = vst [vmem:[#allocation2 + $0x48] sm:$0xff] %v1408
      %1433 = vst [vmem:[#allocation2 + $0x50] sm:$0xff] %v1409
      %1434 = vst [vmem:[#allocation2 + $0x58] sm:$0xff] %v1410
      %1435 = vst [vmem:[#allocation2 + $0x60] sm:$0xff] %v1411
      %1436 = vst [vmem:[#allocation2 + $0x68] sm:$0xff] %v1412
      %1437 = vst [vmem:[#allocation2 + $0x70] sm:$0xff] %v1413
      %1438 = vst [vmem:[#allocation2 + $0x78] sm:$0xff] %v1414
      %1439 = vst [vmem:[#allocation2 + $0x80] sm:$0xff] %v1415
      %1440 = vst [vmem:[#allocation2 + $0x88] sm:$0xff] %v1416
      %1441 = vst [vmem:[#allocation2 + $0x90] sm:$0xff] %v1417
      %1442 = vst [vmem:[#allocation2 + $0x98] sm:$0xff] %v1418
      %1443 = vst [vmem:[#allocation2 + $0xa0] sm:$0xff] %v1419
      %1444 = vst [vmem:[#allocation2 + $0xa8] sm:$0xff] %v1420
      %1445 = vst [vmem:[#allocation2 + $0xb0] sm:$0xff] %v1421
      %1446 = vst [vmem:[#allocation2 + $0xb8] sm:$0xff] %v1422
      %v1447 = vld [vmem:[#allocation2] sm:$0xff]
      %v1448 = vld [vmem:[#allocation2 + $0x8] sm:$0xff]
      %v1449 = vld [vmem:[#allocation2 + $0x10] sm:$0xff]
      %v1450 = vld [vmem:[#allocation2 + $0x18] sm:$0xff]
      %v1451 = vld [vmem:[#allocation2 + $0x20] sm:$0xff]
      %v1452 = vld [vmem:[#allocation2 + $0x28] sm:$0xff]
      %v1453 = vld [vmem:[#allocation2 + $0x30] sm:$0xff]
      %v1454 = vld [vmem:[#allocation2 + $0x38] sm:$0xff]
      %v1455 = vld [vmem:[#allocation2 + $0x40] sm:$0xff]
      %v1456 = vld [vmem:[#allocation2 + $0x48] sm:$0xff]
      %v1457 = vld [vmem:[#allocation2 + $0x50] sm:$0xff]
      %v1458 = vld [vmem:[#allocation2 + $0x58] sm:$0xff]
      %v1459 = vld [vmem:[#allocation2 + $0x60] sm:$0xff]
      %v1460 = vld [vmem:[#allocation2 + $0x68] sm:$0xff]
      %v1461 = vld [vmem:[#allocation2 + $0x70] sm:$0xff]
      %v1462 = vld [vmem:[#allocation2 + $0x78] sm:$0xff]
      %v1463 = vld [vmem:[#allocation2 + $0x80] sm:$0xff]
      %v1464 = vld [vmem:[#allocation2 + $0x88] sm:$0xff]
      %v1465 = vld [vmem:[#allocation2 + $0x90] sm:$0xff]
      %v1466 = vld [vmem:[#allocation2 + $0x98] sm:$0xff]
      %v1467 = vld [vmem:[#allocation2 + $0xa0] sm:$0xff]
      %v1468 = vld [vmem:[#allocation2 + $0xa8] sm:$0xff]
      %v1469 = vld [vmem:[#allocation2 + $0xb0] sm:$0xff]
      %v1470 = vld [vmem:[#allocation2 + $0xb8] sm:$0xff]
      %v1472 = vshrl.u32 %v1258, 16
      %v1474 = vshll.u32 %v1258, 16
      %v1476 = vrot.slane %v1474, 1
      %v1477 = vor.u32 %v1472, %v1476
      %v1479 = vshll.u32 %v1259, 16
      %v1481 = vrot.slane %v1479, 1
      %v1482 = vsel %vm595, %v1477, %v1481
      %v1483 = vshrl.u32 %v1259, 16
      %v1485 = vor.u32 %v1483, %v1481
      %v1487 = vshll.u32 %v1260, 16
      %v1489 = vrot.slane %v1487, 1
      %v1490 = vsel %vm595, %v1485, %v1489
      %v1491 = vshrl.u32 %v1260, 16
      %v1493 = vor.u32 %v1491, %v1489
      %v1495 = vshll.u32 %v1261, 16
      %v1497 = vrot.slane %v1495, 1
      %v1498 = vsel %vm595, %v1493, %v1497
      %v1499 = vshrl.u32 %v1261, 16
      %v1501 = vor.u32 %v1499, %v1497
      %v1503 = vshll.u32 %v1262, 16
      %v1505 = vrot.slane %v1503, 1
      %v1506 = vsel %vm595, %v1501, %v1505
      %v1507 = vshrl.u32 %v1262, 16
      %v1509 = vor.u32 %v1507, %v1505
      %v1511 = vshll.u32 %v1263, 16
      %v1513 = vrot.slane %v1511, 1
      %v1514 = vsel %vm595, %v1509, %v1513
      %v1515 = vshrl.u32 %v1263, 16
      %v1517 = vor.u32 %v1515, %v1513
      %v1519 = vshll.u32 %v1264, 16
      %v1521 = vrot.slane %v1519, 1
      %v1522 = vsel %vm595, %v1517, %v1521
      %v1523 = vshrl.u32 %v1264, 16
      %v1525 = vor.u32 %v1523, %v1521
      %v1527 = vshll.u32 %v1265, 16
      %v1529 = vrot.slane %v1527, 1
      %v1530 = vsel %vm595, %v1525, %v1529
      %v1531 = vshrl.u32 %v1265, 16
      %v1533 = vor.u32 %v1531, %v1529
      %v1535 = vshll.u32 %v1266, 16
      %v1537 = vrot.slane %v1535, 1
      %v1538 = vsel %vm595, %v1533, %v1537
      %v1539 = vshrl.u32 %v1266, 16
      %v1541 = vor.u32 %v1539, %v1537
      %v1543 = vshll.u32 %v1267, 16
      %v1545 = vrot.slane %v1543, 1
      %v1546 = vsel %vm595, %v1541, %v1545
      %v1547 = vshrl.u32 %v1267, 16
      %v1549 = vor.u32 %v1547, %v1545
      %v1551 = vshll.u32 %v1268, 16
      %v1553 = vrot.slane %v1551, 1
      %v1554 = vsel %vm595, %v1549, %v1553
      %v1555 = vshrl.u32 %v1268, 16
      %v1557 = vor.u32 %v1555, %v1553
      %v1559 = vshll.u32 %v1269, 16
      %v1561 = vrot.slane %v1559, 1
      %v1562 = vsel %vm595, %v1557, %v1561
      %v1563 = vshrl.u32 %v1269, 16
      %v1565 = vor.u32 %v1563, %v1561
      %v1578 = vpack.c.b16 %v1234, %v1234
      %v1580 = vshll.u32 %v1578, 16
      %v1582 = vrot.slane %v1580, 1
      %v1584 = vsel %vm710, %v1565, %v1582
      %s1585 = scalar_lea.vmem %s224, 256
      %v1586 = vld [vmem:[%s1585] sm:$0xf]
      %v1587 = vld [vmem:[%s1585 + $0x4] sm:$0xf]
      %v1588 = vld [vmem:[%s1585 + $0x8] sm:$0xf]
      %v1589 = vld [vmem:[%s1585 + $0xc] sm:$0xf]
      %v1590 = vld [vmem:[%s1585 + $0x10] sm:$0xf]
      %v1591 = vld [vmem:[%s1585 + $0x14] sm:$0xf]
      %v1592 = vld [vmem:[%s1585 + $0x18] sm:$0xf]
      %v1593 = vld [vmem:[%s1585 + $0x1c] sm:$0xf]
      %v1594 = vld [vmem:[%s1585 + $0x20] sm:$0xf]
      %v1595 = vld [vmem:[%s1585 + $0x24] sm:$0xf]
      %v1596 = vld [vmem:[%s1585 + $0x28] sm:$0xf]
      %v1597 = vld [vmem:[%s1585 + $0x2c] sm:$0xf]
      %v1598 = vld [vmem:[%s1585 + $0x30] sm:$0xf]
      %v1599 = vld [vmem:[%s1585 + $0x34] sm:$0xf]
      %v1600 = vld [vmem:[%s1585 + $0x38] sm:$0xf]
      %v1601 = vld [vmem:[%s1585 + $0x3c] sm:$0xf]
      %v1618 = vunpack.c.l.b16 %v1586
      %v1619 = vunpack.c.l.b16 %v1587
      %v1620 = vunpack.c.l.b16 %v1588
      %v1621 = vunpack.c.l.b16 %v1589
      %v1622 = vunpack.c.l.b16 %v1590
      %v1623 = vunpack.c.l.b16 %v1591
      %v1624 = vunpack.c.l.b16 %v1592
      %v1625 = vunpack.c.l.b16 %v1593
      %v1626 = vunpack.c.l.b16 %v1594
      %v1627 = vunpack.c.l.b16 %v1595
      %v1628 = vunpack.c.l.b16 %v1596
      %v1629 = vunpack.c.l.b16 %v1597
      %v1630 = vunpack.c.l.b16 %v1598
      %v1631 = vunpack.c.l.b16 %v1599
      %v1632 = vunpack.c.l.b16 %v1600
      %v1633 = vunpack.c.l.b16 %v1601
      %v1634 = vpack.c.b16 %v1619, %v1618
      %v1635 = vpack.c.b16 %v1621, %v1620
      %v1636 = vpack.c.b16 %v1623, %v1622
      %v1637 = vpack.c.b16 %v1625, %v1624
      %v1638 = vpack.c.b16 %v1627, %v1626
      %v1639 = vpack.c.b16 %v1629, %v1628
      %v1640 = vpack.c.b16 %v1631, %v1630
      %v1641 = vpack.c.b16 %v1633, %v1632
      %1650 = vmatpush.bf16.msra.mxu0 %v1641
      %1651 = vmatpush.bf16.msra.mxu0 %v1640
      %1652 = vmatpush.bf16.msra.mxu0 %v1639
      %1653 = vmatpush.bf16.msra.mxu0 %v1638
      %1654 = vmatpush.bf16.msra.mxu0 %v1637
      %1655 = vmatpush.bf16.msra.mxu0 %v1636
      %1656 = vmatpush.bf16.msra.mxu0 %v1635
      %1657 = vmatpush.bf16.msra.mxu0 %v1634
      %1658 = vmatmul.bf16.gmra.mxu0 %v1482
      %v1659 = vpop.f32.mrf.mxu0
      %v1660 = vadd.f32 0.0, %v1659
      %v1661 = vpop.f32.mrf.mxu0
      %v1662 = vadd.f32 0.0, %v1661
      %1663 = vmatmul.bf16.gmra.mxu0 %v1490
      %v1664 = vpop.f32.mrf.mxu0
      %v1665 = vadd.f32 0.0, %v1664
      %v1666 = vpop.f32.mrf.mxu0
      %v1667 = vadd.f32 0.0, %v1666
      %1668 = vmatmul.bf16.gmra.mxu0 %v1498
      %v1669 = vpop.f32.mrf.mxu0
      %v1670 = vadd.f32 0.0, %v1669
      %v1671 = vpop.f32.mrf.mxu0
      %v1672 = vadd.f32 0.0, %v1671
      %1673 = vmatmul.bf16.gmra.mxu0 %v1506
      %v1674 = vpop.f32.mrf.mxu0
      %v1675 = vadd.f32 0.0, %v1674
      %v1676 = vpop.f32.mrf.mxu0
      %v1677 = vadd.f32 0.0, %v1676
      %1678 = vmatmul.bf16.gmra.mxu0 %v1514
      %v1679 = vpop.f32.mrf.mxu0
      %v1680 = vadd.f32 0.0, %v1679
      %v1681 = vpop.f32.mrf.mxu0
      %v1682 = vadd.f32 0.0, %v1681
      %1683 = vmatmul.bf16.gmra.mxu0 %v1522
      %v1684 = vpop.f32.mrf.mxu0
      %v1685 = vadd.f32 0.0, %v1684
      %v1686 = vpop.f32.mrf.mxu0
      %v1687 = vadd.f32 0.0, %v1686
      %1688 = vmatmul.bf16.gmra.mxu0 %v1530
      %v1689 = vpop.f32.mrf.mxu0
      %v1690 = vadd.f32 0.0, %v1689
      %v1691 = vpop.f32.mrf.mxu0
      %v1692 = vadd.f32 0.0, %v1691
      %1693 = vmatmul.bf16.gmra.mxu0 %v1538
      %v1694 = vpop.f32.mrf.mxu0
      %v1695 = vadd.f32 0.0, %v1694
      %v1696 = vpop.f32.mrf.mxu0
      %v1697 = vadd.f32 0.0, %v1696
      %1698 = vmatmul.bf16.gmra.mxu0 %v1546
      %v1699 = vpop.f32.mrf.mxu0
      %v1700 = vadd.f32 0.0, %v1699
      %v1701 = vpop.f32.mrf.mxu0
      %v1702 = vadd.f32 0.0, %v1701
      %1703 = vmatmul.bf16.gmra.mxu0 %v1554
      %v1704 = vpop.f32.mrf.mxu0
      %v1705 = vadd.f32 0.0, %v1704
      %v1706 = vpop.f32.mrf.mxu0
      %v1707 = vadd.f32 0.0, %v1706
      %1708 = vmatmul.bf16.gmra.mxu0 %v1562
      %v1709 = vpop.f32.mrf.mxu0
      %v1710 = vadd.f32 0.0, %v1709
      %v1711 = vpop.f32.mrf.mxu0
      %v1712 = vadd.f32 0.0, %v1711
      %1713 = vmatmul.bf16.gmra.mxu0 %v1584
      %v1714 = vpop.f32.mrf.mxu0
      %v1715 = vadd.f32 0.0, %v1714
      %v1716 = vpop.f32.mrf.mxu0
      %v1717 = vadd.f32 0.0, %v1716
      %1718 = vdwg.mxu0
      %v1719 = vadd.f32 %v1447, %v1660
      %v1720 = vadd.f32 %v1448, %v1662
      %v1721 = vadd.f32 %v1449, %v1665
      %v1722 = vadd.f32 %v1450, %v1667
      %v1723 = vadd.f32 %v1451, %v1670
      %v1724 = vadd.f32 %v1452, %v1672
      %v1725 = vadd.f32 %v1453, %v1675
      %v1726 = vadd.f32 %v1454, %v1677
      %v1727 = vadd.f32 %v1455, %v1680
      %v1728 = vadd.f32 %v1456, %v1682
      %v1729 = vadd.f32 %v1457, %v1685
      %v1730 = vadd.f32 %v1458, %v1687
      %v1731 = vadd.f32 %v1459, %v1690
      %v1732 = vadd.f32 %v1460, %v1692
      %v1733 = vadd.f32 %v1461, %v1695
      %v1734 = vadd.f32 %v1462, %v1697
      %v1735 = vadd.f32 %v1463, %v1700
      %v1736 = vadd.f32 %v1464, %v1702
      %v1737 = vadd.f32 %v1465, %v1705
      %v1738 = vadd.f32 %v1466, %v1707
      %v1739 = vadd.f32 %v1467, %v1710
      %v1740 = vadd.f32 %v1468, %v1712
      %v1741 = vadd.f32 %v1469, %v1715
      %v1742 = vadd.f32 %v1470, %v1717
      %1743 = vst [vmem:[#allocation2] sm:$0xff] %v1719
      %1744 = vst [vmem:[#allocation2 + $0x8] sm:$0xff] %v1720
      %1745 = vst [vmem:[#allocation2 + $0x10] sm:$0xff] %v1721
      %1746 = vst [vmem:[#allocation2 + $0x18] sm:$0xff] %v1722
      %1747 = vst [vmem:[#allocation2 + $0x20] sm:$0xff] %v1723
      %1748 = vst [vmem:[#allocation2 + $0x28] sm:$0xff] %v1724
      %1749 = vst [vmem:[#allocation2 + $0x30] sm:$0xff] %v1725
      %1750 = vst [vmem:[#allocation2 + $0x38] sm:$0xff] %v1726
      %1751 = vst [vmem:[#allocation2 + $0x40] sm:$0xff] %v1727
      %1752 = vst [vmem:[#allocation2 + $0x48] sm:$0xff] %v1728
      %1753 = vst [vmem:[#allocation2 + $0x50] sm:$0xff] %v1729
      %1754 = vst [vmem:[#allocation2 + $0x58] sm:$0xff] %v1730
      %1755 = vst [vmem:[#allocation2 + $0x60] sm:$0xff] %v1731
      %1756 = vst [vmem:[#allocation2 + $0x68] sm:$0xff] %v1732
      %1757 = vst [vmem:[#allocation2 + $0x70] sm:$0xff] %v1733
      %1758 = vst [vmem:[#allocation2 + $0x78] sm:$0xff] %v1734
      %1759 = vst [vmem:[#allocation2 + $0x80] sm:$0xff] %v1735
      %1760 = vst [vmem:[#allocation2 + $0x88] sm:$0xff] %v1736
      %1761 = vst [vmem:[#allocation2 + $0x90] sm:$0xff] %v1737
      %1762 = vst [vmem:[#allocation2 + $0x98] sm:$0xff] %v1738
      %1763 = vst [vmem:[#allocation2 + $0xa0] sm:$0xff] %v1739
      %1764 = vst [vmem:[#allocation2 + $0xa8] sm:$0xff] %v1740
      %1765 = vst [vmem:[#allocation2 + $0xb0] sm:$0xff] %v1741
      %1766 = vst [vmem:[#allocation2 + $0xb8] sm:$0xff] %v1742
      %v1767 = vld [vmem:[#allocation2] sm:$0xff]
      %v1768 = vld [vmem:[#allocation2 + $0x8] sm:$0xff]
      %v1769 = vld [vmem:[#allocation2 + $0x10] sm:$0xff]
      %v1770 = vld [vmem:[#allocation2 + $0x18] sm:$0xff]
      %v1771 = vld [vmem:[#allocation2 + $0x20] sm:$0xff]
      %v1772 = vld [vmem:[#allocation2 + $0x28] sm:$0xff]
      %v1773 = vld [vmem:[#allocation2 + $0x30] sm:$0xff]
      %v1774 = vld [vmem:[#allocation2 + $0x38] sm:$0xff]
      %v1775 = vld [vmem:[#allocation2 + $0x40] sm:$0xff]
      %v1776 = vld [vmem:[#allocation2 + $0x48] sm:$0xff]
      %v1777 = vld [vmem:[#allocation2 + $0x50] sm:$0xff]
      %v1778 = vld [vmem:[#allocation2 + $0x58] sm:$0xff]
      %v1779 = vld [vmem:[#allocation2 + $0x60] sm:$0xff]
      %v1780 = vld [vmem:[#allocation2 + $0x68] sm:$0xff]
      %v1781 = vld [vmem:[#allocation2 + $0x70] sm:$0xff]
      %v1782 = vld [vmem:[#allocation2 + $0x78] sm:$0xff]
      %v1783 = vld [vmem:[#allocation2 + $0x80] sm:$0xff]
      %v1784 = vld [vmem:[#allocation2 + $0x88] sm:$0xff]
      %v1785 = vld [vmem:[#allocation2 + $0x90] sm:$0xff]
      %v1786 = vld [vmem:[#allocation2 + $0x98] sm:$0xff]
      %v1787 = vld [vmem:[#allocation2 + $0xa0] sm:$0xff]
      %v1788 = vld [vmem:[#allocation2 + $0xa8] sm:$0xff]
      %v1789 = vld [vmem:[#allocation2 + $0xb0] sm:$0xff]
      %v1790 = vld [vmem:[#allocation2 + $0xb8] sm:$0xff]
      %v1791 = vrot.slane %v1258, 1
      %v1792 = vrot.slane %v1259, 1
      %v1793 = vsel %vm918, %v1791, %v1792
      %v1794 = vrot.slane %v1260, 1
      %v1795 = vsel %vm918, %v1792, %v1794
      %v1796 = vrot.slane %v1261, 1
      %v1797 = vsel %vm918, %v1794, %v1796
      %v1798 = vrot.slane %v1262, 1
      %v1799 = vsel %vm918, %v1796, %v1798
      %v1800 = vrot.slane %v1263, 1
      %v1801 = vsel %vm918, %v1798, %v1800
      %v1802 = vrot.slane %v1264, 1
      %v1803 = vsel %vm918, %v1800, %v1802
      %v1804 = vrot.slane %v1265, 1
      %v1805 = vsel %vm918, %v1802, %v1804
      %v1806 = vrot.slane %v1266, 1
      %v1807 = vsel %vm918, %v1804, %v1806
      %v1808 = vrot.slane %v1267, 1
      %v1809 = vsel %vm918, %v1806, %v1808
      %v1810 = vrot.slane %v1268, 1
      %v1811 = vsel %vm918, %v1808, %v1810
      %v1812 = vrot.slane %v1269, 1
      %v1813 = vsel %vm918, %v1810, %v1812
      %v1825 = vrot.slane %v1578, 1
      %v1828 = vsel %vm954, %v1812, %v1825
      %s1830 = scalar_lea.vmem %s224, 320
      %v1831 = vld [vmem:[%s1830] sm:$0xf]
      %v1832 = vld [vmem:[%s1830 + $0x4] sm:$0xf]
      %v1833 = vld [vmem:[%s1830 + $0x8] sm:$0xf]
      %v1834 = vld [vmem:[%s1830 + $0xc] sm:$0xf]
      %v1835 = vld [vmem:[%s1830 + $0x10] sm:$0xf]
      %v1836 = vld [vmem:[%s1830 + $0x14] sm:$0xf]
      %v1837 = vld [vmem:[%s1830 + $0x18] sm:$0xf]
      %v1838 = vld [vmem:[%s1830 + $0x1c] sm:$0xf]
      %v1839 = vld [vmem:[%s1830 + $0x20] sm:$0xf]
      %v1840 = vld [vmem:[%s1830 + $0x24] sm:$0xf]
      %v1841 = vld [vmem:[%s1830 + $0x28] sm:$0xf]
      %v1842 = vld [vmem:[%s1830 + $0x2c] sm:$0xf]
      %v1843 = vld [vmem:[%s1830 + $0x30] sm:$0xf]
      %v1844 = vld [vmem:[%s1830 + $0x34] sm:$0xf]
      %v1845 = vld [vmem:[%s1830 + $0x38] sm:$0xf]
      %v1846 = vld [vmem:[%s1830 + $0x3c] sm:$0xf]
      %v1863 = vunpack.c.l.b16 %v1831
      %v1864 = vunpack.c.l.b16 %v1832
      %v1865 = vunpack.c.l.b16 %v1833
      %v1866 = vunpack.c.l.b16 %v1834
      %v1867 = vunpack.c.l.b16 %v1835
      %v1868 = vunpack.c.l.b16 %v1836
      %v1869 = vunpack.c.l.b16 %v1837
      %v1870 = vunpack.c.l.b16 %v1838
      %v1871 = vunpack.c.l.b16 %v1839
      %v1872 = vunpack.c.l.b16 %v1840
      %v1873 = vunpack.c.l.b16 %v1841
      %v1874 = vunpack.c.l.b16 %v1842
      %v1875 = vunpack.c.l.b16 %v1843
      %v1876 = vunpack.c.l.b16 %v1844
      %v1877 = vunpack.c.l.b16 %v1845
      %v1878 = vunpack.c.l.b16 %v1846
      %v1879 = vpack.c.b16 %v1864, %v1863
      %v1880 = vpack.c.b16 %v1866, %v1865
      %v1881 = vpack.c.b16 %v1868, %v1867
      %v1882 = vpack.c.b16 %v1870, %v1869
      %v1883 = vpack.c.b16 %v1872, %v1871
      %v1884 = vpack.c.b16 %v1874, %v1873
      %v1885 = vpack.c.b16 %v1876, %v1875
      %v1886 = vpack.c.b16 %v1878, %v1877
      %1895 = vmatpush.bf16.msra.mxu0 %v1886
      %1896 = vmatpush.bf16.msra.mxu0 %v1885
      %1897 = vmatpush.bf16.msra.mxu0 %v1884
      %1898 = vmatpush.bf16.msra.mxu0 %v1883
      %1899 = vmatpush.bf16.msra.mxu0 %v1882
      %1900 = vmatpush.bf16.msra.mxu0 %v1881
      %1901 = vmatpush.bf16.msra.mxu0 %v1880
      %1902 = vmatpush.bf16.msra.mxu0 %v1879
      %1903 = vmatmul.bf16.gmra.mxu0 %v1793
      %v1904 = vpop.f32.mrf.mxu0
      %v1905 = vadd.f32 0.0, %v1904
      %v1906 = vpop.f32.mrf.mxu0
      %v1907 = vadd.f32 0.0, %v1906
      %1908 = vmatmul.bf16.gmra.mxu0 %v1795
      %v1909 = vpop.f32.mrf.mxu0
      %v1910 = vadd.f32 0.0, %v1909
      %v1911 = vpop.f32.mrf.mxu0
      %v1912 = vadd.f32 0.0, %v1911
      %1913 = vmatmul.bf16.gmra.mxu0 %v1797
      %v1914 = vpop.f32.mrf.mxu0
      %v1915 = vadd.f32 0.0, %v1914
      %v1916 = vpop.f32.mrf.mxu0
      %v1917 = vadd.f32 0.0, %v1916
      %1918 = vmatmul.bf16.gmra.mxu0 %v1799
      %v1919 = vpop.f32.mrf.mxu0
      %v1920 = vadd.f32 0.0, %v1919
      %v1921 = vpop.f32.mrf.mxu0
      %v1922 = vadd.f32 0.0, %v1921
      %1923 = vmatmul.bf16.gmra.mxu0 %v1801
      %v1924 = vpop.f32.mrf.mxu0
      %v1925 = vadd.f32 0.0, %v1924
      %v1926 = vpop.f32.mrf.mxu0
      %v1927 = vadd.f32 0.0, %v1926
      %1928 = vmatmul.bf16.gmra.mxu0 %v1803
      %v1929 = vpop.f32.mrf.mxu0
      %v1930 = vadd.f32 0.0, %v1929
      %v1931 = vpop.f32.mrf.mxu0
      %v1932 = vadd.f32 0.0, %v1931
      %1933 = vmatmul.bf16.gmra.mxu0 %v1805
      %v1934 = vpop.f32.mrf.mxu0
      %v1935 = vadd.f32 0.0, %v1934
      %v1936 = vpop.f32.mrf.mxu0
      %v1937 = vadd.f32 0.0, %v1936
      %1938 = vmatmul.bf16.gmra.mxu0 %v1807
      %v1939 = vpop.f32.mrf.mxu0
      %v1940 = vadd.f32 0.0, %v1939
      %v1941 = vpop.f32.mrf.mxu0
      %v1942 = vadd.f32 0.0, %v1941
      %1943 = vmatmul.bf16.gmra.mxu0 %v1809
      %v1944 = vpop.f32.mrf.mxu0
      %v1945 = vadd.f32 0.0, %v1944
      %v1946 = vpop.f32.mrf.mxu0
      %v1947 = vadd.f32 0.0, %v1946
      %1948 = vmatmul.bf16.gmra.mxu0 %v1811
      %v1949 = vpop.f32.mrf.mxu0
      %v1950 = vadd.f32 0.0, %v1949
      %v1951 = vpop.f32.mrf.mxu0
      %v1952 = vadd.f32 0.0, %v1951
      %1953 = vmatmul.bf16.gmra.mxu0 %v1813
      %v1954 = vpop.f32.mrf.mxu0
      %v1955 = vadd.f32 0.0, %v1954
      %v1956 = vpop.f32.mrf.mxu0
      %v1957 = vadd.f32 0.0, %v1956
      %1958 = vmatmul.bf16.gmra.mxu0 %v1828
      %v1959 = vpop.f32.mrf.mxu0
      %v1960 = vadd.f32 0.0, %v1959
      %v1961 = vpop.f32.mrf.mxu0
      %v1962 = vadd.f32 0.0, %v1961
      %1963 = vdwg.mxu0
      %v1964 = vadd.f32 %v1767, %v1905
      %v1965 = vadd.f32 %v1768, %v1907
      %v1966 = vadd.f32 %v1769, %v1910
      %v1967 = vadd.f32 %v1770, %v1912
      %v1968 = vadd.f32 %v1771, %v1915
      %v1969 = vadd.f32 %v1772, %v1917
      %v1970 = vadd.f32 %v1773, %v1920
      %v1971 = vadd.f32 %v1774, %v1922
      %v1972 = vadd.f32 %v1775, %v1925
      %v1973 = vadd.f32 %v1776, %v1927
      %v1974 = vadd.f32 %v1777, %v1930
      %v1975 = vadd.f32 %v1778, %v1932
      %v1976 = vadd.f32 %v1779, %v1935
      %v1977 = vadd.f32 %v1780, %v1937
      %v1978 = vadd.f32 %v1781, %v1940
      %v1979 = vadd.f32 %v1782, %v1942
      %v1980 = vadd.f32 %v1783, %v1945
      %v1981 = vadd.f32 %v1784, %v1947
      %v1982 = vadd.f32 %v1785, %v1950
      %v1983 = vadd.f32 %v1786, %v1952
      %v1984 = vadd.f32 %v1787, %v1955
      %v1985 = vadd.f32 %v1788, %v1957
      %v1986 = vadd.f32 %v1789, %v1960
      %v1987 = vadd.f32 %v1790, %v1962
      %1988 = vst [vmem:[#allocation2] sm:$0xff] %v1964
      %1989 = vst [vmem:[#allocation2 + $0x8] sm:$0xff] %v1965
      %1990 = vst [vmem:[#allocation2 + $0x10] sm:$0xff] %v1966
      %1991 = vst [vmem:[#allocation2 + $0x18] sm:$0xff] %v1967
      %1992 = vst [vmem:[#allocation2 + $0x20] sm:$0xff] %v1968
      %1993 = vst [vmem:[#allocation2 + $0x28] sm:$0xff] %v1969
      %1994 = vst [vmem:[#allocation2 + $0x30] sm:$0xff] %v1970
      %1995 = vst [vmem:[#allocation2 + $0x38] sm:$0xff] %v1971
      %1996 = vst [vmem:[#allocation2 + $0x40] sm:$0xff] %v1972
      %1997 = vst [vmem:[#allocation2 + $0x48] sm:$0xff] %v1973
      %1998 = vst [vmem:[#allocation2 + $0x50] sm:$0xff] %v1974
      %1999 = vst [vmem:[#allocation2 + $0x58] sm:$0xff] %v1975
      %2000 = vst [vmem:[#allocation2 + $0x60] sm:$0xff] %v1976
      %2001 = vst [vmem:[#allocation2 + $0x68] sm:$0xff] %v1977
      %2002 = vst [vmem:[#allocation2 + $0x70] sm:$0xff] %v1978
      %2003 = vst [vmem:[#allocation2 + $0x78] sm:$0xff] %v1979
      %2004 = vst [vmem:[#allocation2 + $0x80] sm:$0xff] %v1980
      %2005 = vst [vmem:[#allocation2 + $0x88] sm:$0xff] %v1981
      %2006 = vst [vmem:[#allocation2 + $0x90] sm:$0xff] %v1982
      %2007 = vst [vmem:[#allocation2 + $0x98] sm:$0xff] %v1983
      %2008 = vst [vmem:[#allocation2 + $0xa0] sm:$0xff] %v1984
      %2009 = vst [vmem:[#allocation2 + $0xa8] sm:$0xff] %v1985
      %2010 = vst [vmem:[#allocation2 + $0xb0] sm:$0xff] %v1986
      %2011 = vst [vmem:[#allocation2 + $0xb8] sm:$0xff] %v1987
      %s2012 = sadd.s32 %s266, 2
      %s2013 = smul.u32 %s2012, 3
      %s2014 = smul.addr %s2013, 4
      %s2015 = scalar_lea.vmem %s220, %s2014
      %v2016 = vld [vmem:[%s2015] sm:$0xf]
      %v2017 = vld [vmem:[%s2015 + $0x4] sm:$0xf]
      %v2018 = vld [vmem:[%s2015 + $0x8] sm:$0xf]
      %v2019 = vld [vmem:[%s2015 + $0xc] sm:$0xf]
      %v2020 = vld [vmem:[%s2015 + $0x10] sm:$0xf]
      %v2021 = vld [vmem:[%s2015 + $0x14] sm:$0xf]
      %v2022 = vld [vmem:[%s2015 + $0x18] sm:$0xf]
      %v2023 = vld [vmem:[%s2015 + $0x1c] sm:$0xf]
      %v2024 = vld [vmem:[%s2015 + $0x20] sm:$0xf]
      %v2025 = vld [vmem:[%s2015 + $0x24] sm:$0xf]
      %v2026 = vld [vmem:[%s2015 + $0x28] sm:$0xf]
      %v2027 = vld [vmem:[%s2015 + $0x2c] sm:$0xf]
      %v2028 = vld [vmem:[%s2015 + $0x30] sm:$0xf]
      %v2029 = vld [vmem:[%s2015 + $0x34] sm:$0xf]
      %v2030 = vld [vmem:[%s2015 + $0x38] sm:$0xf]
      %v2031 = vld [vmem:[%s2015 + $0x3c] sm:$0xf]
      %v2032 = vld [vmem:[%s2015 + $0x40] sm:$0xf]
      %v2033 = vld [vmem:[%s2015 + $0x44] sm:$0xf]
      %v2034 = vld [vmem:[%s2015 + $0x48] sm:$0xf]
      %v2035 = vld [vmem:[%s2015 + $0x4c] sm:$0xf]
      %v2036 = vld [vmem:[%s2015 + $0x50] sm:$0xf]
      %v2037 = vld [vmem:[%s2015 + $0x54] sm:$0xf]
      %v2038 = vld [vmem:[%s2015 + $0x58] sm:$0xf]
      %v2039 = vld [vmem:[%s2015 + $0x5c] sm:$0xf]
      %v2040 = vld [vmem:[#allocation2] sm:$0xff]
      %v2041 = vld [vmem:[#allocation2 + $0x8] sm:$0xff]
      %v2042 = vld [vmem:[#allocation2 + $0x10] sm:$0xff]
      %v2043 = vld [vmem:[#allocation2 + $0x18] sm:$0xff]
      %v2044 = vld [vmem:[#allocation2 + $0x20] sm:$0xff]
      %v2045 = vld [vmem:[#allocation2 + $0x28] sm:$0xff]
      %v2046 = vld [vmem:[#allocation2 + $0x30] sm:$0xff]
      %v2047 = vld [vmem:[#allocation2 + $0x38] sm:$0xff]
      %v2048 = vld [vmem:[#allocation2 + $0x40] sm:$0xff]
      %v2049 = vld [vmem:[#allocation2 + $0x48] sm:$0xff]
      %v2050 = vld [vmem:[#allocation2 + $0x50] sm:$0xff]
      %v2051 = vld [vmem:[#allocation2 + $0x58] sm:$0xff]
      %v2052 = vld [vmem:[#allocation2 + $0x60] sm:$0xff]
      %v2053 = vld [vmem:[#allocation2 + $0x68] sm:$0xff]
      %v2054 = vld [vmem:[#allocation2 + $0x70] sm:$0xff]
      %v2055 = vld [vmem:[#allocation2 + $0x78] sm:$0xff]
      %v2056 = vld [vmem:[#allocation2 + $0x80] sm:$0xff]
      %v2057 = vld [vmem:[#allocation2 + $0x88] sm:$0xff]
      %v2058 = vld [vmem:[#allocation2 + $0x90] sm:$0xff]
      %v2059 = vld [vmem:[#allocation2 + $0x98] sm:$0xff]
      %v2060 = vld [vmem:[#allocation2 + $0xa0] sm:$0xff]
      %v2061 = vld [vmem:[#allocation2 + $0xa8] sm:$0xff]
      %v2062 = vld [vmem:[#allocation2 + $0xb0] sm:$0xff]
      %v2063 = vld [vmem:[#allocation2 + $0xb8] sm:$0xff]
      %s2064 = scalar_lea.vmem %s224, 384
      %v2065 = vld [vmem:[%s2064] sm:$0xf]
      %v2066 = vld [vmem:[%s2064 + $0x4] sm:$0xf]
      %v2067 = vld [vmem:[%s2064 + $0x8] sm:$0xf]
      %v2068 = vld [vmem:[%s2064 + $0xc] sm:$0xf]
      %v2069 = vld [vmem:[%s2064 + $0x10] sm:$0xf]
      %v2070 = vld [vmem:[%s2064 + $0x14] sm:$0xf]
      %v2071 = vld [vmem:[%s2064 + $0x18] sm:$0xf]
      %v2072 = vld [vmem:[%s2064 + $0x1c] sm:$0xf]
      %v2073 = vld [vmem:[%s2064 + $0x20] sm:$0xf]
      %v2074 = vld [vmem:[%s2064 + $0x24] sm:$0xf]
      %v2075 = vld [vmem:[%s2064 + $0x28] sm:$0xf]
      %v2076 = vld [vmem:[%s2064 + $0x2c] sm:$0xf]
      %v2077 = vld [vmem:[%s2064 + $0x30] sm:$0xf]
      %v2078 = vld [vmem:[%s2064 + $0x34] sm:$0xf]
      %v2079 = vld [vmem:[%s2064 + $0x38] sm:$0xf]
      %v2080 = vld [vmem:[%s2064 + $0x3c] sm:$0xf]
      %v2105 = vunpack.c.l.b16 %v2016
      %v2106 = vunpack.c.l.b16 %v2017
      %v2107 = vunpack.c.l.b16 %v2018
      %v2108 = vunpack.c.l.b16 %v2019
      %v2109 = vunpack.c.l.b16 %v2020
      %v2110 = vunpack.c.l.b16 %v2021
      %v2111 = vunpack.c.l.b16 %v2022
      %v2112 = vunpack.c.l.b16 %v2023
      %v2113 = vunpack.c.l.b16 %v2024
      %v2114 = vunpack.c.l.b16 %v2025
      %v2115 = vunpack.c.l.b16 %v2026
      %v2116 = vunpack.c.l.b16 %v2027
      %v2117 = vunpack.c.l.b16 %v2028
      %v2118 = vunpack.c.l.b16 %v2029
      %v2119 = vunpack.c.l.b16 %v2030
      %v2120 = vunpack.c.l.b16 %v2031
      %v2121 = vunpack.c.l.b16 %v2032
      %v2122 = vunpack.c.l.b16 %v2033
      %v2123 = vunpack.c.l.b16 %v2034
      %v2124 = vunpack.c.l.b16 %v2035
      %v2125 = vunpack.c.l.b16 %v2036
      %v2126 = vunpack.c.l.b16 %v2037
      %v2127 = vunpack.c.l.b16 %v2038
      %v2128 = vunpack.c.l.b16 %v2039
      %v2129 = vpack.c.b16 %v2106, %v2105
      %v2130 = vpack.c.b16 %v2108, %v2107
      %v2131 = vpack.c.b16 %v2110, %v2109
      %v2132 = vpack.c.b16 %v2112, %v2111
      %v2133 = vpack.c.b16 %v2114, %v2113
      %v2134 = vpack.c.b16 %v2116, %v2115
      %v2135 = vpack.c.b16 %v2118, %v2117
      %v2136 = vpack.c.b16 %v2120, %v2119
      %v2137 = vpack.c.b16 %v2122, %v2121
      %v2138 = vpack.c.b16 %v2124, %v2123
      %v2139 = vpack.c.b16 %v2126, %v2125
      %v2140 = vpack.c.b16 %v2128, %v2127
      %v2169 = vunpack.c.l.b16 %v2065
      %v2170 = vunpack.c.l.b16 %v2066
      %v2171 = vunpack.c.l.b16 %v2067
      %v2172 = vunpack.c.l.b16 %v2068
      %v2173 = vunpack.c.l.b16 %v2069
      %v2174 = vunpack.c.l.b16 %v2070
      %v2175 = vunpack.c.l.b16 %v2071
      %v2176 = vunpack.c.l.b16 %v2072
      %v2177 = vunpack.c.l.b16 %v2073
      %v2178 = vunpack.c.l.b16 %v2074
      %v2179 = vunpack.c.l.b16 %v2075
      %v2180 = vunpack.c.l.b16 %v2076
      %v2181 = vunpack.c.l.b16 %v2077
      %v2182 = vunpack.c.l.b16 %v2078
      %v2183 = vunpack.c.l.b16 %v2079
      %v2184 = vunpack.c.l.b16 %v2080
      %v2185 = vpack.c.b16 %v2170, %v2169
      %v2186 = vpack.c.b16 %v2172, %v2171
      %v2187 = vpack.c.b16 %v2174, %v2173
      %v2188 = vpack.c.b16 %v2176, %v2175
      %v2189 = vpack.c.b16 %v2178, %v2177
      %v2190 = vpack.c.b16 %v2180, %v2179
      %v2191 = vpack.c.b16 %v2182, %v2181
      %v2192 = vpack.c.b16 %v2184, %v2183
      %2201 = vmatpush.bf16.msra.mxu0 %v2192
      %2202 = vmatpush.bf16.msra.mxu0 %v2191
      %2203 = vmatpush.bf16.msra.mxu0 %v2190
      %2204 = vmatpush.bf16.msra.mxu0 %v2189
      %2205 = vmatpush.bf16.msra.mxu0 %v2188
      %2206 = vmatpush.bf16.msra.mxu0 %v2187
      %2207 = vmatpush.bf16.msra.mxu0 %v2186
      %2208 = vmatpush.bf16.msra.mxu0 %v2185
      %2209 = vmatmul.bf16.gmra.mxu0 %v2129
      %v2210 = vpop.f32.mrf.mxu0
      %v2211 = vadd.f32 0.0, %v2210
      %v2212 = vpop.f32.mrf.mxu0
      %v2213 = vadd.f32 0.0, %v2212
      %2214 = vmatmul.bf16.gmra.mxu0 %v2130
      %v2215 = vpop.f32.mrf.mxu0
      %v2216 = vadd.f32 0.0, %v2215
      %v2217 = vpop.f32.mrf.mxu0
      %v2218 = vadd.f32 0.0, %v2217
      %2219 = vmatmul.bf16.gmra.mxu0 %v2131
      %v2220 = vpop.f32.mrf.mxu0
      %v2221 = vadd.f32 0.0, %v2220
      %v2222 = vpop.f32.mrf.mxu0
      %v2223 = vadd.f32 0.0, %v2222
      %2224 = vmatmul.bf16.gmra.mxu0 %v2132
      %v2225 = vpop.f32.mrf.mxu0
      %v2226 = vadd.f32 0.0, %v2225
      %v2227 = vpop.f32.mrf.mxu0
      %v2228 = vadd.f32 0.0, %v2227
      %2229 = vmatmul.bf16.gmra.mxu0 %v2133
      %v2230 = vpop.f32.mrf.mxu0
      %v2231 = vadd.f32 0.0, %v2230
      %v2232 = vpop.f32.mrf.mxu0
      %v2233 = vadd.f32 0.0, %v2232
      %2234 = vmatmul.bf16.gmra.mxu0 %v2134
      %v2235 = vpop.f32.mrf.mxu0
      %v2236 = vadd.f32 0.0, %v2235
      %v2237 = vpop.f32.mrf.mxu0
      %v2238 = vadd.f32 0.0, %v2237
      %2239 = vmatmul.bf16.gmra.mxu0 %v2135
      %v2240 = vpop.f32.mrf.mxu0
      %v2241 = vadd.f32 0.0, %v2240
      %v2242 = vpop.f32.mrf.mxu0
      %v2243 = vadd.f32 0.0, %v2242
      %2244 = vmatmul.bf16.gmra.mxu0 %v2136
      %v2245 = vpop.f32.mrf.mxu0
      %v2246 = vadd.f32 0.0, %v2245
      %v2247 = vpop.f32.mrf.mxu0
      %v2248 = vadd.f32 0.0, %v2247
      %2249 = vmatmul.bf16.gmra.mxu0 %v2137
      %v2250 = vpop.f32.mrf.mxu0
      %v2251 = vadd.f32 0.0, %v2250
      %v2252 = vpop.f32.mrf.mxu0
      %v2253 = vadd.f32 0.0, %v2252
      %2254 = vmatmul.bf16.gmra.mxu0 %v2138
      %v2255 = vpop.f32.mrf.mxu0
      %v2256 = vadd.f32 0.0, %v2255
      %v2257 = vpop.f32.mrf.mxu0
      %v2258 = vadd.f32 0.0, %v2257
      %2259 = vmatmul.bf16.gmra.mxu0 %v2139
      %v2260 = vpop.f32.mrf.mxu0
      %v2261 = vadd.f32 0.0, %v2260
      %v2262 = vpop.f32.mrf.mxu0
      %v2263 = vadd.f32 0.0, %v2262
      %2264 = vmatmul.bf16.gmra.mxu0 %v2140
      %v2265 = vpop.f32.mrf.mxu0
      %v2266 = vadd.f32 0.0, %v2265
      %v2267 = vpop.f32.mrf.mxu0
      %v2268 = vadd.f32 0.0, %v2267
      %2269 = vdwg.mxu0
      %v2270 = vadd.f32 %v2040, %v2211
      %v2271 = vadd.f32 %v2041, %v2213
      %v2272 = vadd.f32 %v2042, %v2216
      %v2273 = vadd.f32 %v2043, %v2218
      %v2274 = vadd.f32 %v2044, %v2221
      %v2275 = vadd.f32 %v2045, %v2223
      %v2276 = vadd.f32 %v2046, %v2226
      %v2277 = vadd.f32 %v2047, %v2228
      %v2278 = vadd.f32 %v2048, %v2231
      %v2279 = vadd.f32 %v2049, %v2233
      %v2280 = vadd.f32 %v2050, %v2236
      %v2281 = vadd.f32 %v2051, %v2238
      %v2282 = vadd.f32 %v2052, %v2241
      %v2283 = vadd.f32 %v2053, %v2243
      %v2284 = vadd.f32 %v2054, %v2246
      %v2285 = vadd.f32 %v2055, %v2248
      %v2286 = vadd.f32 %v2056, %v2251
      %v2287 = vadd.f32 %v2057, %v2253
      %v2288 = vadd.f32 %v2058, %v2256
      %v2289 = vadd.f32 %v2059, %v2258
      %v2290 = vadd.f32 %v2060, %v2261
      %v2291 = vadd.f32 %v2061, %v2263
      %v2292 = vadd.f32 %v2062, %v2266
      %v2293 = vadd.f32 %v2063, %v2268
      %2294 = vst [vmem:[#allocation2] sm:$0xff] %v2270
      %2295 = vst [vmem:[#allocation2 + $0x8] sm:$0xff] %v2271
      %2296 = vst [vmem:[#allocation2 + $0x10] sm:$0xff] %v2272
      %2297 = vst [vmem:[#allocation2 + $0x18] sm:$0xff] %v2273
      %2298 = vst [vmem:[#allocation2 + $0x20] sm:$0xff] %v2274
      %2299 = vst [vmem:[#allocation2 + $0x28] sm:$0xff] %v2275
      %2300 = vst [vmem:[#allocation2 + $0x30] sm:$0xff] %v2276
      %2301 = vst [vmem:[#allocation2 + $0x38] sm:$0xff] %v2277
      %2302 = vst [vmem:[#allocation2 + $0x40] sm:$0xff] %v2278
      %2303 = vst [vmem:[#allocation2 + $0x48] sm:$0xff] %v2279
      %2304 = vst [vmem:[#allocation2 + $0x50] sm:$0xff] %v2280
      %2305 = vst [vmem:[#allocation2 + $0x58] sm:$0xff] %v2281
      %2306 = vst [vmem:[#allocation2 + $0x60] sm:$0xff] %v2282
      %2307 = vst [vmem:[#allocation2 + $0x68] sm:$0xff] %v2283
      %2308 = vst [vmem:[#allocation2 + $0x70] sm:$0xff] %v2284
      %2309 = vst [vmem:[#allocation2 + $0x78] sm:$0xff] %v2285
      %2310 = vst [vmem:[#allocation2 + $0x80] sm:$0xff] %v2286
      %2311 = vst [vmem:[#allocation2 + $0x88] sm:$0xff] %v2287
      %2312 = vst [vmem:[#allocation2 + $0x90] sm:$0xff] %v2288
      %2313 = vst [vmem:[#allocation2 + $0x98] sm:$0xff] %v2289
      %2314 = vst [vmem:[#allocation2 + $0xa0] sm:$0xff] %v2290
      %2315 = vst [vmem:[#allocation2 + $0xa8] sm:$0xff] %v2291
      %2316 = vst [vmem:[#allocation2 + $0xb0] sm:$0xff] %v2292
      %2317 = vst [vmem:[#allocation2 + $0xb8] sm:$0xff] %v2293
      %v2318 = vld [vmem:[#allocation2] sm:$0xff]
      %v2319 = vld [vmem:[#allocation2 + $0x8] sm:$0xff]
      %v2320 = vld [vmem:[#allocation2 + $0x10] sm:$0xff]
      %v2321 = vld [vmem:[#allocation2 + $0x18] sm:$0xff]
      %v2322 = vld [vmem:[#allocation2 + $0x20] sm:$0xff]
      %v2323 = vld [vmem:[#allocation2 + $0x28] sm:$0xff]
      %v2324 = vld [vmem:[#allocation2 + $0x30] sm:$0xff]
      %v2325 = vld [vmem:[#allocation2 + $0x38] sm:$0xff]
      %v2326 = vld [vmem:[#allocation2 + $0x40] sm:$0xff]
      %v2327 = vld [vmem:[#allocation2 + $0x48] sm:$0xff]
      %v2328 = vld [vmem:[#allocation2 + $0x50] sm:$0xff]
      %v2329 = vld [vmem:[#allocation2 + $0x58] sm:$0xff]
      %v2330 = vld [vmem:[#allocation2 + $0x60] sm:$0xff]
      %v2331 = vld [vmem:[#allocation2 + $0x68] sm:$0xff]
      %v2332 = vld [vmem:[#allocation2 + $0x70] sm:$0xff]
      %v2333 = vld [vmem:[#allocation2 + $0x78] sm:$0xff]
      %v2334 = vld [vmem:[#allocation2 + $0x80] sm:$0xff]
      %v2335 = vld [vmem:[#allocation2 + $0x88] sm:$0xff]
      %v2336 = vld [vmem:[#allocation2 + $0x90] sm:$0xff]
      %v2337 = vld [vmem:[#allocation2 + $0x98] sm:$0xff]
      %v2338 = vld [vmem:[#allocation2 + $0xa0] sm:$0xff]
      %v2339 = vld [vmem:[#allocation2 + $0xa8] sm:$0xff]
      %v2340 = vld [vmem:[#allocation2 + $0xb0] sm:$0xff]
      %v2341 = vld [vmem:[#allocation2 + $0xb8] sm:$0xff]
      %v2343 = vshrl.u32 %v2129, 16
      %v2345 = vshll.u32 %v2129, 16
      %v2347 = vrot.slane %v2345, 1
      %v2348 = vor.u32 %v2343, %v2347
      %v2350 = vshll.u32 %v2130, 16
      %v2352 = vrot.slane %v2350, 1
      %v2353 = vsel %vm595, %v2348, %v2352
      %v2354 = vshrl.u32 %v2130, 16
      %v2356 = vor.u32 %v2354, %v2352
      %v2358 = vshll.u32 %v2131, 16
      %v2360 = vrot.slane %v2358, 1
      %v2361 = vsel %vm595, %v2356, %v2360
      %v2362 = vshrl.u32 %v2131, 16
      %v2364 = vor.u32 %v2362, %v2360
      %v2366 = vshll.u32 %v2132, 16
      %v2368 = vrot.slane %v2366, 1
      %v2369 = vsel %vm595, %v2364, %v2368
      %v2370 = vshrl.u32 %v2132, 16
      %v2372 = vor.u32 %v2370, %v2368
      %v2374 = vshll.u32 %v2133, 16
      %v2376 = vrot.slane %v2374, 1
      %v2377 = vsel %vm595, %v2372, %v2376
      %v2378 = vshrl.u32 %v2133, 16
      %v2380 = vor.u32 %v2378, %v2376
      %v2382 = vshll.u32 %v2134, 16
      %v2384 = vrot.slane %v2382, 1
      %v2385 = vsel %vm595, %v2380, %v2384
      %v2386 = vshrl.u32 %v2134, 16
      %v2388 = vor.u32 %v2386, %v2384
      %v2390 = vshll.u32 %v2135, 16
      %v2392 = vrot.slane %v2390, 1
      %v2393 = vsel %vm595, %v2388, %v2392
      %v2394 = vshrl.u32 %v2135, 16
      %v2396 = vor.u32 %v2394, %v2392
      %v2398 = vshll.u32 %v2136, 16
      %v2400 = vrot.slane %v2398, 1
      %v2401 = vsel %vm595, %v2396, %v2400
      %v2402 = vshrl.u32 %v2136, 16
      %v2404 = vor.u32 %v2402, %v2400
      %v2406 = vshll.u32 %v2137, 16
      %v2408 = vrot.slane %v2406, 1
      %v2409 = vsel %vm595, %v2404, %v2408
      %v2410 = vshrl.u32 %v2137, 16
      %v2412 = vor.u32 %v2410, %v2408
      %v2414 = vshll.u32 %v2138, 16
      %v2416 = vrot.slane %v2414, 1
      %v2417 = vsel %vm595, %v2412, %v2416
      %v2418 = vshrl.u32 %v2138, 16
      %v2420 = vor.u32 %v2418, %v2416
      %v2422 = vshll.u32 %v2139, 16
      %v2424 = vrot.slane %v2422, 1
      %v2425 = vsel %vm595, %v2420, %v2424
      %v2426 = vshrl.u32 %v2139, 16
      %v2428 = vor.u32 %v2426, %v2424
      %v2430 = vshll.u32 %v2140, 16
      %v2432 = vrot.slane %v2430, 1
      %v2433 = vsel %vm595, %v2428, %v2432
      %v2434 = vshrl.u32 %v2140, 16
      %v2436 = vor.u32 %v2434, %v2432
      %v2449 = vpack.c.b16 %v2105, %v2105
      %v2451 = vshll.u32 %v2449, 16
      %v2453 = vrot.slane %v2451, 1
      %v2455 = vsel %vm710, %v2436, %v2453
      %s2456 = scalar_lea.vmem %s224, 448
      %v2457 = vld [vmem:[%s2456] sm:$0xf]
      %v2458 = vld [vmem:[%s2456 + $0x4] sm:$0xf]
      %v2459 = vld [vmem:[%s2456 + $0x8] sm:$0xf]
      %v2460 = vld [vmem:[%s2456 + $0xc] sm:$0xf]
      %v2461 = vld [vmem:[%s2456 + $0x10] sm:$0xf]
      %v2462 = vld [vmem:[%s2456 + $0x14] sm:$0xf]
      %v2463 = vld [vmem:[%s2456 + $0x18] sm:$0xf]
      %v2464 = vld [vmem:[%s2456 + $0x1c] sm:$0xf]
      %v2465 = vld [vmem:[%s2456 + $0x20] sm:$0xf]
      %v2466 = vld [vmem:[%s2456 + $0x24] sm:$0xf]
      %v2467 = vld [vmem:[%s2456 + $0x28] sm:$0xf]
      %v2468 = vld [vmem:[%s2456 + $0x2c] sm:$0xf]
      %v2469 = vld [vmem:[%s2456 + $0x30] sm:$0xf]
      %v2470 = vld [vmem:[%s2456 + $0x34] sm:$0xf]
      %v2471 = vld [vmem:[%s2456 + $0x38] sm:$0xf]
      %v2472 = vld [vmem:[%s2456 + $0x3c] sm:$0xf]
      %v2489 = vunpack.c.l.b16 %v2457
      %v2490 = vunpack.c.l.b16 %v2458
      %v2491 = vunpack.c.l.b16 %v2459
      %v2492 = vunpack.c.l.b16 %v2460
      %v2493 = vunpack.c.l.b16 %v2461
      %v2494 = vunpack.c.l.b16 %v2462
      %v2495 = vunpack.c.l.b16 %v2463
      %v2496 = vunpack.c.l.b16 %v2464
      %v2497 = vunpack.c.l.b16 %v2465
      %v2498 = vunpack.c.l.b16 %v2466
      %v2499 = vunpack.c.l.b16 %v2467
      %v2500 = vunpack.c.l.b16 %v2468
      %v2501 = vunpack.c.l.b16 %v2469
      %v2502 = vunpack.c.l.b16 %v2470
      %v2503 = vunpack.c.l.b16 %v2471
      %v2504 = vunpack.c.l.b16 %v2472
      %v2505 = vpack.c.b16 %v2490, %v2489
      %v2506 = vpack.c.b16 %v2492, %v2491
      %v2507 = vpack.c.b16 %v2494, %v2493
      %v2508 = vpack.c.b16 %v2496, %v2495
      %v2509 = vpack.c.b16 %v2498, %v2497
      %v2510 = vpack.c.b16 %v2500, %v2499
      %v2511 = vpack.c.b16 %v2502, %v2501
      %v2512 = vpack.c.b16 %v2504, %v2503
      %2521 = vmatpush.bf16.msra.mxu0 %v2512
      %2522 = vmatpush.bf16.msra.mxu0 %v2511
      %2523 = vmatpush.bf16.msra.mxu0 %v2510
      %2524 = vmatpush.bf16.msra.mxu0 %v2509
      %2525 = vmatpush.bf16.msra.mxu0 %v2508
      %2526 = vmatpush.bf16.msra.mxu0 %v2507
      %2527 = vmatpush.bf16.msra.mxu0 %v2506
      %2528 = vmatpush.bf16.msra.mxu0 %v2505
      %2529 = vmatmul.bf16.gmra.mxu0 %v2353
      %v2530 = vpop.f32.mrf.mxu0
      %v2531 = vadd.f32 0.0, %v2530
      %v2532 = vpop.f32.mrf.mxu0
      %v2533 = vadd.f32 0.0, %v2532
      %2534 = vmatmul.bf16.gmra.mxu0 %v2361
      %v2535 = vpop.f32.mrf.mxu0
      %v2536 = vadd.f32 0.0, %v2535
      %v2537 = vpop.f32.mrf.mxu0
      %v2538 = vadd.f32 0.0, %v2537
      %2539 = vmatmul.bf16.gmra.mxu0 %v2369
      %v2540 = vpop.f32.mrf.mxu0
      %v2541 = vadd.f32 0.0, %v2540
      %v2542 = vpop.f32.mrf.mxu0
      %v2543 = vadd.f32 0.0, %v2542
      %2544 = vmatmul.bf16.gmra.mxu0 %v2377
      %v2545 = vpop.f32.mrf.mxu0
      %v2546 = vadd.f32 0.0, %v2545
      %v2547 = vpop.f32.mrf.mxu0
      %v2548 = vadd.f32 0.0, %v2547
      %2549 = vmatmul.bf16.gmra.mxu0 %v2385
      %v2550 = vpop.f32.mrf.mxu0
      %v2551 = vadd.f32 0.0, %v2550
      %v2552 = vpop.f32.mrf.mxu0
      %v2553 = vadd.f32 0.0, %v2552
      %2554 = vmatmul.bf16.gmra.mxu0 %v2393
      %v2555 = vpop.f32.mrf.mxu0
      %v2556 = vadd.f32 0.0, %v2555
      %v2557 = vpop.f32.mrf.mxu0
      %v2558 = vadd.f32 0.0, %v2557
      %2559 = vmatmul.bf16.gmra.mxu0 %v2401
      %v2560 = vpop.f32.mrf.mxu0
      %v2561 = vadd.f32 0.0, %v2560
      %v2562 = vpop.f32.mrf.mxu0
      %v2563 = vadd.f32 0.0, %v2562
      %2564 = vmatmul.bf16.gmra.mxu0 %v2409
      %v2565 = vpop.f32.mrf.mxu0
      %v2566 = vadd.f32 0.0, %v2565
      %v2567 = vpop.f32.mrf.mxu0
      %v2568 = vadd.f32 0.0, %v2567
      %2569 = vmatmul.bf16.gmra.mxu0 %v2417
      %v2570 = vpop.f32.mrf.mxu0
      %v2571 = vadd.f32 0.0, %v2570
      %v2572 = vpop.f32.mrf.mxu0
      %v2573 = vadd.f32 0.0, %v2572
      %2574 = vmatmul.bf16.gmra.mxu0 %v2425
      %v2575 = vpop.f32.mrf.mxu0
      %v2576 = vadd.f32 0.0, %v2575
      %v2577 = vpop.f32.mrf.mxu0
      %v2578 = vadd.f32 0.0, %v2577
      %2579 = vmatmul.bf16.gmra.mxu0 %v2433
      %v2580 = vpop.f32.mrf.mxu0
      %v2581 = vadd.f32 0.0, %v2580
      %v2582 = vpop.f32.mrf.mxu0
      %v2583 = vadd.f32 0.0, %v2582
      %2584 = vmatmul.bf16.gmra.mxu0 %v2455
      %v2585 = vpop.f32.mrf.mxu0
      %v2586 = vadd.f32 0.0, %v2585
      %v2587 = vpop.f32.mrf.mxu0
      %v2588 = vadd.f32 0.0, %v2587
      %2589 = vdwg.mxu0
      %v2590 = vadd.f32 %v2318, %v2531
      %v2591 = vadd.f32 %v2319, %v2533
      %v2592 = vadd.f32 %v2320, %v2536
      %v2593 = vadd.f32 %v2321, %v2538
      %v2594 = vadd.f32 %v2322, %v2541
      %v2595 = vadd.f32 %v2323, %v2543
      %v2596 = vadd.f32 %v2324, %v2546
      %v2597 = vadd.f32 %v2325, %v2548
      %v2598 = vadd.f32 %v2326, %v2551
      %v2599 = vadd.f32 %v2327, %v2553
      %v2600 = vadd.f32 %v2328, %v2556
      %v2601 = vadd.f32 %v2329, %v2558
      %v2602 = vadd.f32 %v2330, %v2561
      %v2603 = vadd.f32 %v2331, %v2563
      %v2604 = vadd.f32 %v2332, %v2566
      %v2605 = vadd.f32 %v2333, %v2568
      %v2606 = vadd.f32 %v2334, %v2571
      %v2607 = vadd.f32 %v2335, %v2573
      %v2608 = vadd.f32 %v2336, %v2576
      %v2609 = vadd.f32 %v2337, %v2578
      %v2610 = vadd.f32 %v2338, %v2581
      %v2611 = vadd.f32 %v2339, %v2583
      %v2612 = vadd.f32 %v2340, %v2586
      %v2613 = vadd.f32 %v2341, %v2588
      %2614 = vst [vmem:[#allocation2] sm:$0xff] %v2590
      %2615 = vst [vmem:[#allocation2 + $0x8] sm:$0xff] %v2591
      %2616 = vst [vmem:[#allocation2 + $0x10] sm:$0xff] %v2592
      %2617 = vst [vmem:[#allocation2 + $0x18] sm:$0xff] %v2593
      %2618 = vst [vmem:[#allocation2 + $0x20] sm:$0xff] %v2594
      %2619 = vst [vmem:[#allocation2 + $0x28] sm:$0xff] %v2595
      %2620 = vst [vmem:[#allocation2 + $0x30] sm:$0xff] %v2596
      %2621 = vst [vmem:[#allocation2 + $0x38] sm:$0xff] %v2597
      %2622 = vst [vmem:[#allocation2 + $0x40] sm:$0xff] %v2598
      %2623 = vst [vmem:[#allocation2 + $0x48] sm:$0xff] %v2599
      %2624 = vst [vmem:[#allocation2 + $0x50] sm:$0xff] %v2600
      %2625 = vst [vmem:[#allocation2 + $0x58] sm:$0xff] %v2601
      %2626 = vst [vmem:[#allocation2 + $0x60] sm:$0xff] %v2602
      %2627 = vst [vmem:[#allocation2 + $0x68] sm:$0xff] %v2603
      %2628 = vst [vmem:[#allocation2 + $0x70] sm:$0xff] %v2604
      %2629 = vst [vmem:[#allocation2 + $0x78] sm:$0xff] %v2605
      %2630 = vst [vmem:[#allocation2 + $0x80] sm:$0xff] %v2606
      %2631 = vst [vmem:[#allocation2 + $0x88] sm:$0xff] %v2607
      %2632 = vst [vmem:[#allocation2 + $0x90] sm:$0xff] %v2608
      %2633 = vst [vmem:[#allocation2 + $0x98] sm:$0xff] %v2609
      %2634 = vst [vmem:[#allocation2 + $0xa0] sm:$0xff] %v2610
      %2635 = vst [vmem:[#allocation2 + $0xa8] sm:$0xff] %v2611
      %2636 = vst [vmem:[#allocation2 + $0xb0] sm:$0xff] %v2612
      %2637 = vst [vmem:[#allocation2 + $0xb8] sm:$0xff] %v2613
      %v2638 = vld [vmem:[#allocation2] sm:$0xff]
      %v2639 = vld [vmem:[#allocation2 + $0x8] sm:$0xff]
      %v2640 = vld [vmem:[#allocation2 + $0x10] sm:$0xff]
      %v2641 = vld [vmem:[#allocation2 + $0x18] sm:$0xff]
      %v2642 = vld [vmem:[#allocation2 + $0x20] sm:$0xff]
      %v2643 = vld [vmem:[#allocation2 + $0x28] sm:$0xff]
      %v2644 = vld [vmem:[#allocation2 + $0x30] sm:$0xff]
      %v2645 = vld [vmem:[#allocation2 + $0x38] sm:$0xff]
      %v2646 = vld [vmem:[#allocation2 + $0x40] sm:$0xff]
      %v2647 = vld [vmem:[#allocation2 + $0x48] sm:$0xff]
      %v2648 = vld [vmem:[#allocation2 + $0x50] sm:$0xff]
      %v2649 = vld [vmem:[#allocation2 + $0x58] sm:$0xff]
      %v2650 = vld [vmem:[#allocation2 + $0x60] sm:$0xff]
      %v2651 = vld [vmem:[#allocation2 + $0x68] sm:$0xff]
      %v2652 = vld [vmem:[#allocation2 + $0x70] sm:$0xff]
      %v2653 = vld [vmem:[#allocation2 + $0x78] sm:$0xff]
      %v2654 = vld [vmem:[#allocation2 + $0x80] sm:$0xff]
      %v2655 = vld [vmem:[#allocation2 + $0x88] sm:$0xff]
      %v2656 = vld [vmem:[#allocation2 + $0x90] sm:$0xff]
      %v2657 = vld [vmem:[#allocation2 + $0x98] sm:$0xff]
      %v2658 = vld [vmem:[#allocation2 + $0xa0] sm:$0xff]
      %v2659 = vld [vmem:[#allocation2 + $0xa8] sm:$0xff]
      %v2660 = vld [vmem:[#allocation2 + $0xb0] sm:$0xff]
      %v2661 = vld [vmem:[#allocation2 + $0xb8] sm:$0xff]
      %v2662 = vrot.slane %v2129, 1
      %v2663 = vrot.slane %v2130, 1
      %v2664 = vsel %vm918, %v2662, %v2663
      %v2665 = vrot.slane %v2131, 1
      %v2666 = vsel %vm918, %v2663, %v2665
      %v2667 = vrot.slane %v2132, 1
      %v2668 = vsel %vm918, %v2665, %v2667
      %v2669 = vrot.slane %v2133, 1
      %v2670 = vsel %vm918, %v2667, %v2669
      %v2671 = vrot.slane %v2134, 1
      %v2672 = vsel %vm918, %v2669, %v2671
      %v2673 = vrot.slane %v2135, 1
      %v2674 = vsel %vm918, %v2671, %v2673
      %v2675 = vrot.slane %v2136, 1
      %v2676 = vsel %vm918, %v2673, %v2675
      %v2677 = vrot.slane %v2137, 1
      %v2678 = vsel %vm918, %v2675, %v2677
      %v2679 = vrot.slane %v2138, 1
      %v2680 = vsel %vm918, %v2677, %v2679
      %v2681 = vrot.slane %v2139, 1
      %v2682 = vsel %vm918, %v2679, %v2681
      %v2683 = vrot.slane %v2140, 1
      %v2684 = vsel %vm918, %v2681, %v2683
      %v2696 = vrot.slane %v2449, 1
      %v2699 = vsel %vm954, %v2683, %v2696
      %s2701 = scalar_lea.vmem %s224, 512
      %v2702 = vld [vmem:[%s2701] sm:$0xf]
      %v2703 = vld [vmem:[%s2701 + $0x4] sm:$0xf]
      %v2704 = vld [vmem:[%s2701 + $0x8] sm:$0xf]
      %v2705 = vld [vmem:[%s2701 + $0xc] sm:$0xf]
      %v2706 = vld [vmem:[%s2701 + $0x10] sm:$0xf]
      %v2707 = vld [vmem:[%s2701 + $0x14] sm:$0xf]
      %v2708 = vld [vmem:[%s2701 + $0x18] sm:$0xf]
      %v2709 = vld [vmem:[%s2701 + $0x1c] sm:$0xf]
      %v2710 = vld [vmem:[%s2701 + $0x20] sm:$0xf]
      %v2711 = vld [vmem:[%s2701 + $0x24] sm:$0xf]
      %v2712 = vld [vmem:[%s2701 + $0x28] sm:$0xf]
      %v2713 = vld [vmem:[%s2701 + $0x2c] sm:$0xf]
      %v2714 = vld [vmem:[%s2701 + $0x30] sm:$0xf]
      %v2715 = vld [vmem:[%s2701 + $0x34] sm:$0xf]
      %v2716 = vld [vmem:[%s2701 + $0x38] sm:$0xf]
      %v2717 = vld [vmem:[%s2701 + $0x3c] sm:$0xf]
      %v2734 = vunpack.c.l.b16 %v2702
      %v2735 = vunpack.c.l.b16 %v2703
      %v2736 = vunpack.c.l.b16 %v2704
      %v2737 = vunpack.c.l.b16 %v2705
      %v2738 = vunpack.c.l.b16 %v2706
      %v2739 = vunpack.c.l.b16 %v2707
      %v2740 = vunpack.c.l.b16 %v2708
      %v2741 = vunpack.c.l.b16 %v2709
      %v2742 = vunpack.c.l.b16 %v2710
      %v2743 = vunpack.c.l.b16 %v2711
      %v2744 = vunpack.c.l.b16 %v2712
      %v2745 = vunpack.c.l.b16 %v2713
      %v2746 = vunpack.c.l.b16 %v2714
      %v2747 = vunpack.c.l.b16 %v2715
      %v2748 = vunpack.c.l.b16 %v2716
      %v2749 = vunpack.c.l.b16 %v2717
      %v2750 = vpack.c.b16 %v2735, %v2734
      %v2751 = vpack.c.b16 %v2737, %v2736
      %v2752 = vpack.c.b16 %v2739, %v2738
      %v2753 = vpack.c.b16 %v2741, %v2740
      %v2754 = vpack.c.b16 %v2743, %v2742
      %v2755 = vpack.c.b16 %v2745, %v2744
      %v2756 = vpack.c.b16 %v2747, %v2746
      %v2757 = vpack.c.b16 %v2749, %v2748
      %2766 = vmatpush.bf16.msra.mxu0 %v2757
      %2767 = vmatpush.bf16.msra.mxu0 %v2756
      %2768 = vmatpush.bf16.msra.mxu0 %v2755
      %2769 = vmatpush.bf16.msra.mxu0 %v2754
      %2770 = vmatpush.bf16.msra.mxu0 %v2753
      %2771 = vmatpush.bf16.msra.mxu0 %v2752
      %2772 = vmatpush.bf16.msra.mxu0 %v2751
      %2773 = vmatpush.bf16.msra.mxu0 %v2750
      %2774 = vmatmul.bf16.gmra.mxu0 %v2664
      %v2775 = vpop.f32.mrf.mxu0
      %v2776 = vadd.f32 0.0, %v2775
      %v2777 = vpop.f32.mrf.mxu0
      %v2778 = vadd.f32 0.0, %v2777
      %2779 = vmatmul.bf16.gmra.mxu0 %v2666
      %v2780 = vpop.f32.mrf.mxu0
      %v2781 = vadd.f32 0.0, %v2780
      %v2782 = vpop.f32.mrf.mxu0
      %v2783 = vadd.f32 0.0, %v2782
      %2784 = vmatmul.bf16.gmra.mxu0 %v2668
      %v2785 = vpop.f32.mrf.mxu0
      %v2786 = vadd.f32 0.0, %v2785
      %v2787 = vpop.f32.mrf.mxu0
      %v2788 = vadd.f32 0.0, %v2787
      %2789 = vmatmul.bf16.gmra.mxu0 %v2670
      %v2790 = vpop.f32.mrf.mxu0
      %v2791 = vadd.f32 0.0, %v2790
      %v2792 = vpop.f32.mrf.mxu0
      %v2793 = vadd.f32 0.0, %v2792
      %2794 = vmatmul.bf16.gmra.mxu0 %v2672
      %v2795 = vpop.f32.mrf.mxu0
      %v2796 = vadd.f32 0.0, %v2795
      %v2797 = vpop.f32.mrf.mxu0
      %v2798 = vadd.f32 0.0, %v2797
      %2799 = vmatmul.bf16.gmra.mxu0 %v2674
      %v2800 = vpop.f32.mrf.mxu0
      %v2801 = vadd.f32 0.0, %v2800
      %v2802 = vpop.f32.mrf.mxu0
      %v2803 = vadd.f32 0.0, %v2802
      %2804 = vmatmul.bf16.gmra.mxu0 %v2676
      %v2805 = vpop.f32.mrf.mxu0
      %v2806 = vadd.f32 0.0, %v2805
      %v2807 = vpop.f32.mrf.mxu0
      %v2808 = vadd.f32 0.0, %v2807
      %2809 = vmatmul.bf16.gmra.mxu0 %v2678
      %v2810 = vpop.f32.mrf.mxu0
      %v2811 = vadd.f32 0.0, %v2810
      %v2812 = vpop.f32.mrf.mxu0
      %v2813 = vadd.f32 0.0, %v2812
      %2814 = vmatmul.bf16.gmra.mxu0 %v2680
      %v2815 = vpop.f32.mrf.mxu0
      %v2816 = vadd.f32 0.0, %v2815
      %v2817 = vpop.f32.mrf.mxu0
      %v2818 = vadd.f32 0.0, %v2817
      %2819 = vmatmul.bf16.gmra.mxu0 %v2682
      %v2820 = vpop.f32.mrf.mxu0
      %v2821 = vadd.f32 0.0, %v2820
      %v2822 = vpop.f32.mrf.mxu0
      %v2823 = vadd.f32 0.0, %v2822
      %2824 = vmatmul.bf16.gmra.mxu0 %v2684
      %v2825 = vpop.f32.mrf.mxu0
      %v2826 = vadd.f32 0.0, %v2825
      %v2827 = vpop.f32.mrf.mxu0
      %v2828 = vadd.f32 0.0, %v2827
      %2829 = vmatmul.bf16.gmra.mxu0 %v2699
      %v2830 = vpop.f32.mrf.mxu0
      %v2831 = vadd.f32 0.0, %v2830
      %v2832 = vpop.f32.mrf.mxu0
      %v2833 = vadd.f32 0.0, %v2832
      %2834 = vdwg.mxu0
      %v2835 = vadd.f32 %v2638, %v2776
      %v2836 = vadd.f32 %v2639, %v2778
      %v2837 = vadd.f32 %v2640, %v2781
      %v2838 = vadd.f32 %v2641, %v2783
      %v2839 = vadd.f32 %v2642, %v2786
      %v2840 = vadd.f32 %v2643, %v2788
      %v2841 = vadd.f32 %v2644, %v2791
      %v2842 = vadd.f32 %v2645, %v2793
      %v2843 = vadd.f32 %v2646, %v2796
      %v2844 = vadd.f32 %v2647, %v2798
      %v2845 = vadd.f32 %v2648, %v2801
      %v2846 = vadd.f32 %v2649, %v2803
      %v2847 = vadd.f32 %v2650, %v2806
      %v2848 = vadd.f32 %v2651, %v2808
      %v2849 = vadd.f32 %v2652, %v2811
      %v2850 = vadd.f32 %v2653, %v2813
      %v2851 = vadd.f32 %v2654, %v2816
      %v2852 = vadd.f32 %v2655, %v2818
      %v2853 = vadd.f32 %v2656, %v2821
      %v2854 = vadd.f32 %v2657, %v2823
      %v2855 = vadd.f32 %v2658, %v2826
      %v2856 = vadd.f32 %v2659, %v2828
      %v2857 = vadd.f32 %v2660, %v2831
      %v2858 = vadd.f32 %v2661, %v2833
      %2859 = vst [vmem:[#allocation2] sm:$0xff] %v2835
      %2860 = vst [vmem:[#allocation2 + $0x8] sm:$0xff] %v2836
      %2861 = vst [vmem:[#allocation2 + $0x10] sm:$0xff] %v2837
      %2862 = vst [vmem:[#allocation2 + $0x18] sm:$0xff] %v2838
      %2863 = vst [vmem:[#allocation2 + $0x20] sm:$0xff] %v2839
      %2864 = vst [vmem:[#allocation2 + $0x28] sm:$0xff] %v2840
      %2865 = vst [vmem:[#allocation2 + $0x30] sm:$0xff] %v2841
      %2866 = vst [vmem:[#allocation2 + $0x38] sm:$0xff] %v2842
      %2867 = vst [vmem:[#allocation2 + $0x40] sm:$0xff] %v2843
      %2868 = vst [vmem:[#allocation2 + $0x48] sm:$0xff] %v2844
      %2869 = vst [vmem:[#allocation2 + $0x50] sm:$0xff] %v2845
      %2870 = vst [vmem:[#allocation2 + $0x58] sm:$0xff] %v2846
      %2871 = vst [vmem:[#allocation2 + $0x60] sm:$0xff] %v2847
      %2872 = vst [vmem:[#allocation2 + $0x68] sm:$0xff] %v2848
      %2873 = vst [vmem:[#allocation2 + $0x70] sm:$0xff] %v2849
      %2874 = vst [vmem:[#allocation2 + $0x78] sm:$0xff] %v2850
      %2875 = vst [vmem:[#allocation2 + $0x80] sm:$0xff] %v2851
      %2876 = vst [vmem:[#allocation2 + $0x88] sm:$0xff] %v2852
      %2877 = vst [vmem:[#allocation2 + $0x90] sm:$0xff] %v2853
      %2878 = vst [vmem:[#allocation2 + $0x98] sm:$0xff] %v2854
      %2879 = vst [vmem:[#allocation2 + $0xa0] sm:$0xff] %v2855
      %2880 = vst [vmem:[#allocation2 + $0xa8] sm:$0xff] %v2856
      %2881 = vst [vmem:[#allocation2 + $0xb0] sm:$0xff] %v2857
      %2882 = vst [vmem:[#allocation2 + $0xb8] sm:$0xff] %v2858
      %v2883 = vld [vmem:[#allocation2] sm:$0xff]
      %v2884 = vld [vmem:[#allocation2 + $0x8] sm:$0xff]
      %v2885 = vld [vmem:[#allocation2 + $0x18] sm:$0xff]
      %v2886 = vld [vmem:[#allocation2 + $0x20] sm:$0xff]
      %v2887 = vld [vmem:[#allocation2 + $0x30] sm:$0xff]
      %v2888 = vld [vmem:[#allocation2 + $0x38] sm:$0xff]
      %v2889 = vld [vmem:[#allocation2 + $0x48] sm:$0xff]
      %v2890 = vld [vmem:[#allocation2 + $0x50] sm:$0xff]
      %v2891 = vld [vmem:[#allocation2 + $0x60] sm:$0xff]
      %v2892 = vld [vmem:[#allocation2 + $0x68] sm:$0xff]
      %v2893 = vld [vmem:[#allocation2 + $0x78] sm:$0xff]
      %v2894 = vld [vmem:[#allocation2 + $0x80] sm:$0xff]
      %v2895 = vld [vmem:[#allocation2 + $0x90] sm:$0xff]
      %v2896 = vld [vmem:[#allocation2 + $0x98] sm:$0xff]
      %v2897 = vld [vmem:[#allocation2 + $0xa8] sm:$0xff]
      %v2898 = vld [vmem:[#allocation2 + $0xb0] sm:$0xff]
      %v2899 = vld [vmem:[%s227] sm:$0x1]
      %v2901 = vperm.slane %v2899, 0
      %v2903 = vadd.f32 %v2883, %v2901
      %v2904 = vadd.f32 %v2884, %v2901
      %v2905 = vadd.f32 %v2885, %v2901
      %v2906 = vadd.f32 %v2886, %v2901
      %v2907 = vadd.f32 %v2887, %v2901
      %v2908 = vadd.f32 %v2888, %v2901
      %v2909 = vadd.f32 %v2889, %v2901
      %v2910 = vadd.f32 %v2890, %v2901
      %v2911 = vadd.f32 %v2891, %v2901
      %v2912 = vadd.f32 %v2892, %v2901
      %v2913 = vadd.f32 %v2893, %v2901
      %v2914 = vadd.f32 %v2894, %v2901
      %v2915 = vadd.f32 %v2895, %v2901
      %v2916 = vadd.f32 %v2896, %v2901
      %v2917 = vadd.f32 %v2897, %v2901
      %v2918 = vadd.f32 %v2898, %v2901
      %v2919 = vmax.f32 %v2903, 0.0
      %v2920 = vmax.f32 %v2904, 0.0
      %v2921 = vmax.f32 %v2905, 0.0
      %v2922 = vmax.f32 %v2906, 0.0
      %v2923 = vmax.f32 %v2907, 0.0
      %v2924 = vmax.f32 %v2908, 0.0
      %v2925 = vmax.f32 %v2909, 0.0
      %v2926 = vmax.f32 %v2910, 0.0
      %v2927 = vmax.f32 %v2911, 0.0
      %v2928 = vmax.f32 %v2912, 0.0
      %v2929 = vmax.f32 %v2913, 0.0
      %v2930 = vmax.f32 %v2914, 0.0
      %v2931 = vmax.f32 %v2915, 0.0
      %v2932 = vmax.f32 %v2916, 0.0
      %v2933 = vmax.f32 %v2917, 0.0
      %v2934 = vmax.f32 %v2918, 0.0
      %v2935 = vpack.c.bf16 %v2919, %v2919
      %v2936 = vpack.c.bf16 %v2920, %v2920
      %v2937 = vpack.c.bf16 %v2921, %v2921
      %v2938 = vpack.c.bf16 %v2922, %v2922
      %v2939 = vpack.c.bf16 %v2923, %v2923
      %v2940 = vpack.c.bf16 %v2924, %v2924
      %v2941 = vpack.c.bf16 %v2925, %v2925
      %v2942 = vpack.c.bf16 %v2926, %v2926
      %v2943 = vpack.c.bf16 %v2927, %v2927
      %v2944 = vpack.c.bf16 %v2928, %v2928
      %v2945 = vpack.c.bf16 %v2929, %v2929
      %v2946 = vpack.c.bf16 %v2930, %v2930
      %v2947 = vpack.c.bf16 %v2931, %v2931
      %v2948 = vpack.c.bf16 %v2932, %v2932
      %v2949 = vpack.c.bf16 %v2933, %v2933
      %v2950 = vpack.c.bf16 %v2934, %v2934
      %2951 = vst [vmem:[%s240] sm:$0xf] %v2935
      %2952 = vst [vmem:[%s240 + $0x4] sm:$0xf] %v2936
      %2953 = vst [vmem:[%s240 + $0x8] sm:$0xf] %v2937
      %2954 = vst [vmem:[%s240 + $0xc] sm:$0xf] %v2938
      %2955 = vst [vmem:[%s240 + $0x10] sm:$0xf] %v2939
      %2956 = vst [vmem:[%s240 + $0x14] sm:$0xf] %v2940
      %2957 = vst [vmem:[%s240 + $0x18] sm:$0xf] %v2941
      %2958 = vst [vmem:[%s240 + $0x1c] sm:$0xf] %v2942
      %2959 = vst [vmem:[%s240 + $0x20] sm:$0xf] %v2943
      %2960 = vst [vmem:[%s240 + $0x24] sm:$0xf] %v2944
      %2961 = vst [vmem:[%s240 + $0x28] sm:$0xf] %v2945
      %2962 = vst [vmem:[%s240 + $0x2c] sm:$0xf] %v2946
      %2963 = vst [vmem:[%s240 + $0x30] sm:$0xf] %v2947
      %2964 = vst [vmem:[%s240 + $0x34] sm:$0xf] %v2948
      %2965 = vst [vmem:[%s240 + $0x38] sm:$0xf] %v2949
      %2966 = vst [vmem:[%s240 + $0x3c] sm:$0xf] %v2950
      %s2967 = smul.u32 8, %s21
      %p2968 = scmp.lt.s32.totalorder %s20, 1
      %s2969 = scalar_select %p2968, %s20, 1
      %p2970 = scmp.lt.s32.totalorder %s2967, 15
      %s2971 = scalar_select %p2970, %s2967, 15
      %p2972 = scmp.lt.s32.totalorder %s19, 0
      %s2973 = scalar_select %p2972, %s19, 0
      %s2974 = smul.addr %s2971, 2
      %s2975 = sadd.s32 %s2973, %s2974
      %s2976 = smul.addr %s2969, 32
      %s2977 = sadd.s32 %s2975, %s2976
      %s2978 = smul.addr %s2977, 4
      %s2979 = scalar_lea.vmem %s3, %s2978
      // Predicated region
      $region33: #{_lambda_.5} parent=31 // pred_check
        %p2980 = pneg %p133
      $region34: #{_lambda_.5} parent=31 // pred_check_branch
        %2982 = sbr.rel (%p2980) target = $region36
      $region35: #{_lambda_.5} parent=31 // pred_region
        %s2983 = smul.u32 8, %s21
      $region36: #{_lambda_.5} parent=31 // pred_fallthru
        _
    $region32: #{_lambda_.5} parent=5 // pred_fallthru
      _
    %p2984 = scmp.le.s32.totalorder 2, %s9
    // Predicated region
    $region37: #{_lambda_.5} parent=5 // pred_check
      %p2985 = pneg %p2984
    $region38: #{_lambda_.5} parent=5 // pred_check_branch
      %2987 = sbr.rel (%p2985) target = $region40
    $region39: #{_lambda_.5} parent=5 // pred_region
      %s2988 = ssub.s32 %s9, 2
      // Predicated region
      $region41: #{_lambda_.5} parent=39 // pred_check
        %p2989 = pneg %p139
      $region42: #{_lambda_.5} parent=39 // pred_check_branch
        %2991 = sbr.rel (%p2989) target = $region44
      $region43: #{_lambda_.5} parent=39 // pred_region
        %s2992 = smul.u32 8, %s24
        %p2993 = scmp.lt.s32.totalorder %s23, 1
        %s2994 = scalar_select %p2993, %s23, 1
        %p2995 = scmp.lt.s32.totalorder %s2992, 15
        %s2996 = scalar_select %p2995, %s2992, 15
        %p2997 = scmp.lt.s32.totalorder %s22, 0
        %s2998 = scalar_select %p2997, %s22, 0
        %s2999 = smul.addr %s2996, 2
        %s3000 = sadd.s32 %s2998, %s2999
        %s3001 = smul.addr %s2994, 32
        %s3002 = sadd.s32 %s3000, %s3001
        %s3003 = smul.addr %s3002, 4
        %s3004 = scalar_lea.vmem %s3, %s3003
      $region44: #{_lambda_.5} parent=39 // pred_fallthru
        _
    $region40: #{_lambda_.5} parent=5 // pred_fallthru
      _
  $region6: #{_lambda_.5} parent=0 // loop_footer
    %s13 = sadd.s32 1, %s9
  $region7: #{_lambda_.5} parent=0 // loop_footer_branch
    %8 = sbr.rel target = $region3
  $region8: #{_lambda_.5} parent=0 // loop_exit
    _

</llo_original>
